<compile_context>
chip_gen: v6e
topology: v6e:2x2x1
jax: 0.10.0
libtpu: 0.0.40
codegen_flags: <defaults>
</compile_context>

<pallas_src>
from functools import partial

import numpy as np
import jax
import jax.numpy as jnp
from jax import lax
from jax.experimental import pallas as pl
from jax.experimental.pallas import tpu as pltpu

EXPANSION = 4
_BN_EPS = 1e-5


def _chip_vmem_bytes():
    try:
        return int(pltpu.get_tpu_info().vmem_capacity_bytes)
    except Exception:
        return 64 * 1024 * 1024            # conservative v7x-class fallback


_VMEM_CAP = _chip_vmem_bytes()
# ~100 MiB scoped limit on 128 MiB-VMEM chips (v5e/v6e/v5p), ~51 MiB on v7x (64 MiB).
_VMEM_LIMIT = min(int(_VMEM_CAP * 0.8), 100 * 1024 * 1024)
_TILE_BUDGET = int(_VMEM_LIMIT * 0.6)      # working-set budget used when picking tiles


def _cparams(grid_rank):
    return pltpu.CompilerParams(
        dimension_semantics=("parallel",) * grid_rank,
        vmem_limit_bytes=_VMEM_LIMIT)


def _round_up(v, m):
    return ((v + m - 1) // m) * m


# ------------------------------------------------------------------ kernels --

def _prelu_affine(x, scale, shift, alpha):
    """f32 VPU prologue: y = PReLU(x * scale + shift) with a folded BN affine."""
    y = x * scale + shift
    return jnp.where(y >= 0.0, y, alpha * y)


def _conv1x1_kernel(x_ref, scale_ref, shift_ref, alpha_ref, w_ref, o_ref, st_ref):
    """out = PReLU(BN(x)) @ w  (bf16 MXU, f32 acc); also emits per-channel sum/sumsq."""
    a = _prelu_affine(x_ref[...].astype(jnp.float32),
                      scale_ref[...], shift_ref[...], alpha_ref[0, 0])
    y = jnp.dot(a.astype(jnp.bfloat16), w_ref[...], preferred_element_type=jnp.float32)
    o_ref[...] = y.astype(o_ref.dtype)
    s = jnp.sum(y, axis=0, keepdims=True)
    ss = jnp.sum(y * y, axis=0, keepdims=True)
    st_ref[0] = jnp.concatenate([s, ss], axis=0)


def _conv1x1_residual_kernel(x_ref, scale_ref, shift_ref, alpha_ref, w_ref, r_ref, o_ref):
    """Final 1x1 conv on the identity-shortcut path: out = PReLU(BN(x)) @ w + residual."""
    a = _prelu_affine(x_ref[...].astype(jnp.float32),
                      scale_ref[...], shift_ref[...], alpha_ref[0, 0])
    y = jnp.dot(a.astype(jnp.bfloat16), w_ref[...], preferred_element_type=jnp.float32)
    o_ref[...] = (y + r_ref[...].astype(jnp.float32)).astype(o_ref.dtype)


def _conv1x1_projection_kernel(x_ref, s3_ref, b3_ref, a3_ref, w3_ref,
                               xs_ref, s1_ref, b1_ref, a1_ref, wsc_ref, o_ref):
    """Final 1x1 conv fused with the projection shortcut:
       out = PReLU3(BN3(x)) @ w3 + PReLU1(BN1(x_sub)) @ wsc."""
    a = _prelu_affine(x_ref[...].astype(jnp.float32),
                      s3_ref[...], b3_ref[...], a3_ref[0, 0])
    y = jnp.dot(a.astype(jnp.bfloat16), w3_ref[...], preferred_element_type=jnp.float32)
    b = _prelu_affine(xs_ref[...].astype(jnp.float32),
                      s1_ref[...], b1_ref[...], a1_ref[0, 0])
    y = y + jnp.dot(b.astype(jnp.bfloat16), wsc_ref[...],
                    preferred_element_type=jnp.float32)
    o_ref[...] = y.astype(o_ref.dtype)


def _make_conv3x3_kernel(h, wd, c, co, stride):
    """Fused BN2/PReLU2 + 3x3 (pad=1) conv over one whole image per grid step.

    The dw taps are folded into the contraction: operand (h*Wc, 3c) built from three
    W-shifted slices of the zero-padded activation, weights reshaped to (3, 3c, co),
    so only 3 MXU matmuls per image instead of 9.  For stride>1 only the strided output
    rows are written and the emitted sum/sumsq cover only the strided positions.
    """
    wc = _round_up(wd, 8)                  # 8-aligned operand width (extra cols are zero)
    ho = h // stride

    def kernel(x_ref, scale_ref, shift_ref, alpha_ref, w_ref, o_ref, st_ref, apad_ref):
        # BN + PReLU prologue in f32 on the bf16-stored activation.
        a = _prelu_affine(x_ref[0].astype(jnp.float32),
                          scale_ref[...], shift_ref[...], alpha_ref[0, 0])

        # Zero-padded activation in VMEM scratch; interior starts at sublane-aligned
        # column 8, so the only un-aligned accesses are the (unavoidable) dw-shift loads.
        apad_ref[...] = jnp.zeros_like(apad_ref)
        apad_ref[pl.ds(1, h), pl.ds(8, wd), :] = a

        acc = jnp.zeros((h * wc, co), jnp.float32)
        for dh in range(3):
            rows = apad_ref[pl.ds(dh, h), :, :]                    # (h, wq, c)
            b = jnp.concatenate(
                [rows[:, 7 + dw:7 + dw + wc, :] for dw in range(3)], axis=-1)
            acc = acc + jnp.dot(b.reshape(h * wc, 3 * c).astype(jnp.bfloat16),
                                w_ref[dh],
                                preferred_element_type=jnp.float32)

        out = acc.reshape(h, wc, co)[:, :wd, :]                    # (h, wd, co) f32
        if stride == 1:
            o_ref[0] = out.astype(o_ref.dtype)
            sel = out
        else:
            # Strided output rows via a leading-axis reshape (cheap slab selection).
            # TODO(synk): also compact the W stride here (strided sublane loads) and skip
            # the full-width MXU work for the dropped columns.
            out = out.reshape(ho, stride, wd, co)[:, 0]            # (ho, wd, co)
            o_ref[0] = out.astype(o_ref.dtype)
            colsel = lax.broadcasted_iota(jnp.int32, (ho, wd, co), 1) % stride == 0
            sel = jnp.where(colsel, out, 0.0)

        s = jnp.sum(jnp.sum(sel, axis=0), axis=0, keepdims=True)
        ss = jnp.sum(jnp.sum(sel * sel, axis=0), axis=0, keepdims=True)
        st_ref[0] = jnp.concatenate([s, ss], axis=0)

    return kernel


# ----------------------------------------------------------------- wrappers --

def _row_tile(m, row_bytes, fixed_bytes=0, budget=None):
    """Largest row tile (divisor of m, multiple of 8) whose double-buffered working set
    fits the VMEM budget; falls back to a single block for small/odd row counts."""
    budget = _TILE_BUDGET if budget is None else budget
    for tm in (32768, 16384, 8192, 4096, 2048, 1024, 512, 256, 128, 64, 32, 16, 8):
        if tm <= m and m % tm == 0 and 2 * tm * row_bytes + fixed_bytes <= budget:
            return tm
    return m


def conv1x1_bn_prelu(x, scale, shift, alpha, w, out_dtype=jnp.bfloat16):
    m, k = x.shape
    n = w.shape[1]
    row_bytes = k * np.dtype(x.dtype).itemsize + n * np.dtype(out_dtype).itemsize
    tm = _row_tile(m, row_bytes, fixed_bytes=2 * k * n * 2 + 8 * n * 4)
    g = m // tm
    # TODO(synk): for large Cin/Cout add K/N grid axes with a VMEM accumulator, and
    # single-buffer the constant-index weight/scale blocks (pl.Buffered(1)) on v7x to
    # reclaim VMEM for larger row tiles.
    return pl.pallas_call(
        _conv1x1_kernel,
        out_shape=(jax.ShapeDtypeStruct((m, n), out_dtype),
                   jax.ShapeDtypeStruct((g, 2, n), jnp.float32)),
        grid=(g,),
        in_specs=[
            pl.BlockSpec((tm, k), lambda i: (i, 0)),
            pl.BlockSpec((1, k), lambda i: (0, 0)),
            pl.BlockSpec((1, k), lambda i: (0, 0)),
            pl.BlockSpec(memory_space=pltpu.MemorySpace.SMEM),   # PReLU alpha scalar
            pl.BlockSpec((k, n), lambda i: (0, 0)),
        ],
        out_specs=(pl.BlockSpec((tm, n), lambda i: (i, 0)),
                   pl.BlockSpec((1, 2, n), lambda i: (i, 0, 0))),
        compiler_params=_cparams(1),
    )(x, scale, shift, alpha, w)


def conv1x1_bn_prelu_residual(x, scale, shift, alpha, w, res):
    m, k = x.shape
    n = w.shape[1]
    row_bytes = (k * np.dtype(x.dtype).itemsize + n * np.dtype(res.dtype).itemsize + n * 4)
    tm = _row_tile(m, row_bytes, fixed_bytes=2 * k * n * 2)
    return pl.pallas_call(
        _conv1x1_residual_kernel,
        out_shape=jax.ShapeDtypeStruct((m, n), jnp.float32),
        grid=(m // tm,),
        in_specs=[
            pl.BlockSpec((tm, k), lambda i: (i, 0)),
            pl.BlockSpec((1, k), lambda i: (0, 0)),
            pl.BlockSpec((1, k), lambda i: (0, 0)),
            pl.BlockSpec(memory_space=pltpu.MemorySpace.SMEM),
            pl.BlockSpec((k, n), lambda i: (0, 0)),
            pl.BlockSpec((tm, n), lambda i: (i, 0)),
        ],
        out_specs=pl.BlockSpec((tm, n), lambda i: (i, 0)),
        compiler_params=_cparams(1),
    )(x, scale, shift, alpha, w, res)


def conv1x1_bn_prelu_projection(x, s3, b3, a3, w3, xs, s1, b1, a1, wsc):
    m, k = x.shape
    n = w3.shape[1]
    k2 = xs.shape[1]
    row_bytes = (k * np.dtype(x.dtype).itemsize + k2 * np.dtype(xs.dtype).itemsize + n * 4)
    tm = _row_tile(m, row_bytes, fixed_bytes=2 * (k + k2) * n * 2)
    return pl.pallas_call(
        _conv1x1_projection_kernel,
        out_shape=jax.ShapeDtypeStruct((m, n), jnp.float32),
        grid=(m // tm,),
        in_specs=[
            pl.BlockSpec((tm, k), lambda i: (i, 0)),
            pl.BlockSpec((1, k), lambda i: (0, 0)),
            pl.BlockSpec((1, k), lambda i: (0, 0)),
            pl.BlockSpec(memory_space=pltpu.MemorySpace.SMEM),
            pl.BlockSpec((k, n), lambda i: (0, 0)),
            pl.BlockSpec((tm, k2), lambda i: (i, 0)),
            pl.BlockSpec((1, k2), lambda i: (0, 0)),
            pl.BlockSpec((1, k2), lambda i: (0, 0)),
            pl.BlockSpec(memory_space=pltpu.MemorySpace.SMEM),
            pl.BlockSpec((k2, n), lambda i: (0, 0)),
        ],
        out_specs=pl.BlockSpec((tm, n), lambda i: (i, 0)),
        compiler_params=_cparams(1),
    )(x, s3, b3, a3, w3, xs, s1, b1, a1, wsc)


def conv3x3_bn_prelu(x_nhwc, scale, shift, alpha, w2, stride):
    """3x3, pad=1 conv with fused BN+PReLU prologue, one image per grid step.

    Returns (y, stats, kernel_stride):
      kernel_stride == stride > 1 : y is (N, H//stride, W, Co) bf16 (H already strided);
                                    stats cover only the strided output positions.
      kernel_stride == 1          : y is full-resolution (N, H, W, Co) bf16.
    """
    n, h, wd, c = x_nhwc.shape
    co = w2.shape[-1]
    kstride = stride if (stride > 1 and h % stride == 0) else 1
    out_h = h // kstride
    wq = _round_up(wd, 8) + 16                     # scratch width: aligned interior + halo
    w2r = jnp.reshape(w2, (3, 3 * c, co)).astype(jnp.bfloat16)
    # TODO(synk): for very large H*W*C images split H into halo'd bands (manual DMA) and
    # flatten (N, bands) so v7x's two TensorCores always see >= 8 parallel grid points.
    return pl.pallas_call(
        _make_conv3x3_kernel(h, wd, c, co, kstride),
        out_shape=(jax.ShapeDtypeStruct((n, out_h, wd, co), jnp.bfloat16),
                   jax.ShapeDtypeStruct((n, 2, co), jnp.float32)),
        grid=(n,),
        in_specs=[
            pl.BlockSpec((1, h, wd, c), lambda i: (i, 0, 0, 0)),   # auto-pipelined image
            pl.BlockSpec((1, c), lambda i: (0, 0)),
            pl.BlockSpec((1, c), lambda i: (0, 0)),
            pl.BlockSpec(memory_space=pltpu.MemorySpace.SMEM),
            pl.BlockSpec((3, 3 * c, co), lambda i: (0, 0, 0)),
        ],
        out_specs=(pl.BlockSpec((1, out_h, wd, co), lambda i: (i, 0, 0, 0)),
                   pl.BlockSpec((1, 2, co), lambda i: (i, 0, 0))),
        scratch_shapes=[pltpu.VMEM((h + 2, wq, c), jnp.float32)],
        compiler_params=_cparams(1),
    )(x_nhwc, scale, shift, alpha, w2r) + (kstride,)


# ------------------------------------------------------------ forward (glue) --

def _fold_bn(gamma, beta, mean, var):
    scale = gamma * lax.rsqrt(var + _BN_EPS)
    shift = beta - mean * scale
    return scale.reshape(1, -1), shift.reshape(1, -1)


def _moments_from_stats(st, count):
    # TODO(synk): E[x^2]-E[x]^2 in f32 can cancel for very large/offset activations;
    # fine at these scales, a centered second pass would be the robust alternative.
    c = st.shape[-1]
    s = jnp.sum(st[..., 0, :].reshape(-1, c), axis=0)
    ss = jnp.sum(st[..., 1, :].reshape(-1, c), axis=0)
    mean = s / count
    var = jnp.maximum(ss / count - mean * mean, 0.0)
    return mean, var


@partial(jax.jit, static_argnums=(2,))
def preact_bottleneck(x_nchw, params, stride):
    x = jnp.transpose(x_nchw, (0, 2, 3, 1)).astype(jnp.float32)   # NCHW -> NHWC
    n, h, w, cin = x.shape
    planes = params["w1"].shape[1]
    cout = EXPANSION * planes

    w1 = params["w1"].astype(jnp.bfloat16)
    w3 = params["w3"].astype(jnp.bfloat16)

    x_flat = x.reshape(-1, cin)
    m1 = x_flat.shape[0]

    # BN1 fold: the block input has no producing kernel, so its batch stats come from glue.
    mean1 = jnp.mean(x_flat, axis=0)
    var1 = jnp.mean(jnp.square(x_flat - mean1), axis=0)
    s1, b1 = _fold_bn(params["bn1_g"], params["bn1_b"], mean1, var1)

    # conv1 (1x1) with fused BN1+PReLU1 prologue; bf16 output + BN2 batch-stat partials.
    c1_flat, st1 = conv1x1_bn_prelu(x_flat, s1, b1, params["a1"], w1)
    mean2, var2 = _moments_from_stats(st1, float(m1))
    s2, b2 = _fold_bn(params["bn2_g"], params["bn2_b"], mean2, var2)

    # conv2 (3x3, pad=1) with fused BN2+PReLU2 prologue; bf16 output + BN3 stat partials.
    c2_k, st2, kstride = conv3x3_bn_prelu(
        c1_flat.reshape(n, h, w, planes), s2, b2, params["a2"], params["w2"], stride)
    if stride == 1:
        c2 = c2_k
        mean3, var3 = _moments_from_stats(st2, float(n * h * w))
    elif kstride == stride:
        # Kernel already strided H and emitted strided-position stats; only the cheap
        # W subsample of the small bf16 tensor is left to XLA.
        c2 = c2_k[:, :, ::stride, :]
        mean3, var3 = _moments_from_stats(st2, float(n * c2.shape[1] * c2.shape[2]))
    else:
        # Fallback (H not divisible by stride): full-res kernel output, subsample in glue.
        c2 = c2_k[:, ::stride, ::stride, :]
        c2f = c2.astype(jnp.float32)
        mean3 = jnp.mean(c2f, axis=(0, 1, 2))
        var3 = jnp.mean(jnp.square(c2f - mean3), axis=(0, 1, 2))
    ho, wo = c2.shape[1], c2.shape[2]
    s3, b3 = _fold_bn(params["bn3_g"], params["bn3_b"], mean3, var3)
    c2_flat = c2.reshape(-1, planes)

    # conv3 (1x1) with fused BN3+PReLU3 prologue and fused residual add.
    if stride != 1 or cin != cout:
        wsc = params["wsc"].astype(jnp.bfloat16)
        x_sub = x[:, ::stride, ::stride, :].reshape(-1, cin)
        out_flat = conv1x1_bn_prelu_projection(
            c2_flat, s3, b3, params["a3"], w3,
            x_sub, s1, b1, params["a1"], wsc)
    else:
        out_flat = conv1x1_bn_prelu_residual(
            c2_flat, s3, b3, params["a3"], w3, x_flat)

    out = out_flat.reshape(n, ho, wo, cout)
    return jnp.transpose(out, (0, 3, 1, 2))                       # NHWC -> NCHW


# ---------------------------------------------------------- pure-JAX reference

def preact_bottleneck_ref(x_nchw, params, stride):
    def bn(y, g, b):
        mean = jnp.mean(y, axis=(0, 1, 2))
        var = jnp.mean(jnp.square(y - mean), axis=(0, 1, 2))
        return (y - mean) / jnp.sqrt(var + _BN_EPS) * g + b

    def prelu(y, a):
        return jnp.where(y >= 0.0, y, a * y)

    x = jnp.transpose(x_nchw, (0, 2, 3, 1))
    cin = x.shape[-1]
    planes = params["w1"].shape[1]
    cout = EXPANSION * planes

    act1 = prelu(bn(x, params["bn1_g"], params["bn1_b"]), params["a1"][0, 0])
    c1 = jnp.einsum("nhwc,cd->nhwd", act1, params["w1"])
    act2 = prelu(bn(c1, params["bn2_g"], params["bn2_b"]), params["a2"][0, 0])
    c2 = lax.conv_general_dilated(
        act2, params["w2"], window_strides=(stride, stride),
        padding=((1, 1), (1, 1)), dimension_numbers=("NHWC", "HWIO", "NHWC"))
    act3 = prelu(bn(c2, params["bn3_g"], params["bn3_b"]), params["a3"][0, 0])
    c3 = jnp.einsum("nhwc,cd->nhwd", act3, params["w3"])
    if stride != 1 or cin != cout:
        sc = jnp.einsum("nhwc,cd->nhwd", act1[:, ::stride, ::stride, :], params["wsc"])
    else:
        sc = x
    return jnp.transpose(c3 + sc, (0, 3, 1, 2))


# --------------------------------------------------------------------- params

def init_params(key, in_planes, planes, stride):
    cout = EXPANSION * planes
    ks = jax.random.split(key, 10)
    f32 = jnp.float32
    p = {
        "bn1_g": 1.0 + 0.1 * jax.random.normal(ks[0], (in_planes,), f32),
        "bn1_b": 0.1 * jax.random.normal(ks[1], (in_planes,), f32),
        "a1": jnp.full((1, 1), 0.25, f32),
        "w1": 0.2 * jax.random.normal(ks[2], (in_planes, planes), f32),
        "bn2_g": 1.0 + 0.1 * jax.random.normal(ks[3], (planes,), f32),
        "bn2_b": 0.1 * jax.random.normal(ks[4], (planes,), f32),
        "a2": jnp.full((1, 1), 0.25, f32),
        "w2": 0.2 * jax.random.normal(ks[5], (3, 3, planes, planes), f32),
        "bn3_g": 1.0 + 0.1 * jax.random.normal(ks[6], (planes,), f32),
        "bn3_b": 0.1 * jax.random.normal(ks[7], (planes,), f32),
        "a3": jnp.full((1, 1), 0.25, f32),
        "w3": 0.2 * jax.random.normal(ks[8], (planes, cout), f32),
    }
    if stride != 1 or in_planes != cout:
        p["wsc"] = 0.2 * jax.random.normal(ks[9], (in_planes, cout), f32)
    return p


# ----------------------------------------------------------------------- main

if __name__ == "__main__":
    key = jax.random.PRNGKey(0)
    configs = [
        dict(in_planes=8, planes=4, stride=2),    # projection-shortcut path
        dict(in_planes=16, planes=4, stride=1),   # identity-shortcut path
    ]
    n, h, w = 2, 16, 16
    for i, cfg in enumerate(configs):
        kx, kp = jax.random.split(jax.random.fold_in(key, i))
        x = jax.random.normal(kx, (n, cfg["in_planes"], h, w), jnp.float32)
        params = init_params(kp, cfg["in_planes"], cfg["planes"], cfg["stride"])
        out = jax.block_until_ready(preact_bottleneck(x, params, cfg["stride"]))
        ref = jax.block_until_ready(preact_bottleneck_ref(x, params, cfg["stride"]))
        # bf16 activation storage + bf16 MXU operands with f32 accumulation.
        np.testing.assert_allclose(np.asarray(out), np.asarray(ref),
                                   atol=2e-2, rtol=2e-2)
    print("KERNEL_OK")
</pallas_src>

<mosaic_0001>
module attributes {stable_mosaic.version = 11 : i64} {
  func.func @kernel(%arg0: i32, %arg1: memref<1x16x16x4xbf16, #tpu.memory_space<vmem>>, %arg2: memref<1x4xf32, #tpu.memory_space<vmem>>, %arg3: memref<1x4xf32, #tpu.memory_space<vmem>>, %arg4: memref<1x1xf32, #tpu.memory_space<smem>>, %arg5: memref<3x12x4xbf16, #tpu.memory_space<vmem>>, %arg6: memref<1x8x16x4xbf16, #tpu.memory_space<vmem>>, %arg7: memref<1x2x4xf32, #tpu.memory_space<vmem>>, %arg8: memref<18x32x4xf32, #tpu.memory_space<vmem>>) attributes {dimension_semantics = [#tpu.dimension_semantics<parallel>], iteration_bounds = array<i64: 2>, scalar_prefetch = 0 : i64, scratch_operands = 1 : i64, tpu.core_type = #tpu.core_type<tc>, window_params = [{transform_indices = @transform_0, window_bounds = array<i64: 1, 16, 16, 4>}, {pipeline_mode = #tpu.pipeline_mode<synchronous>, transform_indices = @transform_1, window_bounds = array<i64: 1, 4>}, {pipeline_mode = #tpu.pipeline_mode<synchronous>, transform_indices = @transform_2, window_bounds = array<i64: 1, 4>}, {transform_indices = @transform_3, window_bounds = array<i64: 1, 1>}, {pipeline_mode = #tpu.pipeline_mode<synchronous>, transform_indices = @transform_4, window_bounds = array<i64: 3, 12, 4>}, {transform_indices = @transform_5, window_bounds = array<i64: 1, 8, 16, 4>}, {transform_indices = @transform_6, window_bounds = array<i64: 1, 2, 4>}]} {
    %c0 = arith.constant 0 : index
    %c0_0 = arith.constant 0 : index
    %c0_1 = arith.constant 0 : index
    %c0_2 = arith.constant 0 : index
    %0 = vector.load %arg1[%c0, %c0_0, %c0_1, %c0_2] : memref<1x16x16x4xbf16, #tpu.memory_space<vmem>>, vector<1x16x16x4xbf16>
    %1 = vector.shape_cast %0 : vector<1x16x16x4xbf16> to vector<16x16x4xbf16>
    %2 = arith.extf %1 : vector<16x16x4xbf16> to vector<16x16x4xf32>
    %c0_3 = arith.constant 0 : index
    %c0_4 = arith.constant 0 : index
    %3 = vector.load %arg2[%c0_3, %c0_4] : memref<1x4xf32, #tpu.memory_space<vmem>>, vector<1x4xf32>
    %c0_5 = arith.constant 0 : index
    %c0_6 = arith.constant 0 : index
    %4 = vector.load %arg3[%c0_5, %c0_6] : memref<1x4xf32, #tpu.memory_space<vmem>>, vector<1x4xf32>
    %c0_7 = arith.constant 0 : index
    %c0_8 = arith.constant 0 : index
    %5 = memref.load %arg4[%c0_7, %c0_8] : memref<1x1xf32, #tpu.memory_space<smem>>
    %6 = vector.shape_cast %3 : vector<1x4xf32> to vector<1x1x4xf32>
    %7 = vector.broadcast %6 : vector<1x1x4xf32> to vector<16x16x4xf32>
    %8 = arith.mulf %2, %7 : vector<16x16x4xf32>
    %9 = vector.shape_cast %4 : vector<1x4xf32> to vector<1x1x4xf32>
    %10 = vector.broadcast %9 : vector<1x1x4xf32> to vector<16x16x4xf32>
    %11 = arith.addf %8, %10 : vector<16x16x4xf32>
    %cst = arith.constant 0.000000e+00 : f32
    %12 = vector.broadcast %cst : f32 to vector<16x16x4xf32>
    %13 = arith.cmpf oge, %11, %12 : vector<16x16x4xf32>
    %14 = vector.broadcast %5 : f32 to vector<16x16x4xf32>
    %15 = arith.mulf %14, %11 : vector<16x16x4xf32>
    %16 = arith.select %13, %11, %15 : vector<16x16x4xi1>, vector<16x16x4xf32>
    %cst_9 = arith.constant 0.000000e+00 : f32
    %17 = vector.broadcast %cst_9 : f32 to vector<18x32x4xf32>
    %c0_10 = arith.constant 0 : index
    %c0_11 = arith.constant 0 : index
    %c0_12 = arith.constant 0 : index
    %18 = vector.load %arg8[%c0_10, %c0_11, %c0_12] : memref<18x32x4xf32, #tpu.memory_space<vmem>>, vector<18x32x4xf32>
    tpu.vector_store %arg8[%c0_10, %c0_11, %c0_12], %17 {strides = array<i32>} : memref<18x32x4xf32, #tpu.memory_space<vmem>>, vector<18x32x4xf32>,
    %c1 = arith.constant 1 : index
    %c8 = arith.constant 8 : index
    %c0_13 = arith.constant 0 : index
    %19 = vector.load %arg8[%c1, %c8, %c0_13] : memref<18x32x4xf32, #tpu.memory_space<vmem>>, vector<16x16x4xf32>
    tpu.vector_store %arg8[%c1, %c8, %c0_13], %16 {strides = array<i32>} : memref<18x32x4xf32, #tpu.memory_space<vmem>>, vector<16x16x4xf32>,
    %cst_14 = arith.constant 0.000000e+00 : f32
    %20 = vector.broadcast %cst_14 : f32 to vector<256x4xf32>
    %c0_15 = arith.constant 0 : index
    %c0_16 = arith.constant 0 : index
    %c0_17 = arith.constant 0 : index
    %21 = vector.load %arg8[%c0_15, %c0_16, %c0_17] : memref<18x32x4xf32, #tpu.memory_space<vmem>>, vector<16x32x4xf32>
    %22 = vector.extract_strided_slice %21 {offsets = [0, 7, 0], sizes = [16, 16, 4], strides = [1, 1, 1]} : vector<16x32x4xf32> to vector<16x16x4xf32>
    %23 = vector.extract_strided_slice %21 {offsets = [0, 8, 0], sizes = [16, 16, 4], strides = [1, 1, 1]} : vector<16x32x4xf32> to vector<16x16x4xf32>
    %24 = vector.extract_strided_slice %21 {offsets = [0, 9, 0], sizes = [16, 16, 4], strides = [1, 1, 1]} : vector<16x32x4xf32> to vector<16x16x4xf32>
    %25 = tpu.concatenate %22, %23, %24 in 2 : vector<16x16x4xf32>, vector<16x16x4xf32>, vector<16x16x4xf32> -> vector<16x16x12xf32>
    %26 = vector.shape_cast %25 : vector<16x16x12xf32> to vector<256x12xf32>
    %27 = arith.truncf %26 : vector<256x12xf32> to vector<256x12xbf16>
    %c0_18 = arith.constant 0 : index
    %c0_19 = arith.constant 0 : index
    %c0_20 = arith.constant 0 : index
    %28 = vector.load %arg5[%c0_18, %c0_19, %c0_20] : memref<3x12x4xbf16, #tpu.memory_space<vmem>>, vector<1x12x4xbf16>
    %29 = vector.shape_cast %28 : vector<1x12x4xbf16> to vector<12x4xbf16>
    %cst_21 = arith.constant dense<0.000000e+00> : vector<256x4xf32>
    %30 = tpu.matmul %27, %29, %cst_21 {dimension_numbers = #tpu.dot_dimension_numbers<[1], [0], [0], [1], [0, 0, 1, 1], [], []>} : vector<256x12xbf16>, vector<12x4xbf16>, vector<256x4xf32> -> vector<256x4xf32>
    %31 = arith.addf %20, %30 : vector<256x4xf32>
    %c1_22 = arith.constant 1 : index
    %c0_23 = arith.constant 0 : index
    %c0_24 = arith.constant 0 : index
    %32 = vector.load %arg8[%c1_22, %c0_23, %c0_24] : memref<18x32x4xf32, #tpu.memory_space<vmem>>, vector<16x32x4xf32>
    %33 = vector.extract_strided_slice %32 {offsets = [0, 7, 0], sizes = [16, 16, 4], strides = [1, 1, 1]} : vector<16x32x4xf32> to vector<16x16x4xf32>
    %34 = vector.extract_strided_slice %32 {offsets = [0, 8, 0], sizes = [16, 16, 4], strides = [1, 1, 1]} : vector<16x32x4xf32> to vector<16x16x4xf32>
    %35 = vector.extract_strided_slice %32 {offsets = [0, 9, 0], sizes = [16, 16, 4], strides = [1, 1, 1]} : vector<16x32x4xf32> to vector<16x16x4xf32>
    %36 = tpu.concatenate %33, %34, %35 in 2 : vector<16x16x4xf32>, vector<16x16x4xf32>, vector<16x16x4xf32> -> vector<16x16x12xf32>
    %37 = vector.shape_cast %36 : vector<16x16x12xf32> to vector<256x12xf32>
    %38 = arith.truncf %37 : vector<256x12xf32> to vector<256x12xbf16>
    %c1_25 = arith.constant 1 : index
    %c0_26 = arith.constant 0 : index
    %c0_27 = arith.constant 0 : index
    %39 = vector.load %arg5[%c1_25, %c0_26, %c0_27] : memref<3x12x4xbf16, #tpu.memory_space<vmem>>, vector<1x12x4xbf16>
    %40 = vector.shape_cast %39 : vector<1x12x4xbf16> to vector<12x4xbf16>
    %cst_28 = arith.constant dense<0.000000e+00> : vector<256x4xf32>
    %41 = tpu.matmul %38, %40, %cst_28 {dimension_numbers = #tpu.dot_dimension_numbers<[1], [0], [0], [1], [0, 0, 1, 1], [], []>} : vector<256x12xbf16>, vector<12x4xbf16>, vector<256x4xf32> -> vector<256x4xf32>
    %42 = arith.addf %31, %41 : vector<256x4xf32>
    %c2 = arith.constant 2 : index
    %c0_29 = arith.constant 0 : index
    %c0_30 = arith.constant 0 : index
    %43 = vector.load %arg8[%c2, %c0_29, %c0_30] : memref<18x32x4xf32, #tpu.memory_space<vmem>>, vector<16x32x4xf32>
    %44 = vector.extract_strided_slice %43 {offsets = [0, 7, 0], sizes = [16, 16, 4], strides = [1, 1, 1]} : vector<16x32x4xf32> to vector<16x16x4xf32>
    %45 = vector.extract_strided_slice %43 {offsets = [0, 8, 0], sizes = [16, 16, 4], strides = [1, 1, 1]} : vector<16x32x4xf32> to vector<16x16x4xf32>
    %46 = vector.extract_strided_slice %43 {offsets = [0, 9, 0], sizes = [16, 16, 4], strides = [1, 1, 1]} : vector<16x32x4xf32> to vector<16x16x4xf32>
    %47 = tpu.concatenate %44, %45, %46 in 2 : vector<16x16x4xf32>, vector<16x16x4xf32>, vector<16x16x4xf32> -> vector<16x16x12xf32>
    %48 = vector.shape_cast %47 : vector<16x16x12xf32> to vector<256x12xf32>
    %49 = arith.truncf %48 : vector<256x12xf32> to vector<256x12xbf16>
    %c2_31 = arith.constant 2 : index
    %c0_32 = arith.constant 0 : index
    %c0_33 = arith.constant 0 : index
    %50 = vector.load %arg5[%c2_31, %c0_32, %c0_33] : memref<3x12x4xbf16, #tpu.memory_space<vmem>>, vector<1x12x4xbf16>
    %51 = vector.shape_cast %50 : vector<1x12x4xbf16> to vector<12x4xbf16>
    %cst_34 = arith.constant dense<0.000000e+00> : vector<256x4xf32>
    %52 = tpu.matmul %49, %51, %cst_34 {dimension_numbers = #tpu.dot_dimension_numbers<[1], [0], [0], [1], [0, 0, 1, 1], [], []>} : vector<256x12xbf16>, vector<12x4xbf16>, vector<256x4xf32> -> vector<256x4xf32>
    %53 = arith.addf %42, %52 : vector<256x4xf32>
    %54 = vector.shape_cast %53 : vector<256x4xf32> to vector<16x16x4xf32>
    %55 = vector.shape_cast %54 : vector<16x16x4xf32> to vector<8x2x16x4xf32>
    %56 = vector.extract_strided_slice %55 {offsets = [0, 0, 0, 0], sizes = [8, 1, 16, 4], strides = [1, 1, 1, 1]} : vector<8x2x16x4xf32> to vector<8x1x16x4xf32>
    %57 = vector.shape_cast %56 : vector<8x1x16x4xf32> to vector<8x16x4xf32>
    %58 = arith.truncf %57 : vector<8x16x4xf32> to vector<8x16x4xbf16>
    %c0_35 = arith.constant 0 : index
    %c0_36 = arith.constant 0 : index
    %c0_37 = arith.constant 0 : index
    %c0_38 = arith.constant 0 : index
    %59 = vector.load %arg6[%c0_35, %c0_36, %c0_37, %c0_38] : memref<1x8x16x4xbf16, #tpu.memory_space<vmem>>, vector<1x8x16x4xbf16>
    %60 = vector.shape_cast %59 : vector<1x8x16x4xbf16> to vector<8x16x4xbf16>
    %61 = vector.shape_cast %58 : vector<8x16x4xbf16> to vector<1x8x16x4xbf16>
    tpu.vector_store %arg6[%c0_35, %c0_36, %c0_37, %c0_38], %61 {strides = array<i32>} : memref<1x8x16x4xbf16, #tpu.memory_space<vmem>>, vector<1x8x16x4xbf16>,
    %62 = tpu.iota {dimensions = array<i32: 1>} : vector<8x16x4xi32>
    %c2_i32 = arith.constant 2 : i32
    %c0_i32 = arith.constant 0 : i32
    %63 = arith.cmpi eq, %c2_i32, %c0_i32 : i32
    %c1_i32 = arith.constant 1 : i32
    %64 = arith.select %63, %c1_i32, %c2_i32 : i32
    %65 = vector.broadcast %64 : i32 to vector<8x16x4xi32>
    %66 = arith.remsi %62, %65 : vector<8x16x4xi32>
    %c0_i32_39 = arith.constant 0 : i32
    %67 = vector.broadcast %c0_i32_39 : i32 to vector<8x16x4xi32>
    %68 = arith.cmpi ne, %66, %67 : vector<8x16x4xi32>
    %c0_i32_40 = arith.constant 0 : i32
    %69 = vector.broadcast %c0_i32_40 : i32 to vector<8x16x4xi32>
    %70 = arith.cmpi slt, %66, %69 : vector<8x16x4xi32>
    %c0_i32_41 = arith.constant 0 : i32
    %71 = arith.cmpi slt, %64, %c0_i32_41 : i32
    %72 = vector.broadcast %71 : i1 to vector<8x16x4xi1>
    %73 = vector.broadcast %72 : vector<8x16x4xi1> to vector<8x16x4xi1>
    %74 = arith.xori %70, %73 : vector<8x16x4xi1>
    %75 = arith.andi %74, %68 : vector<8x16x4xi1>
    %76 = vector.broadcast %64 : i32 to vector<8x16x4xi32>
    %77 = arith.addi %66, %76 : vector<8x16x4xi32>
    %78 = arith.select %75, %77, %66 : vector<8x16x4xi1>, vector<8x16x4xi32>
    %c0_i32_42 = arith.constant 0 : i32
    %79 = vector.broadcast %c0_i32_42 : i32 to vector<8x16x4xi32>
    %80 = arith.cmpi eq, %78, %79 : vector<8x16x4xi32>
    %cst_43 = arith.constant 0.000000e+00 : f32
    %81 = vector.broadcast %cst_43 : f32 to vector<8x16x4xf32>
    %82 = arith.select %80, %57, %81 : vector<8x16x4xi1>, vector<8x16x4xf32>
    %cst_44 = arith.constant dense<0.000000e+00> : vector<16x4xf32>
    %83 = vector.multi_reduction <add>, %82, %cst_44 [0] : vector<8x16x4xf32> to vector<16x4xf32>
    %cst_45 = arith.constant dense<0.000000e+00> : vector<4xf32>
    %84 = vector.multi_reduction <add>, %83, %cst_45 [0] : vector<16x4xf32> to vector<4xf32>
    %85 = vector.shape_cast %84 : vector<4xf32> to vector<1x4xf32>
    %86 = arith.mulf %82, %82 : vector<8x16x4xf32>
    %cst_46 = arith.constant dense<0.000000e+00> : vector<16x4xf32>
    %87 = vector.multi_reduction <add>, %86, %cst_46 [0] : vector<8x16x4xf32> to vector<16x4xf32>
    %cst_47 = arith.constant dense<0.000000e+00> : vector<4xf32>
    %88 = vector.multi_reduction <add>, %87, %cst_47 [0] : vector<16x4xf32> to vector<4xf32>
    %89 = vector.shape_cast %88 : vector<4xf32> to vector<1x4xf32>
    %90 = tpu.concatenate %85, %89 in 0 : vector<1x4xf32>, vector<1x4xf32> -> vector<2x4xf32>
    %c0_48 = arith.constant 0 : index
    %c0_49 = arith.constant 0 : index
    %c0_50 = arith.constant 0 : index
    %91 = vector.load %arg7[%c0_48, %c0_49, %c0_50] : memref<1x2x4xf32, #tpu.memory_space<vmem>>, vector<1x2x4xf32>
    %92 = vector.shape_cast %91 : vector<1x2x4xf32> to vector<2x4xf32>
    %93 = vector.shape_cast %90 : vector<2x4xf32> to vector<1x2x4xf32>
    tpu.vector_store %arg7[%c0_48, %c0_49, %c0_50], %93 {strides = array<i32>} : memref<1x2x4xf32, #tpu.memory_space<vmem>>, vector<1x2x4xf32>,
    return
  }
  func.func @transform_0(%arg0: i32) -> (i32, i32, i32, i32) {
    %c0_i32 = arith.constant 0 : i32
    %c0_i32_0 = arith.constant 0 : i32
    %c0_i32_1 = arith.constant 0 : i32
    %c0_i32_2 = arith.constant 0 : i32
    return %arg0, %c0_i32, %c0_i32_0, %c0_i32_1 : i32, i32, i32, i32
  }
  func.func @transform_1(%arg0: i32) -> (i32, i32) {
    %c0_i32 = arith.constant 0 : i32
    %c0_i32_0 = arith.constant 0 : i32
    %c0_i32_1 = arith.constant 0 : i32
    return %c0_i32, %c0_i32_0 : i32, i32
  }
  func.func @transform_2(%arg0: i32) -> (i32, i32) {
    %c0_i32 = arith.constant 0 : i32
    %c0_i32_0 = arith.constant 0 : i32
    %c0_i32_1 = arith.constant 0 : i32
    return %c0_i32, %c0_i32_0 : i32, i32
  }
  func.func @transform_3(%arg0: i32) -> (i32, i32) {
    %c0_i32 = arith.constant 0 : i32
    %c0_i32_0 = arith.constant 0 : i32
    %c0_i32_1 = arith.constant 0 : i32
    return %c0_i32, %c0_i32_0 : i32, i32
  }
  func.func @transform_4(%arg0: i32) -> (i32, i32, i32) {
    %c0_i32 = arith.constant 0 : i32
    %c0_i32_0 = arith.constant 0 : i32
    %c0_i32_1 = arith.constant 0 : i32
    %c0_i32_2 = arith.constant 0 : i32
    return %c0_i32, %c0_i32_0, %c0_i32_1 : i32, i32, i32
  }
  func.func @transform_5(%arg0: i32) -> (i32, i32, i32, i32) {
    %c0_i32 = arith.constant 0 : i32
    %c0_i32_0 = arith.constant 0 : i32
    %c0_i32_1 = arith.constant 0 : i32
    %c0_i32_2 = arith.constant 0 : i32
    return %arg0, %c0_i32, %c0_i32_0, %c0_i32_1 : i32, i32, i32, i32
  }
  func.func @transform_6(%arg0: i32) -> (i32, i32, i32) {
    %c0_i32 = arith.constant 0 : i32
    %c0_i32_0 = arith.constant 0 : i32
    %c0_i32_1 = arith.constant 0 : i32
    return %arg0, %c0_i32, %c0_i32_0 : i32, i32, i32
  }
}

module attributes {stable_mosaic.version = 11 : i64} {
  func.func @_conv1x1_kernel(%arg0: i32, %arg1: memref<512x8xf32, #tpu.memory_space<vmem>>, %arg2: memref<1x8xf32, #tpu.memory_space<vmem>>, %arg3: memref<1x8xf32, #tpu.memory_space<vmem>>, %arg4: memref<1x1xf32, #tpu.memory_space<smem>>, %arg5: memref<8x4xbf16, #tpu.memory_space<vmem>>, %arg6: memref<512x4xbf16, #tpu.memory_space<vmem>>, %arg7: memref<1x2x4xf32, #tpu.memory_space<vmem>>) attributes {dimension_semantics = [#tpu.dimension_semantics<parallel>], iteration_bounds = array<i64: 1>, scalar_prefetch = 0 : i64, scratch_operands = 0 : i64, tpu.core_type = #tpu.core_type<tc>, window_params = [{transform_indices = @transform_0, window_bounds = array<i64: 512, 8>}, {pipeline_mode = #tpu.pipeline_mode<synchronous>, transform_indices = @transform_1, window_bounds = array<i64: 1, 8>}, {pipeline_mode = #tpu.pipeline_mode<synchronous>, transform_indices = @transform_2, window_bounds = array<i64: 1, 8>}, {transform_indices = @transform_3, window_bounds = array<i64: 1, 1>}, {pipeline_mode = #tpu.pipeline_mode<synchronous>, transform_indices = @transform_4, window_bounds = array<i64: 8, 4>}, {transform_indices = @transform_5, window_bounds = array<i64: 512, 4>}, {transform_indices = @transform_6, window_bounds = array<i64: 1, 2, 4>}]} {
    %c0 = arith.constant 0 : index
    %c0_0 = arith.constant 0 : index
    %0 = vector.load %arg1[%c0, %c0_0] : memref<512x8xf32, #tpu.memory_space<vmem>>, vector<512x8xf32>
    %c0_1 = arith.constant 0 : index
    %c0_2 = arith.constant 0 : index
    %1 = vector.load %arg2[%c0_1, %c0_2] : memref<1x8xf32, #tpu.memory_space<vmem>>, vector<1x8xf32>
    %c0_3 = arith.constant 0 : index
    %c0_4 = arith.constant 0 : index
    %2 = vector.load %arg3[%c0_3, %c0_4] : memref<1x8xf32, #tpu.memory_space<vmem>>, vector<1x8xf32>
    %c0_5 = arith.constant 0 : index
    %c0_6 = arith.constant 0 : index
    %3 = memref.load %arg4[%c0_5, %c0_6] : memref<1x1xf32, #tpu.memory_space<smem>>
    %4 = vector.broadcast %1 : vector<1x8xf32> to vector<512x8xf32>
    %5 = arith.mulf %0, %4 : vector<512x8xf32>
    %6 = vector.broadcast %2 : vector<1x8xf32> to vector<512x8xf32>
    %7 = arith.addf %5, %6 : vector<512x8xf32>
    %cst = arith.constant 0.000000e+00 : f32
    %8 = vector.broadcast %cst : f32 to vector<512x8xf32>
    %9 = arith.cmpf oge, %7, %8 : vector<512x8xf32>
    %10 = vector.broadcast %3 : f32 to vector<512x8xf32>
    %11 = arith.mulf %10, %7 : vector<512x8xf32>
    %12 = arith.select %9, %7, %11 : vector<512x8xi1>, vector<512x8xf32>
    %13 = arith.truncf %12 : vector<512x8xf32> to vector<512x8xbf16>
    %c0_7 = arith.constant 0 : index
    %c0_8 = arith.constant 0 : index
    %14 = vector.load %arg5[%c0_7, %c0_8] : memref<8x4xbf16, #tpu.memory_space<vmem>>, vector<8x4xbf16>
    %cst_9 = arith.constant dense<0.000000e+00> : vector<512x4xf32>
    %15 = tpu.matmul %13, %14, %cst_9 {dimension_numbers = #tpu.dot_dimension_numbers<[1], [0], [0], [1], [0, 0, 1, 1], [], []>} : vector<512x8xbf16>, vector<8x4xbf16>, vector<512x4xf32> -> vector<512x4xf32>
    %16 = arith.truncf %15 : vector<512x4xf32> to vector<512x4xbf16>
    %c0_10 = arith.constant 0 : index
    %c0_11 = arith.constant 0 : index
    %17 = vector.load %arg6[%c0_10, %c0_11] : memref<512x4xbf16, #tpu.memory_space<vmem>>, vector<512x4xbf16>
    tpu.vector_store %arg6[%c0_10, %c0_11], %16 {strides = array<i32>} : memref<512x4xbf16, #tpu.memory_space<vmem>>, vector<512x4xbf16>,
    %cst_12 = arith.constant dense<0.000000e+00> : vector<4xf32>
    %18 = vector.multi_reduction <add>, %15, %cst_12 [0] : vector<512x4xf32> to vector<4xf32>
    %19 = vector.shape_cast %18 : vector<4xf32> to vector<1x4xf32>
    %20 = arith.mulf %15, %15 : vector<512x4xf32>
    %cst_13 = arith.constant dense<0.000000e+00> : vector<4xf32>
    %21 = vector.multi_reduction <add>, %20, %cst_13 [0] : vector<512x4xf32> to vector<4xf32>
    %22 = vector.shape_cast %21 : vector<4xf32> to vector<1x4xf32>
    %23 = tpu.concatenate %19, %22 in 0 : vector<1x4xf32>, vector<1x4xf32> -> vector<2x4xf32>
    %c0_14 = arith.constant 0 : index
    %c0_15 = arith.constant 0 : index
    %c0_16 = arith.constant 0 : index
    %24 = vector.load %arg7[%c0_14, %c0_15, %c0_16] : memref<1x2x4xf32, #tpu.memory_space<vmem>>, vector<1x2x4xf32>
    %25 = vector.shape_cast %24 : vector<1x2x4xf32> to vector<2x4xf32>
    %26 = vector.shape_cast %23 : vector<2x4xf32> to vector<1x2x4xf32>
    tpu.vector_store %arg7[%c0_14, %c0_15, %c0_16], %26 {strides = array<i32>} : memref<1x2x4xf32, #tpu.memory_space<vmem>>, vector<1x2x4xf32>,
    return
  }
  func.func @transform_0(%arg0: i32) -> (i32, i32) {
    %c0_i32 = arith.constant 0 : i32
    %c0_i32_0 = arith.constant 0 : i32
    return %arg0, %c0_i32 : i32, i32
  }
  func.func @transform_1(%arg0: i32) -> (i32, i32) {
    %c0_i32 = arith.constant 0 : i32
    %c0_i32_0 = arith.constant 0 : i32
    %c0_i32_1 = arith.constant 0 : i32
    return %c0_i32, %c0_i32_0 : i32, i32
  }
  func.func @transform_2(%arg0: i32) -> (i32, i32) {
    %c0_i32 = arith.constant 0 : i32
    %c0_i32_0 = arith.constant 0 : i32
    %c0_i32_1 = arith.constant 0 : i32
    return %c0_i32, %c0_i32_0 : i32, i32
  }
  func.func @transform_3(%arg0: i32) -> (i32, i32) {
    %c0_i32 = arith.constant 0 : i32
    %c0_i32_0 = arith.constant 0 : i32
    %c0_i32_1 = arith.constant 0 : i32
    return %c0_i32, %c0_i32_0 : i32, i32
  }
  func.func @transform_4(%arg0: i32) -> (i32, i32) {
    %c0_i32 = arith.constant 0 : i32
    %c0_i32_0 = arith.constant 0 : i32
    %c0_i32_1 = arith.constant 0 : i32
    return %c0_i32, %c0_i32_0 : i32, i32
  }
  func.func @transform_5(%arg0: i32) -> (i32, i32) {
    %c0_i32 = arith.constant 0 : i32
    %c0_i32_0 = arith.constant 0 : i32
    return %arg0, %c0_i32 : i32, i32
  }
  func.func @transform_6(%arg0: i32) -> (i32, i32, i32) {
    %c0_i32 = arith.constant 0 : i32
    %c0_i32_0 = arith.constant 0 : i32
    %c0_i32_1 = arith.constant 0 : i32
    return %arg0, %c0_i32, %c0_i32_0 : i32, i32, i32
  }
}

module attributes {stable_mosaic.version = 11 : i64} {
  func.func @_conv1x1_projection_kernel(%arg0: i32, %arg1: memref<128x4xbf16, #tpu.memory_space<vmem>>, %arg2: memref<1x4xf32, #tpu.memory_space<vmem>>, %arg3: memref<1x4xf32, #tpu.memory_space<vmem>>, %arg4: memref<1x1xf32, #tpu.memory_space<smem>>, %arg5: memref<4x16xbf16, #tpu.memory_space<vmem>>, %arg6: memref<128x8xf32, #tpu.memory_space<vmem>>, %arg7: memref<1x8xf32, #tpu.memory_space<vmem>>, %arg8: memref<1x8xf32, #tpu.memory_space<vmem>>, %arg9: memref<1x1xf32, #tpu.memory_space<smem>>, %arg10: memref<8x16xbf16, #tpu.memory_space<vmem>>, %arg11: memref<128x16xf32, #tpu.memory_space<vmem>>) attributes {dimension_semantics = [#tpu.dimension_semantics<parallel>], iteration_bounds = array<i64: 1>, scalar_prefetch = 0 : i64, scratch_operands = 0 : i64, tpu.core_type = #tpu.core_type<tc>, window_params = [{transform_indices = @transform_0, window_bounds = array<i64: 128, 4>}, {pipeline_mode = #tpu.pipeline_mode<synchronous>, transform_indices = @transform_1, window_bounds = array<i64: 1, 4>}, {pipeline_mode = #tpu.pipeline_mode<synchronous>, transform_indices = @transform_2, window_bounds = array<i64: 1, 4>}, {transform_indices = @transform_3, window_bounds = array<i64: 1, 1>}, {pipeline_mode = #tpu.pipeline_mode<synchronous>, transform_indices = @transform_4, window_bounds = array<i64: 4, 16>}, {transform_indices = @transform_5, window_bounds = array<i64: 128, 8>}, {pipeline_mode = #tpu.pipeline_mode<synchronous>, transform_indices = @transform_6, window_bounds = array<i64: 1, 8>}, {pipeline_mode = #tpu.pipeline_mode<synchronous>, transform_indices = @transform_7, window_bounds = array<i64: 1, 8>}, {transform_indices = @transform_8, window_bounds = array<i64: 1, 1>}, {pipeline_mode = #tpu.pipeline_mode<synchronous>, transform_indices = @transform_9, window_bounds = array<i64: 8, 16>}, {transform_indices = @transform_10, window_bounds = array<i64: 128, 16>}]} {
    %c0 = arith.constant 0 : index
    %c0_0 = arith.constant 0 : index
    %0 = vector.load %arg1[%c0, %c0_0] : memref<128x4xbf16, #tpu.memory_space<vmem>>, vector<128x4xbf16>
    %1 = arith.extf %0 : vector<128x4xbf16> to vector<128x4xf32>
    %c0_1 = arith.constant 0 : index
    %c0_2 = arith.constant 0 : index
    %2 = vector.load %arg2[%c0_1, %c0_2] : memref<1x4xf32, #tpu.memory_space<vmem>>, vector<1x4xf32>
    %c0_3 = arith.constant 0 : index
    %c0_4 = arith.constant 0 : index
    %3 = vector.load %arg3[%c0_3, %c0_4] : memref<1x4xf32, #tpu.memory_space<vmem>>, vector<1x4xf32>
    %c0_5 = arith.constant 0 : index
    %c0_6 = arith.constant 0 : index
    %4 = memref.load %arg4[%c0_5, %c0_6] : memref<1x1xf32, #tpu.memory_space<smem>>
    %5 = vector.broadcast %2 : vector<1x4xf32> to vector<128x4xf32>
    %6 = arith.mulf %1, %5 : vector<128x4xf32>
    %7 = vector.broadcast %3 : vector<1x4xf32> to vector<128x4xf32>
    %8 = arith.addf %6, %7 : vector<128x4xf32>
    %cst = arith.constant 0.000000e+00 : f32
    %9 = vector.broadcast %cst : f32 to vector<128x4xf32>
    %10 = arith.cmpf oge, %8, %9 : vector<128x4xf32>
    %11 = vector.broadcast %4 : f32 to vector<128x4xf32>
    %12 = arith.mulf %11, %8 : vector<128x4xf32>
    %13 = arith.select %10, %8, %12 : vector<128x4xi1>, vector<128x4xf32>
    %14 = arith.truncf %13 : vector<128x4xf32> to vector<128x4xbf16>
    %c0_7 = arith.constant 0 : index
    %c0_8 = arith.constant 0 : index
    %15 = vector.load %arg5[%c0_7, %c0_8] : memref<4x16xbf16, #tpu.memory_space<vmem>>, vector<4x16xbf16>
    %cst_9 = arith.constant dense<0.000000e+00> : vector<128x16xf32>
    %16 = tpu.matmul %14, %15, %cst_9 {dimension_numbers = #tpu.dot_dimension_numbers<[1], [0], [0], [1], [0, 0, 1, 1], [], []>} : vector<128x4xbf16>, vector<4x16xbf16>, vector<128x16xf32> -> vector<128x16xf32>
    %c0_10 = arith.constant 0 : index
    %c0_11 = arith.constant 0 : index
    %17 = vector.load %arg6[%c0_10, %c0_11] : memref<128x8xf32, #tpu.memory_space<vmem>>, vector<128x8xf32>
    %c0_12 = arith.constant 0 : index
    %c0_13 = arith.constant 0 : index
    %18 = vector.load %arg7[%c0_12, %c0_13] : memref<1x8xf32, #tpu.memory_space<vmem>>, vector<1x8xf32>
    %c0_14 = arith.constant 0 : index
    %c0_15 = arith.constant 0 : index
    %19 = vector.load %arg8[%c0_14, %c0_15] : memref<1x8xf32, #tpu.memory_space<vmem>>, vector<1x8xf32>
    %c0_16 = arith.constant 0 : index
    %c0_17 = arith.constant 0 : index
    %20 = memref.load %arg9[%c0_16, %c0_17] : memref<1x1xf32, #tpu.memory_space<smem>>
    %21 = vector.broadcast %18 : vector<1x8xf32> to vector<128x8xf32>
    %22 = arith.mulf %17, %21 : vector<128x8xf32>
    %23 = vector.broadcast %19 : vector<1x8xf32> to vector<128x8xf32>
    %24 = arith.addf %22, %23 : vector<128x8xf32>
    %cst_18 = arith.constant 0.000000e+00 : f32
    %25 = vector.broadcast %cst_18 : f32 to vector<128x8xf32>
    %26 = arith.cmpf oge, %24, %25 : vector<128x8xf32>
    %27 = vector.broadcast %20 : f32 to vector<128x8xf32>
    %28 = arith.mulf %27, %24 : vector<128x8xf32>
    %29 = arith.select %26, %24, %28 : vector<128x8xi1>, vector<128x8xf32>
    %30 = arith.truncf %29 : vector<128x8xf32> to vector<128x8xbf16>
    %c0_19 = arith.constant 0 : index
    %c0_20 = arith.constant 0 : index
    %31 = vector.load %arg10[%c0_19, %c0_20] : memref<8x16xbf16, #tpu.memory_space<vmem>>, vector<8x16xbf16>
    %cst_21 = arith.constant dense<0.000000e+00> : vector<128x16xf32>
    %32 = tpu.matmul %30, %31, %cst_21 {dimension_numbers = #tpu.dot_dimension_numbers<[1], [0], [0], [1], [0, 0, 1, 1], [], []>} : vector<128x8xbf16>, vector<8x16xbf16>, vector<128x16xf32> -> vector<128x16xf32>
    %33 = arith.addf %16, %32 : vector<128x16xf32>
    %c0_22 = arith.constant 0 : index
    %c0_23 = arith.constant 0 : index
    %34 = vector.load %arg11[%c0_22, %c0_23] : memref<128x16xf32, #tpu.memory_space<vmem>>, vector<128x16xf32>
    tpu.vector_store %arg11[%c0_22, %c0_23], %33 {strides = array<i32>} : memref<128x16xf32, #tpu.memory_space<vmem>>, vector<128x16xf32>,
    return
  }
  func.func @transform_0(%arg0: i32) -> (i32, i32) {
    %c0_i32 = arith.constant 0 : i32
    %c0_i32_0 = arith.constant 0 : i32
    return %arg0, %c0_i32 : i32, i32
  }
  func.func @transform_1(%arg0: i32) -> (i32, i32) {
    %c0_i32 = arith.constant 0 : i32
    %c0_i32_0 = arith.constant 0 : i32
    %c0_i32_1 = arith.constant 0 : i32
    return %c0_i32, %c0_i32_0 : i32, i32
  }
  func.func @transform_2(%arg0: i32) -> (i32, i32) {
    %c0_i32 = arith.constant 0 : i32
    %c0_i32_0 = arith.constant 0 : i32
    %c0_i32_1 = arith.constant 0 : i32
    return %c0_i32, %c0_i32_0 : i32, i32
  }
  func.func @transform_3(%arg0: i32) -> (i32, i32) {
    %c0_i32 = arith.constant 0 : i32
    %c0_i32_0 = arith.constant 0 : i32
    %c0_i32_1 = arith.constant 0 : i32
    return %c0_i32, %c0_i32_0 : i32, i32
  }
  func.func @transform_4(%arg0: i32) -> (i32, i32) {
    %c0_i32 = arith.constant 0 : i32
    %c0_i32_0 = arith.constant 0 : i32
    %c0_i32_1 = arith.constant 0 : i32
    return %c0_i32, %c0_i32_0 : i32, i32
  }
  func.func @transform_5(%arg0: i32) -> (i32, i32) {
    %c0_i32 = arith.constant 0 : i32
    %c0_i32_0 = arith.constant 0 : i32
    return %arg0, %c0_i32 : i32, i32
  }
  func.func @transform_6(%arg0: i32) -> (i32, i32) {
    %c0_i32 = arith.constant 0 : i32
    %c0_i32_0 = arith.constant 0 : i32
    %c0_i32_1 = arith.constant 0 : i32
    return %c0_i32, %c0_i32_0 : i32, i32
  }
  func.func @transform_7(%arg0: i32) -> (i32, i32) {
    %c0_i32 = arith.constant 0 : i32
    %c0_i32_0 = arith.constant 0 : i32
    %c0_i32_1 = arith.constant 0 : i32
    return %c0_i32, %c0_i32_0 : i32, i32
  }
  func.func @transform_8(%arg0: i32) -> (i32, i32) {
    %c0_i32 = arith.constant 0 : i32
    %c0_i32_0 = arith.constant 0 : i32
    %c0_i32_1 = arith.constant 0 : i32
    return %c0_i32, %c0_i32_0 : i32, i32
  }
  func.func @transform_9(%arg0: i32) -> (i32, i32) {
    %c0_i32 = arith.constant 0 : i32
    %c0_i32_0 = arith.constant 0 : i32
    %c0_i32_1 = arith.constant 0 : i32
    return %c0_i32, %c0_i32_0 : i32, i32
  }
  func.func @transform_10(%arg0: i32) -> (i32, i32) {
    %c0_i32 = arith.constant 0 : i32
    %c0_i32_0 = arith.constant 0 : i32
    return %arg0, %c0_i32 : i32, i32
  }
}

</mosaic_0001>

<llo_original>
// kernel: preact_bottleneck.5
$region0: #{preact_bottleneck.5}
  #allocation0 [shape = 'u32[]', space=smem, size = 0x4, offset = 0x4, fixed_abs, tag = 'smem constant byte address 0x4 - core index']
  #allocation1 [shape = 'u32[144,128]{1,0:T(1,128)}', space=vmem, size = 0x12000, scoped, tag = 'internal scratch']
  #allocation2 [shape = 'f32[1,1]{1,0:T(1,128)S(6)}', space=smem, size = 0x200, scoped, tag = 'scoped memory for preact_bottleneck.5']
  #allocation3 [shape = 'f32[1,1]{1,0:T(1,128)S(6)}', space=smem, size = 0x200, scoped, tag = 'scoped memory for preact_bottleneck.5']
  %s0 = inlined_call_operand.vmem [shape: bf16[128,4], index: 0, kind: input, shape index: {}]
  %s1 = inlined_call_operand.vmem [shape: f32[1,4], index: 1, kind: input, shape index: {}]
  %s2 = inlined_call_operand.vmem [shape: f32[1,4], index: 2, kind: input, shape index: {}]
  %s3 = inlined_call_operand.<no memory space> [shape: f32[1,1], index: 3, kind: input, shape index: {}]
  %s4 = inlined_call_operand.vmem [shape: bf16[4,16], index: 4, kind: input, shape index: {}]
  %s5 = inlined_call_operand.vmem [shape: f32[128,8], index: 5, kind: input, shape index: {}]
  %s6 = inlined_call_operand.vmem [shape: f32[1,8], index: 6, kind: input, shape index: {}]
  %s7 = inlined_call_operand.vmem [shape: f32[1,8], index: 7, kind: input, shape index: {}]
  %s8 = inlined_call_operand.<no memory space> [shape: f32[1,1], index: 8, kind: input, shape index: {}]
  %s9 = inlined_call_operand.vmem [shape: bf16[8,16], index: 9, kind: input, shape index: {}]
  %s10 = inlined_call_operand.hbm [shape: f32[128,16], index: 10, kind: output, shape index: {}]
  %s11 = sld [smem:[#allocation0]]
  $region50: #{preact_bottleneck.5} parent=0
    _
  %s13 = ssub.s32 1, %s11
  %s14 = scalar_select 0, %s13, %s11
  %15 = sst [smem:[#allocation2]] %s3
  %16 = sst [smem:[#allocation3]] %s8
  $region1: #{preact_bottleneck.5} parent=0
    #allocation4 [shape = 'u8[65536]{0}', space=vmem, size = 0x10000, scoped, tag = 'output window, operand 0, single buffered']
    #allocation5 [shape = 's32[1]{0}', space=sflag, size = 0x4, scoped, tag = 'scoped memory for preact_bottleneck.5']
    %17 = vsyncpa [#allocation5], 0
    // Predicated region
    $region2: #{preact_bottleneck.5} parent=1 // pred_check
      _
    $region3: #{preact_bottleneck.5} parent=1 // pred_check_branch
      %19 = sbr.rel (0) target = $region5
    $region4: #{preact_bottleneck.5} parent=1 // pred_region
      _
    $region5: #{preact_bottleneck.5} parent=1 // pred_fallthru
      _
    // Predicated region
    $region6: #{preact_bottleneck.5} parent=1 // pred_check
      _
    $region7: #{preact_bottleneck.5} parent=1 // pred_check_branch
      %21 = sbr.rel (0) target = $region9
    $region8: #{preact_bottleneck.5} parent=1 // pred_region
      _
    $region9: #{preact_bottleneck.5} parent=1 // pred_fallthru
      _
    // Predicated region
    $region10: #{preact_bottleneck.5} parent=1 // pred_check
      _
    $region11: #{preact_bottleneck.5} parent=1 // pred_check_branch
      %23 = sbr.rel (0) target = $region13
    $region12: #{preact_bottleneck.5} parent=1 // pred_region
      _
    $region13: #{preact_bottleneck.5} parent=1 // pred_fallthru
      _
    // Predicated region
    $region14: #{preact_bottleneck.5} parent=1 // pred_check
      _
    $region15: #{preact_bottleneck.5} parent=1 // pred_check_branch
      %25 = sbr.rel (0) target = $region17
    $region16: #{preact_bottleneck.5} parent=1 // pred_region
      _
    $region17: #{preact_bottleneck.5} parent=1 // pred_fallthru
      _
    // Predicated region
    $region18: #{preact_bottleneck.5} parent=1 // pred_check
      _
    $region19: #{preact_bottleneck.5} parent=1 // pred_check_branch
      %27 = sbr.rel (0) target = $region21
    $region20: #{preact_bottleneck.5} parent=1 // pred_region
      _
    $region21: #{preact_bottleneck.5} parent=1 // pred_fallthru
      _
    // Predicated region
    $region22: #{preact_bottleneck.5} parent=1 // pred_check
      _
    $region23: #{preact_bottleneck.5} parent=1 // pred_check_branch
      %29 = sbr.rel (0) target = $region25
    $region24: #{preact_bottleneck.5} parent=1 // pred_region
      _
    $region25: #{preact_bottleneck.5} parent=1 // pred_fallthru
      _
    // Predicated region
    $region26: #{preact_bottleneck.5} parent=1 // pred_check
      _
    $region27: #{preact_bottleneck.5} parent=1 // pred_check_branch
      %31 = sbr.rel (0) target = $region29
    $region28: #{preact_bottleneck.5} parent=1 // pred_region
      _
    $region29: #{preact_bottleneck.5} parent=1 // pred_fallthru
      _
    // Predicated region
    $region30: #{preact_bottleneck.5} parent=1 // pred_check
      _
    $region31: #{preact_bottleneck.5} parent=1 // pred_check_branch
      %33 = sbr.rel (0) target = $region33
    $region32: #{preact_bottleneck.5} parent=1 // pred_region
      _
    $region33: #{preact_bottleneck.5} parent=1 // pred_fallthru
      _
    // Predicated region
    $region34: #{preact_bottleneck.5} parent=1 // pred_check
      _
    $region35: #{preact_bottleneck.5} parent=1 // pred_check_branch
      %35 = sbr.rel (0) target = $region37
    $region36: #{preact_bottleneck.5} parent=1 // pred_region
      _
    $region37: #{preact_bottleneck.5} parent=1 // pred_fallthru
      _
    // Predicated region
    $region38: #{preact_bottleneck.5} parent=1 // pred_check
      _
    $region39: #{preact_bottleneck.5} parent=1 // pred_check_branch
      %37 = sbr.rel (0) target = $region41
    $region40: #{preact_bottleneck.5} parent=1 // pred_region
      _
    $region41: #{preact_bottleneck.5} parent=1 // pred_fallthru
      _
    %v39 = vld [vmem:[%s0] sm:$0xf]
    %v40 = vld [vmem:[%s0 + $0x4] sm:$0xf]
    %v41 = vld [vmem:[%s0 + $0x8] sm:$0xf]
    %v42 = vld [vmem:[%s0 + $0xc] sm:$0xf]
    %v43 = vld [vmem:[%s0 + $0x10] sm:$0xf]
    %v44 = vld [vmem:[%s0 + $0x14] sm:$0xf]
    %v45 = vld [vmem:[%s0 + $0x18] sm:$0xf]
    %v46 = vld [vmem:[%s0 + $0x1c] sm:$0xf]
    %v47 = vld [vmem:[%s0 + $0x20] sm:$0xf]
    %v48 = vld [vmem:[%s0 + $0x24] sm:$0xf]
    %v49 = vld [vmem:[%s0 + $0x28] sm:$0xf]
    %v50 = vld [vmem:[%s0 + $0x2c] sm:$0xf]
    %v51 = vld [vmem:[%s0 + $0x30] sm:$0xf]
    %v52 = vld [vmem:[%s0 + $0x34] sm:$0xf]
    %v53 = vld [vmem:[%s0 + $0x38] sm:$0xf]
    %v54 = vld [vmem:[%s0 + $0x3c] sm:$0xf]
    %v55 = vunpack.c.l.bf16 %v39
    %v56 = vunpack.c.l.bf16 %v40
    %v57 = vunpack.c.l.bf16 %v41
    %v58 = vunpack.c.l.bf16 %v42
    %v59 = vunpack.c.l.bf16 %v43
    %v60 = vunpack.c.l.bf16 %v44
    %v61 = vunpack.c.l.bf16 %v45
    %v62 = vunpack.c.l.bf16 %v46
    %v63 = vunpack.c.l.bf16 %v47
    %v64 = vunpack.c.l.bf16 %v48
    %v65 = vunpack.c.l.bf16 %v49
    %v66 = vunpack.c.l.bf16 %v50
    %v67 = vunpack.c.l.bf16 %v51
    %v68 = vunpack.c.l.bf16 %v52
    %v69 = vunpack.c.l.bf16 %v53
    %v70 = vunpack.c.l.bf16 %v54
    %v71 = vld [vmem:[%s1] sm:$0x1]
    %v72 = vld [vmem:[%s2] sm:$0x1]
    %s73 = sld [smem:[#allocation2]]
    %v75 = vlaneseq
    %v76 = vshrl.u32 %v75, 7
    %v77 = vsub.s32 0, %v76
    %v78 = vrot.slane %v71, %v77
    %v80 = vmul.f32 %v55, %v78
    %v81 = vmul.f32 %v56, %v78
    %v82 = vmul.f32 %v57, %v78
    %v83 = vmul.f32 %v58, %v78
    %v84 = vmul.f32 %v59, %v78
    %v85 = vmul.f32 %v60, %v78
    %v86 = vmul.f32 %v61, %v78
    %v87 = vmul.f32 %v62, %v78
    %v88 = vmul.f32 %v63, %v78
    %v89 = vmul.f32 %v64, %v78
    %v90 = vmul.f32 %v65, %v78
    %v91 = vmul.f32 %v66, %v78
    %v92 = vmul.f32 %v67, %v78
    %v93 = vmul.f32 %v68, %v78
    %v94 = vmul.f32 %v69, %v78
    %v95 = vmul.f32 %v70, %v78
    %v97 = vlaneseq
    %v98 = vshrl.u32 %v97, 7
    %v99 = vsub.s32 0, %v98
    %v100 = vrot.slane %v72, %v99
    %v102 = vadd.f32 %v80, %v100
    %v103 = vadd.f32 %v81, %v100
    %v104 = vadd.f32 %v82, %v100
    %v105 = vadd.f32 %v83, %v100
    %v106 = vadd.f32 %v84, %v100
    %v107 = vadd.f32 %v85, %v100
    %v108 = vadd.f32 %v86, %v100
    %v109 = vadd.f32 %v87, %v100
    %v110 = vadd.f32 %v88, %v100
    %v111 = vadd.f32 %v89, %v100
    %v112 = vadd.f32 %v90, %v100
    %v113 = vadd.f32 %v91, %v100
    %v114 = vadd.f32 %v92, %v100
    %v115 = vadd.f32 %v93, %v100
    %v116 = vadd.f32 %v94, %v100
    %v117 = vadd.f32 %v95, %v100
    %vm118 = vcmp.ge.f32.partialorder %v102, 0.0
    %vm119 = vcmp.ge.f32.partialorder %v103, 0.0
    %vm120 = vcmp.ge.f32.partialorder %v104, 0.0
    %vm121 = vcmp.ge.f32.partialorder %v105, 0.0
    %vm122 = vcmp.ge.f32.partialorder %v106, 0.0
    %vm123 = vcmp.ge.f32.partialorder %v107, 0.0
    %vm124 = vcmp.ge.f32.partialorder %v108, 0.0
    %vm125 = vcmp.ge.f32.partialorder %v109, 0.0
    %vm126 = vcmp.ge.f32.partialorder %v110, 0.0
    %vm127 = vcmp.ge.f32.partialorder %v111, 0.0
    %vm128 = vcmp.ge.f32.partialorder %v112, 0.0
    %vm129 = vcmp.ge.f32.partialorder %v113, 0.0
    %vm130 = vcmp.ge.f32.partialorder %v114, 0.0
    %vm131 = vcmp.ge.f32.partialorder %v115, 0.0
    %vm132 = vcmp.ge.f32.partialorder %v116, 0.0
    %vm133 = vcmp.ge.f32.partialorder %v117, 0.0
    %v134 = vstv %s73
    %v135 = vmul.f32 %v134, %v102
    %v136 = vmul.f32 %v134, %v103
    %v137 = vmul.f32 %v134, %v104
    %v138 = vmul.f32 %v134, %v105
    %v139 = vmul.f32 %v134, %v106
    %v140 = vmul.f32 %v134, %v107
    %v141 = vmul.f32 %v134, %v108
    %v142 = vmul.f32 %v134, %v109
    %v143 = vmul.f32 %v134, %v110
    %v144 = vmul.f32 %v134, %v111
    %v145 = vmul.f32 %v134, %v112
    %v146 = vmul.f32 %v134, %v113
    %v147 = vmul.f32 %v134, %v114
    %v148 = vmul.f32 %v134, %v115
    %v149 = vmul.f32 %v134, %v116
    %v150 = vmul.f32 %v134, %v117
    %v151 = vsel %vm118, %v102, %v135
    %v152 = vsel %vm119, %v103, %v136
    %v153 = vsel %vm120, %v104, %v137
    %v154 = vsel %vm121, %v105, %v138
    %v155 = vsel %vm122, %v106, %v139
    %v156 = vsel %vm123, %v107, %v140
    %v157 = vsel %vm124, %v108, %v141
    %v158 = vsel %vm125, %v109, %v142
    %v159 = vsel %vm126, %v110, %v143
    %v160 = vsel %vm127, %v111, %v144
    %v161 = vsel %vm128, %v112, %v145
    %v162 = vsel %vm129, %v113, %v146
    %v163 = vsel %vm130, %v114, %v147
    %v164 = vsel %vm131, %v115, %v148
    %v165 = vsel %vm132, %v116, %v149
    %v166 = vsel %vm133, %v117, %v150
    %v167 = vpack.c.bf16 %v152, %v151
    %v168 = vpack.c.bf16 %v154, %v153
    %v169 = vpack.c.bf16 %v156, %v155
    %v170 = vpack.c.bf16 %v158, %v157
    %v171 = vpack.c.bf16 %v160, %v159
    %v172 = vpack.c.bf16 %v162, %v161
    %v173 = vpack.c.bf16 %v164, %v163
    %v174 = vpack.c.bf16 %v166, %v165
    %v175 = vld [vmem:[%s4] sm:$0x3]
    %v176 = vld [vmem:[%s5] sm:$0xff]
    %v177 = vld [vmem:[%s5 + $0x8] sm:$0xff]
    %v178 = vld [vmem:[%s5 + $0x10] sm:$0xff]
    %v179 = vld [vmem:[%s5 + $0x18] sm:$0xff]
    %v180 = vld [vmem:[%s5 + $0x20] sm:$0xff]
    %v181 = vld [vmem:[%s5 + $0x28] sm:$0xff]
    %v182 = vld [vmem:[%s5 + $0x30] sm:$0xff]
    %v183 = vld [vmem:[%s5 + $0x38] sm:$0xff]
    %v184 = vld [vmem:[%s5 + $0x40] sm:$0xff]
    %v185 = vld [vmem:[%s5 + $0x48] sm:$0xff]
    %v186 = vld [vmem:[%s5 + $0x50] sm:$0xff]
    %v187 = vld [vmem:[%s5 + $0x58] sm:$0xff]
    %v188 = vld [vmem:[%s5 + $0x60] sm:$0xff]
    %v189 = vld [vmem:[%s5 + $0x68] sm:$0xff]
    %v190 = vld [vmem:[%s5 + $0x70] sm:$0xff]
    %v191 = vld [vmem:[%s5 + $0x78] sm:$0xff]
    %v192 = vld [vmem:[%s6] sm:$0x1]
    %v193 = vld [vmem:[%s7] sm:$0x1]
    %s194 = sld [smem:[#allocation3]]
    %v196 = vlaneseq
    %v197 = vshrl.u32 %v196, 7
    %v198 = vsub.s32 0, %v197
    %v199 = vrot.slane %v192, %v198
    %v201 = vmul.f32 %v176, %v199
    %v202 = vmul.f32 %v177, %v199
    %v203 = vmul.f32 %v178, %v199
    %v204 = vmul.f32 %v179, %v199
    %v205 = vmul.f32 %v180, %v199
    %v206 = vmul.f32 %v181, %v199
    %v207 = vmul.f32 %v182, %v199
    %v208 = vmul.f32 %v183, %v199
    %v209 = vmul.f32 %v184, %v199
    %v210 = vmul.f32 %v185, %v199
    %v211 = vmul.f32 %v186, %v199
    %v212 = vmul.f32 %v187, %v199
    %v213 = vmul.f32 %v188, %v199
    %v214 = vmul.f32 %v189, %v199
    %v215 = vmul.f32 %v190, %v199
    %v216 = vmul.f32 %v191, %v199
    %v218 = vlaneseq
    %v219 = vshrl.u32 %v218, 7
    %v220 = vsub.s32 0, %v219
    %v221 = vrot.slane %v193, %v220
    %v223 = vadd.f32 %v201, %v221
    %v224 = vadd.f32 %v202, %v221
    %v225 = vadd.f32 %v203, %v221
    %v226 = vadd.f32 %v204, %v221
    %v227 = vadd.f32 %v205, %v221
    %v228 = vadd.f32 %v206, %v221
    %v229 = vadd.f32 %v207, %v221
    %v230 = vadd.f32 %v208, %v221
    %v231 = vadd.f32 %v209, %v221
    %v232 = vadd.f32 %v210, %v221
    %v233 = vadd.f32 %v211, %v221
    %v234 = vadd.f32 %v212, %v221
    %v235 = vadd.f32 %v213, %v221
    %v236 = vadd.f32 %v214, %v221
    %v237 = vadd.f32 %v215, %v221
    %v238 = vadd.f32 %v216, %v221
    %vm239 = vcmp.ge.f32.partialorder %v223, 0.0
    %vm240 = vcmp.ge.f32.partialorder %v224, 0.0
    %vm241 = vcmp.ge.f32.partialorder %v225, 0.0
    %vm242 = vcmp.ge.f32.partialorder %v226, 0.0
    %vm243 = vcmp.ge.f32.partialorder %v227, 0.0
    %vm244 = vcmp.ge.f32.partialorder %v228, 0.0
    %vm245 = vcmp.ge.f32.partialorder %v229, 0.0
    %vm246 = vcmp.ge.f32.partialorder %v230, 0.0
    %vm247 = vcmp.ge.f32.partialorder %v231, 0.0
    %vm248 = vcmp.ge.f32.partialorder %v232, 0.0
    %vm249 = vcmp.ge.f32.partialorder %v233, 0.0
    %vm250 = vcmp.ge.f32.partialorder %v234, 0.0
    %vm251 = vcmp.ge.f32.partialorder %v235, 0.0
    %vm252 = vcmp.ge.f32.partialorder %v236, 0.0
    %vm253 = vcmp.ge.f32.partialorder %v237, 0.0
    %vm254 = vcmp.ge.f32.partialorder %v238, 0.0
    %v255 = vstv %s194
    %v256 = vmul.f32 %v255, %v223
    %v257 = vmul.f32 %v255, %v224
    %v258 = vmul.f32 %v255, %v225
    %v259 = vmul.f32 %v255, %v226
    %v260 = vmul.f32 %v255, %v227
    %v261 = vmul.f32 %v255, %v228
    %v262 = vmul.f32 %v255, %v229
    %v263 = vmul.f32 %v255, %v230
    %v264 = vmul.f32 %v255, %v231
    %v265 = vmul.f32 %v255, %v232
    %v266 = vmul.f32 %v255, %v233
    %v267 = vmul.f32 %v255, %v234
    %v268 = vmul.f32 %v255, %v235
    %v269 = vmul.f32 %v255, %v236
    %v270 = vmul.f32 %v255, %v237
    %v271 = vmul.f32 %v255, %v238
    %v272 = vsel %vm239, %v223, %v256
    %v273 = vsel %vm240, %v224, %v257
    %v274 = vsel %vm241, %v225, %v258
    %v275 = vsel %vm242, %v226, %v259
    %v276 = vsel %vm243, %v227, %v260
    %v277 = vsel %vm244, %v228, %v261
    %v278 = vsel %vm245, %v229, %v262
    %v279 = vsel %vm246, %v230, %v263
    %v280 = vsel %vm247, %v231, %v264
    %v281 = vsel %vm248, %v232, %v265
    %v282 = vsel %vm249, %v233, %v266
    %v283 = vsel %vm250, %v234, %v267
    %v284 = vsel %vm251, %v235, %v268
    %v285 = vsel %vm252, %v236, %v269
    %v286 = vsel %vm253, %v237, %v270
    %v287 = vsel %vm254, %v238, %v271
    %v288 = vpack.c.bf16 %v273, %v272
    %v289 = vpack.c.bf16 %v275, %v274
    %v290 = vpack.c.bf16 %v277, %v276
    %v291 = vpack.c.bf16 %v279, %v278
    %v292 = vpack.c.bf16 %v281, %v280
    %v293 = vpack.c.bf16 %v283, %v282
    %v294 = vpack.c.bf16 %v285, %v284
    %v295 = vpack.c.bf16 %v287, %v286
    %v296 = vld [vmem:[%s9] sm:$0xf]
    %vm297 = vcmask 64512
    %v299 = vsel %vm297, %v288, 0
    %v302 = vsel %vm297, %v289, 0
    %v305 = vsel %vm297, %v290, 0
    %v308 = vsel %vm297, %v291, 0
    %v311 = vsel %vm297, %v292, 0
    %v314 = vsel %vm297, %v293, 0
    %v317 = vsel %vm297, %v294, 0
    %v320 = vsel %vm297, %v295, 0
    %vm322 = vcmask 1043456
    %v324 = vsel %vm322, %v296, 0
    %326 = vmatprep.subr.bf16.mxu0 0
    %327 = vmatpush1.bf16.msra.mxu0 0
    %328 = vmatprep.subr.bf16.mxu0 0
    %329 = vmatpush1.bf16.msra.mxu0 0
    %330 = vmatprep.subr.bf16.mxu0 0
    %331 = vmatpush1.bf16.msra.mxu0 0
    %332 = vmatprep.subr.bf16.mxu0 0
    %333 = vmatpush1.bf16.msra.mxu0 0
    %334 = vmatprep.subr.bf16.mxu0 0
    %335 = vmatpush1.bf16.msra.mxu0 0
    %336 = vmatprep.subr.bf16.mxu0 0
    %337 = vmatpush1.bf16.msra.mxu0 0
    %338 = vmatprep.subr.bf16.mxu0 0
    %339 = vmatpush1.bf16.msra.mxu0 0
    %340 = vmatprep.subr.bf16.mxu0 0
    %341 = vmatpush1.bf16.msra.mxu0 %v324
    %342 = vmatprep.subr.bf16.mxu0 0
    %343 = vmatpush2.bf16.msra.mxu0 0
    %344 = vmatprep.subr.bf16.mxu0 0
    %345 = vmatpush2.bf16.msra.mxu0 0
    %346 = vmatprep.subr.bf16.mxu0 0
    %347 = vmatpush2.bf16.msra.mxu0 0
    %348 = vmatprep.subr.bf16.mxu0 0
    %349 = vmatpush2.bf16.msra.mxu0 0
    %350 = vmatprep.subr.bf16.mxu0 0
    %351 = vmatpush2.bf16.msra.mxu0 0
    %352 = vmatprep.subr.bf16.mxu0 0
    %353 = vmatpush2.bf16.msra.mxu0 0
    %354 = vmatprep.subr.bf16.mxu0 0
    %355 = vmatpush2.bf16.msra.mxu0 0
    %356 = vmatprep.subr.bf16.mxu0 0
    %357 = vmatpush2.bf16.msra.mxu0 0
    %358 = vmatprep.mubr.bf16.mxu0 0
    %359 = vmatmul.mubr.bf16.gmra.mxu0 %v299
    %v360 = vpop.f32.mrf.mxu0
    %v361 = vadd.f32 0.0, %v360
    %v362 = vpop.f32.mrf.mxu0
    %v363 = vpop.f32.mrf.mxu0
    %v364 = vadd.f32 0.0, %v363
    %v365 = vpop.f32.mrf.mxu0
    %366 = vmatprep.mubr.bf16.mxu0 0
    %367 = vmatmul.mubr.bf16.gmra.mxu0 %v302
    %v368 = vpop.f32.mrf.mxu0
    %v369 = vadd.f32 0.0, %v368
    %v370 = vpop.f32.mrf.mxu0
    %v371 = vpop.f32.mrf.mxu0
    %v372 = vadd.f32 0.0, %v371
    %v373 = vpop.f32.mrf.mxu0
    %374 = vmatprep.mubr.bf16.mxu0 0
    %375 = vmatmul.mubr.bf16.gmra.mxu0 %v305
    %v376 = vpop.f32.mrf.mxu0
    %v377 = vadd.f32 0.0, %v376
    %v378 = vpop.f32.mrf.mxu0
    %v379 = vpop.f32.mrf.mxu0
    %v380 = vadd.f32 0.0, %v379
    %v381 = vpop.f32.mrf.mxu0
    %382 = vmatprep.mubr.bf16.mxu0 0
    %383 = vmatmul.mubr.bf16.gmra.mxu0 %v308
    %v384 = vpop.f32.mrf.mxu0
    %v385 = vadd.f32 0.0, %v384
    %v386 = vpop.f32.mrf.mxu0
    %v387 = vpop.f32.mrf.mxu0
    %v388 = vadd.f32 0.0, %v387
    %v389 = vpop.f32.mrf.mxu0
    %390 = vmatprep.mubr.bf16.mxu0 0
    %391 = vmatmul.mubr.bf16.gmra.mxu0 %v311
    %v392 = vpop.f32.mrf.mxu0
    %v393 = vadd.f32 0.0, %v392
    %v394 = vpop.f32.mrf.mxu0
    %v395 = vpop.f32.mrf.mxu0
    %v396 = vadd.f32 0.0, %v395
    %v397 = vpop.f32.mrf.mxu0
    %398 = vmatprep.mubr.bf16.mxu0 0
    %399 = vmatmul.mubr.bf16.gmra.mxu0 %v314
    %v400 = vpop.f32.mrf.mxu0
    %v401 = vadd.f32 0.0, %v400
    %v402 = vpop.f32.mrf.mxu0
    %v403 = vpop.f32.mrf.mxu0
    %v404 = vadd.f32 0.0, %v403
    %v405 = vpop.f32.mrf.mxu0
    %406 = vmatprep.mubr.bf16.mxu0 0
    %407 = vmatmul.mubr.bf16.gmra.mxu0 %v317
    %v408 = vpop.f32.mrf.mxu0
    %v409 = vadd.f32 0.0, %v408
    %v410 = vpop.f32.mrf.mxu0
    %v411 = vpop.f32.mrf.mxu0
    %v412 = vadd.f32 0.0, %v411
    %v413 = vpop.f32.mrf.mxu0
    %414 = vmatprep.mubr.bf16.mxu0 0
    %415 = vmatmul.mubr.bf16.gmra.mxu0 %v320
    %v416 = vpop.f32.mrf.mxu0
    %v417 = vadd.f32 0.0, %v416
    %v418 = vpop.f32.mrf.mxu0
    %v419 = vpop.f32.mrf.mxu0
    %v420 = vadd.f32 0.0, %v419
    %v421 = vpop.f32.mrf.mxu0
    %422 = vdwg.mxu0
    %vm423 = vcmask 31744
    %v425 = vsel %vm423, %v167, 0
    %v428 = vsel %vm423, %v168, 0
    %v431 = vsel %vm423, %v169, 0
    %v434 = vsel %vm423, %v170, 0
    %v437 = vsel %vm423, %v171, 0
    %v440 = vsel %vm423, %v172, 0
    %v443 = vsel %vm423, %v173, 0
    %v446 = vsel %vm423, %v174, 0
    %vm448 = vcmask 1041408
    %v450 = vsel %vm448, %v175, 0
    %452 = vmatprep.subr.bf16.mxu0 0
    %453 = vmatpush1.bf16.msra.mxu0 0
    %454 = vmatprep.subr.bf16.mxu0 0
    %455 = vmatpush1.bf16.msra.mxu0 0
    %456 = vmatprep.subr.bf16.mxu0 0
    %457 = vmatpush1.bf16.msra.mxu0 0
    %458 = vmatprep.subr.bf16.mxu0 0
    %459 = vmatpush1.bf16.msra.mxu0 0
    %460 = vmatprep.subr.bf16.mxu0 0
    %461 = vmatpush1.bf16.msra.mxu0 0
    %462 = vmatprep.subr.bf16.mxu0 0
    %463 = vmatpush1.bf16.msra.mxu0 0
    %464 = vmatprep.subr.bf16.mxu0 0
    %465 = vmatpush1.bf16.msra.mxu0 0
    %466 = vmatprep.subr.bf16.mxu0 0
    %467 = vmatpush1.bf16.msra.mxu0 %v450
    %468 = vmatprep.subr.bf16.mxu0 0
    %469 = vmatpush2.bf16.msra.mxu0 0
    %470 = vmatprep.subr.bf16.mxu0 0
    %471 = vmatpush2.bf16.msra.mxu0 0
    %472 = vmatprep.subr.bf16.mxu0 0
    %473 = vmatpush2.bf16.msra.mxu0 0
    %474 = vmatprep.subr.bf16.mxu0 0
    %475 = vmatpush2.bf16.msra.mxu0 0
    %476 = vmatprep.subr.bf16.mxu0 0
    %477 = vmatpush2.bf16.msra.mxu0 0
    %478 = vmatprep.subr.bf16.mxu0 0
    %479 = vmatpush2.bf16.msra.mxu0 0
    %480 = vmatprep.subr.bf16.mxu0 0
    %481 = vmatpush2.bf16.msra.mxu0 0
    %482 = vmatprep.subr.bf16.mxu0 0
    %483 = vmatpush2.bf16.msra.mxu0 0
    %484 = vmatprep.mubr.bf16.mxu0 0
    %485 = vmatmul.mubr.bf16.gmra.mxu0 %v425
    %v486 = vpop.f32.mrf.mxu0
    %v487 = vadd.f32 %v361, %v486
    %v488 = vpop.f32.mrf.mxu0
    %v489 = vpop.f32.mrf.mxu0
    %v490 = vadd.f32 %v364, %v489
    %v491 = vpop.f32.mrf.mxu0
    %492 = vmatprep.mubr.bf16.mxu0 0
    %493 = vmatmul.mubr.bf16.gmra.mxu0 %v428
    %v494 = vpop.f32.mrf.mxu0
    %v495 = vadd.f32 %v369, %v494
    %v496 = vpop.f32.mrf.mxu0
    %v497 = vpop.f32.mrf.mxu0
    %v498 = vadd.f32 %v372, %v497
    %v499 = vpop.f32.mrf.mxu0
    %500 = vmatprep.mubr.bf16.mxu0 0
    %501 = vmatmul.mubr.bf16.gmra.mxu0 %v431
    %v502 = vpop.f32.mrf.mxu0
    %v503 = vadd.f32 %v377, %v502
    %v504 = vpop.f32.mrf.mxu0
    %v505 = vpop.f32.mrf.mxu0
    %v506 = vadd.f32 %v380, %v505
    %v507 = vpop.f32.mrf.mxu0
    %508 = vmatprep.mubr.bf16.mxu0 0
    %509 = vmatmul.mubr.bf16.gmra.mxu0 %v434
    %v510 = vpop.f32.mrf.mxu0
    %v511 = vadd.f32 %v385, %v510
    %v512 = vpop.f32.mrf.mxu0
    %v513 = vpop.f32.mrf.mxu0
    %v514 = vadd.f32 %v388, %v513
    %v515 = vpop.f32.mrf.mxu0
    %516 = vmatprep.mubr.bf16.mxu0 0
    %517 = vmatmul.mubr.bf16.gmra.mxu0 %v437
    %v518 = vpop.f32.mrf.mxu0
    %v519 = vadd.f32 %v393, %v518
    %v520 = vpop.f32.mrf.mxu0
    %v521 = vpop.f32.mrf.mxu0
    %v522 = vadd.f32 %v396, %v521
    %v523 = vpop.f32.mrf.mxu0
    %524 = vmatprep.mubr.bf16.mxu0 0
    %525 = vmatmul.mubr.bf16.gmra.mxu0 %v440
    %v526 = vpop.f32.mrf.mxu0
    %v527 = vadd.f32 %v401, %v526
    %v528 = vpop.f32.mrf.mxu0
    %v529 = vpop.f32.mrf.mxu0
    %v530 = vadd.f32 %v404, %v529
    %v531 = vpop.f32.mrf.mxu0
    %532 = vmatprep.mubr.bf16.mxu0 0
    %533 = vmatmul.mubr.bf16.gmra.mxu0 %v443
    %v534 = vpop.f32.mrf.mxu0
    %v535 = vadd.f32 %v409, %v534
    %v536 = vpop.f32.mrf.mxu0
    %v537 = vpop.f32.mrf.mxu0
    %v538 = vadd.f32 %v412, %v537
    %v539 = vpop.f32.mrf.mxu0
    %540 = vmatprep.mubr.bf16.mxu0 0
    %541 = vmatmul.mubr.bf16.gmra.mxu0 %v446
    %v542 = vpop.f32.mrf.mxu0
    %v543 = vadd.f32 %v417, %v542
    %v544 = vpop.f32.mrf.mxu0
    %v545 = vpop.f32.mrf.mxu0
    %v546 = vadd.f32 %v420, %v545
    %v547 = vpop.f32.mrf.mxu0
    %548 = vdwg.mxu0
    %vm549 = vcmask 130048
    %550 = vst.msk [vmem:[#allocation4] sm:$0xff] %vm549, %v487
    %551 = vst.msk [vmem:[#allocation4 + $0x8] sm:$0xff] %vm549, %v490
    %552 = vst.msk [vmem:[#allocation4 + $0x10] sm:$0xff] %vm549, %v495
    %553 = vst.msk [vmem:[#allocation4 + $0x18] sm:$0xff] %vm549, %v498
    %554 = vst.msk [vmem:[#allocation4 + $0x20] sm:$0xff] %vm549, %v503
    %555 = vst.msk [vmem:[#allocation4 + $0x28] sm:$0xff] %vm549, %v506
    %556 = vst.msk [vmem:[#allocation4 + $0x30] sm:$0xff] %vm549, %v511
    %557 = vst.msk [vmem:[#allocation4 + $0x38] sm:$0xff] %vm549, %v514
    %558 = vst.msk [vmem:[#allocation4 + $0x40] sm:$0xff] %vm549, %v519
    %559 = vst.msk [vmem:[#allocation4 + $0x48] sm:$0xff] %vm549, %v522
    %560 = vst.msk [vmem:[#allocation4 + $0x50] sm:$0xff] %vm549, %v527
    %561 = vst.msk [vmem:[#allocation4 + $0x58] sm:$0xff] %vm549, %v530
    %562 = vst.msk [vmem:[#allocation4 + $0x60] sm:$0xff] %vm549, %v535
    %563 = vst.msk [vmem:[#allocation4 + $0x68] sm:$0xff] %vm549, %v538
    %564 = vst.msk [vmem:[#allocation4 + $0x70] sm:$0xff] %vm549, %v543
    %565 = vst.msk [vmem:[#allocation4 + $0x78] sm:$0xff] %vm549, %v546
    // Predicated region
    $region42: #{preact_bottleneck.5} parent=1 // pred_check
      _
    $region43: #{preact_bottleneck.5} parent=1 // pred_check_branch
      %567 = sbr.rel (0) target = $region45
    $region44: #{preact_bottleneck.5} parent=1 // pred_region
      %s569 = ssub.s32 2048, 2048
      %570 = vsyncadd [#allocation5], %s569
      %s571 = sshll.u32 [#allocation4], 4
      %s572 = int_to_ptr.vmem [resolvable:$true] %s571
      %577 = dma.vmem_to_hbm [thread:$0]  %s572, 2048, %s10, [#allocation5], 128, 128, 8
    $region45: #{preact_bottleneck.5} parent=1 // pred_fallthru
      _
    // Predicated region
    $region46: #{preact_bottleneck.5} parent=1 // pred_check
      _
    $region47: #{preact_bottleneck.5} parent=1 // pred_check_branch
      %579 = sbr.rel (0) target = $region49
    $region48: #{preact_bottleneck.5} parent=1 // pred_region
      %580 = dma.done [#allocation5], 2048
    $region49: #{preact_bottleneck.5} parent=1 // pred_fallthru
      _
    %581 = vsyncpa [#allocation5], 1

// kernel: preact_bottleneck.3
$region0: #{preact_bottleneck.3}
  #allocation0 [shape = 'u32[]', space=smem, size = 0x4, offset = 0x4, fixed_abs, tag = 'smem constant byte address 0x4 - core index']
  #allocation1 [shape = 'u32[144,128]{1,0:T(1,128)}', space=vmem, size = 0x12000, scoped, tag = 'internal scratch']
  #allocation2 [shape = 'f32[1,1]{1,0:T(1,128)S(6)}', space=smem, size = 0x200, scoped, tag = 'scoped memory for preact_bottleneck.3']
  %s0 = inlined_call_operand.vmem [shape: f32[512,8], index: 0, kind: input, shape index: {}]
  %s1 = inlined_call_operand.vmem [shape: f32[1,8], index: 1, kind: input, shape index: {}]
  %s2 = inlined_call_operand.vmem [shape: f32[1,8], index: 2, kind: input, shape index: {}]
  %s3 = inlined_call_operand.<no memory space> [shape: f32[1,1], index: 3, kind: input, shape index: {}]
  %s4 = inlined_call_operand.vmem [shape: bf16[8,4], index: 4, kind: input, shape index: {}]
  %s5 = inlined_call_operand.vmem [shape: bf16[512,4], index: 5, kind: output, shape index: {0}]
  %s6 = inlined_call_operand.vmem [shape: f32[1,2,4], index: 6, kind: output, shape index: {1}]
  %7 = xla_tuple %s5, %s6
  %s8 = sld [smem:[#allocation0]]
  $region38: #{preact_bottleneck.3} parent=0
    _
  %s10 = ssub.s32 1, %s8
  %s11 = scalar_select 0, %s10, %s8
  %12 = sst [smem:[#allocation2]] %s3
  // Predicated region
  $region2: #{preact_bottleneck.3} parent=0 // pred_check
    _
  $region3: #{preact_bottleneck.3} parent=0 // pred_check_branch
    %14 = sbr.rel (0) target = $region5
  $region4: #{preact_bottleneck.3} parent=0 // pred_region
    _
  $region5: #{preact_bottleneck.3} parent=0 // pred_fallthru
    _
  // Predicated region
  $region6: #{preact_bottleneck.3} parent=0 // pred_check
    _
  $region7: #{preact_bottleneck.3} parent=0 // pred_check_branch
    %16 = sbr.rel (0) target = $region9
  $region8: #{preact_bottleneck.3} parent=0 // pred_region
    _
  $region9: #{preact_bottleneck.3} parent=0 // pred_fallthru
    _
  // Predicated region
  $region10: #{preact_bottleneck.3} parent=0 // pred_check
    _
  $region11: #{preact_bottleneck.3} parent=0 // pred_check_branch
    %18 = sbr.rel (0) target = $region13
  $region12: #{preact_bottleneck.3} parent=0 // pred_region
    _
  $region13: #{preact_bottleneck.3} parent=0 // pred_fallthru
    _
  // Predicated region
  $region14: #{preact_bottleneck.3} parent=0 // pred_check
    _
  $region15: #{preact_bottleneck.3} parent=0 // pred_check_branch
    %20 = sbr.rel (0) target = $region17
  $region16: #{preact_bottleneck.3} parent=0 // pred_region
    _
  $region17: #{preact_bottleneck.3} parent=0 // pred_fallthru
    _
  // Predicated region
  $region18: #{preact_bottleneck.3} parent=0 // pred_check
    _
  $region19: #{preact_bottleneck.3} parent=0 // pred_check_branch
    %22 = sbr.rel (0) target = $region21
  $region20: #{preact_bottleneck.3} parent=0 // pred_region
    _
  $region21: #{preact_bottleneck.3} parent=0 // pred_fallthru
    _
  %v24 = vld [vmem:[%s0] sm:$0xff]
  %v25 = vld [vmem:[%s0 + $0x8] sm:$0xff]
  %v26 = vld [vmem:[%s0 + $0x10] sm:$0xff]
  %v27 = vld [vmem:[%s0 + $0x18] sm:$0xff]
  %v28 = vld [vmem:[%s0 + $0x20] sm:$0xff]
  %v29 = vld [vmem:[%s0 + $0x28] sm:$0xff]
  %v30 = vld [vmem:[%s0 + $0x30] sm:$0xff]
  %v31 = vld [vmem:[%s0 + $0x38] sm:$0xff]
  %v32 = vld [vmem:[%s0 + $0x40] sm:$0xff]
  %v33 = vld [vmem:[%s0 + $0x48] sm:$0xff]
  %v34 = vld [vmem:[%s0 + $0x50] sm:$0xff]
  %v35 = vld [vmem:[%s0 + $0x58] sm:$0xff]
  %v36 = vld [vmem:[%s0 + $0x60] sm:$0xff]
  %v37 = vld [vmem:[%s0 + $0x68] sm:$0xff]
  %v38 = vld [vmem:[%s0 + $0x70] sm:$0xff]
  %v39 = vld [vmem:[%s0 + $0x78] sm:$0xff]
  %v40 = vld [vmem:[%s0 + $0x80] sm:$0xff]
  %v41 = vld [vmem:[%s0 + $0x88] sm:$0xff]
  %v42 = vld [vmem:[%s0 + $0x90] sm:$0xff]
  %v43 = vld [vmem:[%s0 + $0x98] sm:$0xff]
  %v44 = vld [vmem:[%s0 + $0xa0] sm:$0xff]
  %v45 = vld [vmem:[%s0 + $0xa8] sm:$0xff]
  %v46 = vld [vmem:[%s0 + $0xb0] sm:$0xff]
  %v47 = vld [vmem:[%s0 + $0xb8] sm:$0xff]
  %v48 = vld [vmem:[%s0 + $0xc0] sm:$0xff]
  %v49 = vld [vmem:[%s0 + $0xc8] sm:$0xff]
  %v50 = vld [vmem:[%s0 + $0xd0] sm:$0xff]
  %v51 = vld [vmem:[%s0 + $0xd8] sm:$0xff]
  %v52 = vld [vmem:[%s0 + $0xe0] sm:$0xff]
  %v53 = vld [vmem:[%s0 + $0xe8] sm:$0xff]
  %v54 = vld [vmem:[%s0 + $0xf0] sm:$0xff]
  %v55 = vld [vmem:[%s0 + $0xf8] sm:$0xff]
  %v56 = vld [vmem:[%s0 + $0x100] sm:$0xff]
  %v57 = vld [vmem:[%s0 + $0x108] sm:$0xff]
  %v58 = vld [vmem:[%s0 + $0x110] sm:$0xff]
  %v59 = vld [vmem:[%s0 + $0x118] sm:$0xff]
  %v60 = vld [vmem:[%s0 + $0x120] sm:$0xff]
  %v61 = vld [vmem:[%s0 + $0x128] sm:$0xff]
  %v62 = vld [vmem:[%s0 + $0x130] sm:$0xff]
  %v63 = vld [vmem:[%s0 + $0x138] sm:$0xff]
  %v64 = vld [vmem:[%s0 + $0x140] sm:$0xff]
  %v65 = vld [vmem:[%s0 + $0x148] sm:$0xff]
  %v66 = vld [vmem:[%s0 + $0x150] sm:$0xff]
  %v67 = vld [vmem:[%s0 + $0x158] sm:$0xff]
  %v68 = vld [vmem:[%s0 + $0x160] sm:$0xff]
  %v69 = vld [vmem:[%s0 + $0x168] sm:$0xff]
  %v70 = vld [vmem:[%s0 + $0x170] sm:$0xff]
  %v71 = vld [vmem:[%s0 + $0x178] sm:$0xff]
  %v72 = vld [vmem:[%s0 + $0x180] sm:$0xff]
  %v73 = vld [vmem:[%s0 + $0x188] sm:$0xff]
  %v74 = vld [vmem:[%s0 + $0x190] sm:$0xff]
  %v75 = vld [vmem:[%s0 + $0x198] sm:$0xff]
  %v76 = vld [vmem:[%s0 + $0x1a0] sm:$0xff]
  %v77 = vld [vmem:[%s0 + $0x1a8] sm:$0xff]
  %v78 = vld [vmem:[%s0 + $0x1b0] sm:$0xff]
  %v79 = vld [vmem:[%s0 + $0x1b8] sm:$0xff]
  %v80 = vld [vmem:[%s0 + $0x1c0] sm:$0xff]
  %v81 = vld [vmem:[%s0 + $0x1c8] sm:$0xff]
  %v82 = vld [vmem:[%s0 + $0x1d0] sm:$0xff]
  %v83 = vld [vmem:[%s0 + $0x1d8] sm:$0xff]
  %v84 = vld [vmem:[%s0 + $0x1e0] sm:$0xff]
  %v85 = vld [vmem:[%s0 + $0x1e8] sm:$0xff]
  %v86 = vld [vmem:[%s0 + $0x1f0] sm:$0xff]
  %v87 = vld [vmem:[%s0 + $0x1f8] sm:$0xff]
  %v88 = vld [vmem:[%s1] sm:$0x1]
  %v89 = vld [vmem:[%s2] sm:$0x1]
  %s90 = sld [smem:[#allocation2]]
  %v92 = vlaneseq
  %v93 = vshrl.u32 %v92, 7
  %v94 = vsub.s32 0, %v93
  %v95 = vrot.slane %v88, %v94
  %v97 = vmul.f32 %v24, %v95
  %v98 = vmul.f32 %v25, %v95
  %v99 = vmul.f32 %v26, %v95
  %v100 = vmul.f32 %v27, %v95
  %v101 = vmul.f32 %v28, %v95
  %v102 = vmul.f32 %v29, %v95
  %v103 = vmul.f32 %v30, %v95
  %v104 = vmul.f32 %v31, %v95
  %v105 = vmul.f32 %v32, %v95
  %v106 = vmul.f32 %v33, %v95
  %v107 = vmul.f32 %v34, %v95
  %v108 = vmul.f32 %v35, %v95
  %v109 = vmul.f32 %v36, %v95
  %v110 = vmul.f32 %v37, %v95
  %v111 = vmul.f32 %v38, %v95
  %v112 = vmul.f32 %v39, %v95
  %v113 = vmul.f32 %v40, %v95
  %v114 = vmul.f32 %v41, %v95
  %v115 = vmul.f32 %v42, %v95
  %v116 = vmul.f32 %v43, %v95
  %v117 = vmul.f32 %v44, %v95
  %v118 = vmul.f32 %v45, %v95
  %v119 = vmul.f32 %v46, %v95
  %v120 = vmul.f32 %v47, %v95
  %v121 = vmul.f32 %v48, %v95
  %v122 = vmul.f32 %v49, %v95
  %v123 = vmul.f32 %v50, %v95
  %v124 = vmul.f32 %v51, %v95
  %v125 = vmul.f32 %v52, %v95
  %v126 = vmul.f32 %v53, %v95
  %v127 = vmul.f32 %v54, %v95
  %v128 = vmul.f32 %v55, %v95
  %v129 = vmul.f32 %v56, %v95
  %v130 = vmul.f32 %v57, %v95
  %v131 = vmul.f32 %v58, %v95
  %v132 = vmul.f32 %v59, %v95
  %v133 = vmul.f32 %v60, %v95
  %v134 = vmul.f32 %v61, %v95
  %v135 = vmul.f32 %v62, %v95
  %v136 = vmul.f32 %v63, %v95
  %v137 = vmul.f32 %v64, %v95
  %v138 = vmul.f32 %v65, %v95
  %v139 = vmul.f32 %v66, %v95
  %v140 = vmul.f32 %v67, %v95
  %v141 = vmul.f32 %v68, %v95
  %v142 = vmul.f32 %v69, %v95
  %v143 = vmul.f32 %v70, %v95
  %v144 = vmul.f32 %v71, %v95
  %v145 = vmul.f32 %v72, %v95
  %v146 = vmul.f32 %v73, %v95
  %v147 = vmul.f32 %v74, %v95
  %v148 = vmul.f32 %v75, %v95
  %v149 = vmul.f32 %v76, %v95
  %v150 = vmul.f32 %v77, %v95
  %v151 = vmul.f32 %v78, %v95
  %v152 = vmul.f32 %v79, %v95
  %v153 = vmul.f32 %v80, %v95
  %v154 = vmul.f32 %v81, %v95
  %v155 = vmul.f32 %v82, %v95
  %v156 = vmul.f32 %v83, %v95
  %v157 = vmul.f32 %v84, %v95
  %v158 = vmul.f32 %v85, %v95
  %v159 = vmul.f32 %v86, %v95
  %v160 = vmul.f32 %v87, %v95
  %v162 = vlaneseq
  %v163 = vshrl.u32 %v162, 7
  %v164 = vsub.s32 0, %v163
  %v165 = vrot.slane %v89, %v164
  %v167 = vadd.f32 %v97, %v165
  %v168 = vadd.f32 %v98, %v165
  %v169 = vadd.f32 %v99, %v165
  %v170 = vadd.f32 %v100, %v165
  %v171 = vadd.f32 %v101, %v165
  %v172 = vadd.f32 %v102, %v165
  %v173 = vadd.f32 %v103, %v165
  %v174 = vadd.f32 %v104, %v165
  %v175 = vadd.f32 %v105, %v165
  %v176 = vadd.f32 %v106, %v165
  %v177 = vadd.f32 %v107, %v165
  %v178 = vadd.f32 %v108, %v165
  %v179 = vadd.f32 %v109, %v165
  %v180 = vadd.f32 %v110, %v165
  %v181 = vadd.f32 %v111, %v165
  %v182 = vadd.f32 %v112, %v165
  %v183 = vadd.f32 %v113, %v165
  %v184 = vadd.f32 %v114, %v165
  %v185 = vadd.f32 %v115, %v165
  %v186 = vadd.f32 %v116, %v165
  %v187 = vadd.f32 %v117, %v165
  %v188 = vadd.f32 %v118, %v165
  %v189 = vadd.f32 %v119, %v165
  %v190 = vadd.f32 %v120, %v165
  %v191 = vadd.f32 %v121, %v165
  %v192 = vadd.f32 %v122, %v165
  %v193 = vadd.f32 %v123, %v165
  %v194 = vadd.f32 %v124, %v165
  %v195 = vadd.f32 %v125, %v165
  %v196 = vadd.f32 %v126, %v165
  %v197 = vadd.f32 %v127, %v165
  %v198 = vadd.f32 %v128, %v165
  %v199 = vadd.f32 %v129, %v165
  %v200 = vadd.f32 %v130, %v165
  %v201 = vadd.f32 %v131, %v165
  %v202 = vadd.f32 %v132, %v165
  %v203 = vadd.f32 %v133, %v165
  %v204 = vadd.f32 %v134, %v165
  %v205 = vadd.f32 %v135, %v165
  %v206 = vadd.f32 %v136, %v165
  %v207 = vadd.f32 %v137, %v165
  %v208 = vadd.f32 %v138, %v165
  %v209 = vadd.f32 %v139, %v165
  %v210 = vadd.f32 %v140, %v165
  %v211 = vadd.f32 %v141, %v165
  %v212 = vadd.f32 %v142, %v165
  %v213 = vadd.f32 %v143, %v165
  %v214 = vadd.f32 %v144, %v165
  %v215 = vadd.f32 %v145, %v165
  %v216 = vadd.f32 %v146, %v165
  %v217 = vadd.f32 %v147, %v165
  %v218 = vadd.f32 %v148, %v165
  %v219 = vadd.f32 %v149, %v165
  %v220 = vadd.f32 %v150, %v165
  %v221 = vadd.f32 %v151, %v165
  %v222 = vadd.f32 %v152, %v165
  %v223 = vadd.f32 %v153, %v165
  %v224 = vadd.f32 %v154, %v165
  %v225 = vadd.f32 %v155, %v165
  %v226 = vadd.f32 %v156, %v165
  %v227 = vadd.f32 %v157, %v165
  %v228 = vadd.f32 %v158, %v165
  %v229 = vadd.f32 %v159, %v165
  %v230 = vadd.f32 %v160, %v165
  %vm231 = vcmp.ge.f32.partialorder %v167, 0.0
  %vm232 = vcmp.ge.f32.partialorder %v168, 0.0
  %vm233 = vcmp.ge.f32.partialorder %v169, 0.0
  %vm234 = vcmp.ge.f32.partialorder %v170, 0.0
  %vm235 = vcmp.ge.f32.partialorder %v171, 0.0
  %vm236 = vcmp.ge.f32.partialorder %v172, 0.0
  %vm237 = vcmp.ge.f32.partialorder %v173, 0.0
  %vm238 = vcmp.ge.f32.partialorder %v174, 0.0
  %vm239 = vcmp.ge.f32.partialorder %v175, 0.0
  %vm240 = vcmp.ge.f32.partialorder %v176, 0.0
  %vm241 = vcmp.ge.f32.partialorder %v177, 0.0
  %vm242 = vcmp.ge.f32.partialorder %v178, 0.0
  %vm243 = vcmp.ge.f32.partialorder %v179, 0.0
  %vm244 = vcmp.ge.f32.partialorder %v180, 0.0
  %vm245 = vcmp.ge.f32.partialorder %v181, 0.0
  %vm246 = vcmp.ge.f32.partialorder %v182, 0.0
  %vm247 = vcmp.ge.f32.partialorder %v183, 0.0
  %vm248 = vcmp.ge.f32.partialorder %v184, 0.0
  %vm249 = vcmp.ge.f32.partialorder %v185, 0.0
  %vm250 = vcmp.ge.f32.partialorder %v186, 0.0
  %vm251 = vcmp.ge.f32.partialorder %v187, 0.0
  %vm252 = vcmp.ge.f32.partialorder %v188, 0.0
  %vm253 = vcmp.ge.f32.partialorder %v189, 0.0
  %vm254 = vcmp.ge.f32.partialorder %v190, 0.0
  %vm255 = vcmp.ge.f32.partialorder %v191, 0.0
  %vm256 = vcmp.ge.f32.partialorder %v192, 0.0
  %vm257 = vcmp.ge.f32.partialorder %v193, 0.0
  %vm258 = vcmp.ge.f32.partialorder %v194, 0.0
  %vm259 = vcmp.ge.f32.partialorder %v195, 0.0
  %vm260 = vcmp.ge.f32.partialorder %v196, 0.0
  %vm261 = vcmp.ge.f32.partialorder %v197, 0.0
  %vm262 = vcmp.ge.f32.partialorder %v198, 0.0
  %vm263 = vcmp.ge.f32.partialorder %v199, 0.0
  %vm264 = vcmp.ge.f32.partialorder %v200, 0.0
  %vm265 = vcmp.ge.f32.partialorder %v201, 0.0
  %vm266 = vcmp.ge.f32.partialorder %v202, 0.0
  %vm267 = vcmp.ge.f32.partialorder %v203, 0.0
  %vm268 = vcmp.ge.f32.partialorder %v204, 0.0
  %vm269 = vcmp.ge.f32.partialorder %v205, 0.0
  %vm270 = vcmp.ge.f32.partialorder %v206, 0.0
  %vm271 = vcmp.ge.f32.partialorder %v207, 0.0
  %vm272 = vcmp.ge.f32.partialorder %v208, 0.0
  %vm273 = vcmp.ge.f32.partialorder %v209, 0.0
  %vm274 = vcmp.ge.f32.partialorder %v210, 0.0
  %vm275 = vcmp.ge.f32.partialorder %v211, 0.0
  %vm276 = vcmp.ge.f32.partialorder %v212, 0.0
  %vm277 = vcmp.ge.f32.partialorder %v213, 0.0
  %vm278 = vcmp.ge.f32.partialorder %v214, 0.0
  %vm279 = vcmp.ge.f32.partialorder %v215, 0.0
  %vm280 = vcmp.ge.f32.partialorder %v216, 0.0
  %vm281 = vcmp.ge.f32.partialorder %v217, 0.0
  %vm282 = vcmp.ge.f32.partialorder %v218, 0.0
  %vm283 = vcmp.ge.f32.partialorder %v219, 0.0
  %vm284 = vcmp.ge.f32.partialorder %v220, 0.0
  %vm285 = vcmp.ge.f32.partialorder %v221, 0.0
  %vm286 = vcmp.ge.f32.partialorder %v222, 0.0
  %vm287 = vcmp.ge.f32.partialorder %v223, 0.0
  %vm288 = vcmp.ge.f32.partialorder %v224, 0.0
  %vm289 = vcmp.ge.f32.partialorder %v225, 0.0
  %vm290 = vcmp.ge.f32.partialorder %v226, 0.0
  %vm291 = vcmp.ge.f32.partialorder %v227, 0.0
  %vm292 = vcmp.ge.f32.partialorder %v228, 0.0
  %vm293 = vcmp.ge.f32.partialorder %v229, 0.0
  %vm294 = vcmp.ge.f32.partialorder %v230, 0.0
  %v295 = vstv %s90
  %v296 = vmul.f32 %v295, %v167
  %v297 = vmul.f32 %v295, %v168
  %v298 = vmul.f32 %v295, %v169
  %v299 = vmul.f32 %v295, %v170
  %v300 = vmul.f32 %v295, %v171
  %v301 = vmul.f32 %v295, %v172
  %v302 = vmul.f32 %v295, %v173
  %v303 = vmul.f32 %v295, %v174
  %v304 = vmul.f32 %v295, %v175
  %v305 = vmul.f32 %v295, %v176
  %v306 = vmul.f32 %v295, %v177
  %v307 = vmul.f32 %v295, %v178
  %v308 = vmul.f32 %v295, %v179
  %v309 = vmul.f32 %v295, %v180
  %v310 = vmul.f32 %v295, %v181
  %v311 = vmul.f32 %v295, %v182
  %v312 = vmul.f32 %v295, %v183
  %v313 = vmul.f32 %v295, %v184
  %v314 = vmul.f32 %v295, %v185
  %v315 = vmul.f32 %v295, %v186
  %v316 = vmul.f32 %v295, %v187
  %v317 = vmul.f32 %v295, %v188
  %v318 = vmul.f32 %v295, %v189
  %v319 = vmul.f32 %v295, %v190
  %v320 = vmul.f32 %v295, %v191
  %v321 = vmul.f32 %v295, %v192
  %v322 = vmul.f32 %v295, %v193
  %v323 = vmul.f32 %v295, %v194
  %v324 = vmul.f32 %v295, %v195
  %v325 = vmul.f32 %v295, %v196
  %v326 = vmul.f32 %v295, %v197
  %v327 = vmul.f32 %v295, %v198
  %v328 = vmul.f32 %v295, %v199
  %v329 = vmul.f32 %v295, %v200
  %v330 = vmul.f32 %v295, %v201
  %v331 = vmul.f32 %v295, %v202
  %v332 = vmul.f32 %v295, %v203
  %v333 = vmul.f32 %v295, %v204
  %v334 = vmul.f32 %v295, %v205
  %v335 = vmul.f32 %v295, %v206
  %v336 = vmul.f32 %v295, %v207
  %v337 = vmul.f32 %v295, %v208
  %v338 = vmul.f32 %v295, %v209
  %v339 = vmul.f32 %v295, %v210
  %v340 = vmul.f32 %v295, %v211
  %v341 = vmul.f32 %v295, %v212
  %v342 = vmul.f32 %v295, %v213
  %v343 = vmul.f32 %v295, %v214
  %v344 = vmul.f32 %v295, %v215
  %v345 = vmul.f32 %v295, %v216
  %v346 = vmul.f32 %v295, %v217
  %v347 = vmul.f32 %v295, %v218
  %v348 = vmul.f32 %v295, %v219
  %v349 = vmul.f32 %v295, %v220
  %v350 = vmul.f32 %v295, %v221
  %v351 = vmul.f32 %v295, %v222
  %v352 = vmul.f32 %v295, %v223
  %v353 = vmul.f32 %v295, %v224
  %v354 = vmul.f32 %v295, %v225
  %v355 = vmul.f32 %v295, %v226
  %v356 = vmul.f32 %v295, %v227
  %v357 = vmul.f32 %v295, %v228
  %v358 = vmul.f32 %v295, %v229
  %v359 = vmul.f32 %v295, %v230
  %v360 = vsel %vm231, %v167, %v296
  %v361 = vsel %vm232, %v168, %v297
  %v362 = vsel %vm233, %v169, %v298
  %v363 = vsel %vm234, %v170, %v299
  %v364 = vsel %vm235, %v171, %v300
  %v365 = vsel %vm236, %v172, %v301
  %v366 = vsel %vm237, %v173, %v302
  %v367 = vsel %vm238, %v174, %v303
  %v368 = vsel %vm239, %v175, %v304
  %v369 = vsel %vm240, %v176, %v305
  %v370 = vsel %vm241, %v177, %v306
  %v371 = vsel %vm242, %v178, %v307
  %v372 = vsel %vm243, %v179, %v308
  %v373 = vsel %vm244, %v180, %v309
  %v374 = vsel %vm245, %v181, %v310
  %v375 = vsel %vm246, %v182, %v311
  %v376 = vsel %vm247, %v183, %v312
  %v377 = vsel %vm248, %v184, %v313
  %v378 = vsel %vm249, %v185, %v314
  %v379 = vsel %vm250, %v186, %v315
  %v380 = vsel %vm251, %v187, %v316
  %v381 = vsel %vm252, %v188, %v317
  %v382 = vsel %vm253, %v189, %v318
  %v383 = vsel %vm254, %v190, %v319
  %v384 = vsel %vm255, %v191, %v320
  %v385 = vsel %vm256, %v192, %v321
  %v386 = vsel %vm257, %v193, %v322
  %v387 = vsel %vm258, %v194, %v323
  %v388 = vsel %vm259, %v195, %v324
  %v389 = vsel %vm260, %v196, %v325
  %v390 = vsel %vm261, %v197, %v326
  %v391 = vsel %vm262, %v198, %v327
  %v392 = vsel %vm263, %v199, %v328
  %v393 = vsel %vm264, %v200, %v329
  %v394 = vsel %vm265, %v201, %v330
  %v395 = vsel %vm266, %v202, %v331
  %v396 = vsel %vm267, %v203, %v332
  %v397 = vsel %vm268, %v204, %v333
  %v398 = vsel %vm269, %v205, %v334
  %v399 = vsel %vm270, %v206, %v335
  %v400 = vsel %vm271, %v207, %v336
  %v401 = vsel %vm272, %v208, %v337
  %v402 = vsel %vm273, %v209, %v338
  %v403 = vsel %vm274, %v210, %v339
  %v404 = vsel %vm275, %v211, %v340
  %v405 = vsel %vm276, %v212, %v341
  %v406 = vsel %vm277, %v213, %v342
  %v407 = vsel %vm278, %v214, %v343
  %v408 = vsel %vm279, %v215, %v344
  %v409 = vsel %vm280, %v216, %v345
  %v410 = vsel %vm281, %v217, %v346
  %v411 = vsel %vm282, %v218, %v347
  %v412 = vsel %vm283, %v219, %v348
  %v413 = vsel %vm284, %v220, %v349
  %v414 = vsel %vm285, %v221, %v350
  %v415 = vsel %vm286, %v222, %v351
  %v416 = vsel %vm287, %v223, %v352
  %v417 = vsel %vm288, %v224, %v353
  %v418 = vsel %vm289, %v225, %v354
  %v419 = vsel %vm290, %v226, %v355
  %v420 = vsel %vm291, %v227, %v356
  %v421 = vsel %vm292, %v228, %v357
  %v422 = vsel %vm293, %v229, %v358
  %v423 = vsel %vm294, %v230, %v359
  %v424 = vpack.c.bf16 %v361, %v360
  %v425 = vpack.c.bf16 %v363, %v362
  %v426 = vpack.c.bf16 %v365, %v364
  %v427 = vpack.c.bf16 %v367, %v366
  %v428 = vpack.c.bf16 %v369, %v368
  %v429 = vpack.c.bf16 %v371, %v370
  %v430 = vpack.c.bf16 %v373, %v372
  %v431 = vpack.c.bf16 %v375, %v374
  %v432 = vpack.c.bf16 %v377, %v376
  %v433 = vpack.c.bf16 %v379, %v378
  %v434 = vpack.c.bf16 %v381, %v380
  %v435 = vpack.c.bf16 %v383, %v382
  %v436 = vpack.c.bf16 %v385, %v384
  %v437 = vpack.c.bf16 %v387, %v386
  %v438 = vpack.c.bf16 %v389, %v388
  %v439 = vpack.c.bf16 %v391, %v390
  %v440 = vpack.c.bf16 %v393, %v392
  %v441 = vpack.c.bf16 %v395, %v394
  %v442 = vpack.c.bf16 %v397, %v396
  %v443 = vpack.c.bf16 %v399, %v398
  %v444 = vpack.c.bf16 %v401, %v400
  %v445 = vpack.c.bf16 %v403, %v402
  %v446 = vpack.c.bf16 %v405, %v404
  %v447 = vpack.c.bf16 %v407, %v406
  %v448 = vpack.c.bf16 %v409, %v408
  %v449 = vpack.c.bf16 %v411, %v410
  %v450 = vpack.c.bf16 %v413, %v412
  %v451 = vpack.c.bf16 %v415, %v414
  %v452 = vpack.c.bf16 %v417, %v416
  %v453 = vpack.c.bf16 %v419, %v418
  %v454 = vpack.c.bf16 %v421, %v420
  %v455 = vpack.c.bf16 %v423, %v422
  %v456 = vld [vmem:[%s4] sm:$0xf]
  %vm457 = vcmask 64512
  %v459 = vsel %vm457, %v424, 0
  %v462 = vsel %vm457, %v425, 0
  %v465 = vsel %vm457, %v426, 0
  %v468 = vsel %vm457, %v427, 0
  %v471 = vsel %vm457, %v428, 0
  %v474 = vsel %vm457, %v429, 0
  %v477 = vsel %vm457, %v430, 0
  %v480 = vsel %vm457, %v431, 0
  %v483 = vsel %vm457, %v432, 0
  %v486 = vsel %vm457, %v433, 0
  %v489 = vsel %vm457, %v434, 0
  %v492 = vsel %vm457, %v435, 0
  %v495 = vsel %vm457, %v436, 0
  %v498 = vsel %vm457, %v437, 0
  %v501 = vsel %vm457, %v438, 0
  %v504 = vsel %vm457, %v439, 0
  %v507 = vsel %vm457, %v440, 0
  %v510 = vsel %vm457, %v441, 0
  %v513 = vsel %vm457, %v442, 0
  %v516 = vsel %vm457, %v443, 0
  %v519 = vsel %vm457, %v444, 0
  %v522 = vsel %vm457, %v445, 0
  %v525 = vsel %vm457, %v446, 0
  %v528 = vsel %vm457, %v447, 0
  %v531 = vsel %vm457, %v448, 0
  %v534 = vsel %vm457, %v449, 0
  %v537 = vsel %vm457, %v450, 0
  %v540 = vsel %vm457, %v451, 0
  %v543 = vsel %vm457, %v452, 0
  %v546 = vsel %vm457, %v453, 0
  %v549 = vsel %vm457, %v454, 0
  %v552 = vsel %vm457, %v455, 0
  %vm554 = vcmask 1043456
  %v556 = vsel %vm554, %v456, 0
  %558 = vmatprep.subr.bf16.mxu0 0
  %559 = vmatpush1.bf16.msra.mxu0 0
  %560 = vmatprep.subr.bf16.mxu0 0
  %561 = vmatpush1.bf16.msra.mxu0 0
  %562 = vmatprep.subr.bf16.mxu0 0
  %563 = vmatpush1.bf16.msra.mxu0 0
  %564 = vmatprep.subr.bf16.mxu0 0
  %565 = vmatpush1.bf16.msra.mxu0 0
  %566 = vmatprep.subr.bf16.mxu0 0
  %567 = vmatpush1.bf16.msra.mxu0 0
  %568 = vmatprep.subr.bf16.mxu0 0
  %569 = vmatpush1.bf16.msra.mxu0 0
  %570 = vmatprep.subr.bf16.mxu0 0
  %571 = vmatpush1.bf16.msra.mxu0 0
  %572 = vmatprep.subr.bf16.mxu0 0
  %573 = vmatpush1.bf16.msra.mxu0 %v556
  %574 = vmatprep.subr.bf16.mxu0 0
  %575 = vmatpush2.bf16.msra.mxu0 0
  %576 = vmatprep.subr.bf16.mxu0 0
  %577 = vmatpush2.bf16.msra.mxu0 0
  %578 = vmatprep.subr.bf16.mxu0 0
  %579 = vmatpush2.bf16.msra.mxu0 0
  %580 = vmatprep.subr.bf16.mxu0 0
  %581 = vmatpush2.bf16.msra.mxu0 0
  %582 = vmatprep.subr.bf16.mxu0 0
  %583 = vmatpush2.bf16.msra.mxu0 0
  %584 = vmatprep.subr.bf16.mxu0 0
  %585 = vmatpush2.bf16.msra.mxu0 0
  %586 = vmatprep.subr.bf16.mxu0 0
  %587 = vmatpush2.bf16.msra.mxu0 0
  %588 = vmatprep.subr.bf16.mxu0 0
  %589 = vmatpush2.bf16.msra.mxu0 0
  %590 = vmatprep.mubr.bf16.mxu0 0
  %591 = vmatmul.mubr.bf16.gmra.mxu0 %v459
  %v592 = vpop.f32.mrf.mxu0
  %v593 = vadd.f32 0.0, %v592
  %v594 = vpop.f32.mrf.mxu0
  %v595 = vpop.f32.mrf.mxu0
  %v596 = vadd.f32 0.0, %v595
  %v597 = vpop.f32.mrf.mxu0
  %598 = vmatprep.mubr.bf16.mxu0 0
  %599 = vmatmul.mubr.bf16.gmra.mxu0 %v462
  %v600 = vpop.f32.mrf.mxu0
  %v601 = vadd.f32 0.0, %v600
  %v602 = vpop.f32.mrf.mxu0
  %v603 = vpop.f32.mrf.mxu0
  %v604 = vadd.f32 0.0, %v603
  %v605 = vpop.f32.mrf.mxu0
  %606 = vmatprep.mubr.bf16.mxu0 0
  %607 = vmatmul.mubr.bf16.gmra.mxu0 %v465
  %v608 = vpop.f32.mrf.mxu0
  %v609 = vadd.f32 0.0, %v608
  %v610 = vpop.f32.mrf.mxu0
  %v611 = vpop.f32.mrf.mxu0
  %v612 = vadd.f32 0.0, %v611
  %v613 = vpop.f32.mrf.mxu0
  %614 = vmatprep.mubr.bf16.mxu0 0
  %615 = vmatmul.mubr.bf16.gmra.mxu0 %v468
  %v616 = vpop.f32.mrf.mxu0
  %v617 = vadd.f32 0.0, %v616
  %v618 = vpop.f32.mrf.mxu0
  %v619 = vpop.f32.mrf.mxu0
  %v620 = vadd.f32 0.0, %v619
  %v621 = vpop.f32.mrf.mxu0
  %622 = vmatprep.mubr.bf16.mxu0 0
  %623 = vmatmul.mubr.bf16.gmra.mxu0 %v471
  %v624 = vpop.f32.mrf.mxu0
  %v625 = vadd.f32 0.0, %v624
  %v626 = vpop.f32.mrf.mxu0
  %v627 = vpop.f32.mrf.mxu0
  %v628 = vadd.f32 0.0, %v627
  %v629 = vpop.f32.mrf.mxu0
  %630 = vmatprep.mubr.bf16.mxu0 0
  %631 = vmatmul.mubr.bf16.gmra.mxu0 %v474
  %v632 = vpop.f32.mrf.mxu0
  %v633 = vadd.f32 0.0, %v632
  %v634 = vpop.f32.mrf.mxu0
  %v635 = vpop.f32.mrf.mxu0
  %v636 = vadd.f32 0.0, %v635
  %v637 = vpop.f32.mrf.mxu0
  %638 = vmatprep.mubr.bf16.mxu0 0
  %639 = vmatmul.mubr.bf16.gmra.mxu0 %v477
  %v640 = vpop.f32.mrf.mxu0
  %v641 = vadd.f32 0.0, %v640
  %v642 = vpop.f32.mrf.mxu0
  %v643 = vpop.f32.mrf.mxu0
  %v644 = vadd.f32 0.0, %v643
  %v645 = vpop.f32.mrf.mxu0
  %646 = vmatprep.mubr.bf16.mxu0 0
  %647 = vmatmul.mubr.bf16.gmra.mxu0 %v480
  %v648 = vpop.f32.mrf.mxu0
  %v649 = vadd.f32 0.0, %v648
  %v650 = vpop.f32.mrf.mxu0
  %v651 = vpop.f32.mrf.mxu0
  %v652 = vadd.f32 0.0, %v651
  %v653 = vpop.f32.mrf.mxu0
  %654 = vmatprep.mubr.bf16.mxu0 0
  %655 = vmatmul.mubr.bf16.gmra.mxu0 %v483
  %v656 = vpop.f32.mrf.mxu0
  %v657 = vadd.f32 0.0, %v656
  %v658 = vpop.f32.mrf.mxu0
  %v659 = vpop.f32.mrf.mxu0
  %v660 = vadd.f32 0.0, %v659
  %v661 = vpop.f32.mrf.mxu0
  %662 = vmatprep.mubr.bf16.mxu0 0
  %663 = vmatmul.mubr.bf16.gmra.mxu0 %v486
  %v664 = vpop.f32.mrf.mxu0
  %v665 = vadd.f32 0.0, %v664
  %v666 = vpop.f32.mrf.mxu0
  %v667 = vpop.f32.mrf.mxu0
  %v668 = vadd.f32 0.0, %v667
  %v669 = vpop.f32.mrf.mxu0
  %670 = vmatprep.mubr.bf16.mxu0 0
  %671 = vmatmul.mubr.bf16.gmra.mxu0 %v489
  %v672 = vpop.f32.mrf.mxu0
  %v673 = vadd.f32 0.0, %v672
  %v674 = vpop.f32.mrf.mxu0
  %v675 = vpop.f32.mrf.mxu0
  %v676 = vadd.f32 0.0, %v675
  %v677 = vpop.f32.mrf.mxu0
  %678 = vmatprep.mubr.bf16.mxu0 0
  %679 = vmatmul.mubr.bf16.gmra.mxu0 %v492
  %v680 = vpop.f32.mrf.mxu0
  %v681 = vadd.f32 0.0, %v680
  %v682 = vpop.f32.mrf.mxu0
  %v683 = vpop.f32.mrf.mxu0
  %v684 = vadd.f32 0.0, %v683
  %v685 = vpop.f32.mrf.mxu0
  %686 = vmatprep.mubr.bf16.mxu0 0
  %687 = vmatmul.mubr.bf16.gmra.mxu0 %v495
  %v688 = vpop.f32.mrf.mxu0
  %v689 = vadd.f32 0.0, %v688
  %v690 = vpop.f32.mrf.mxu0
  %v691 = vpop.f32.mrf.mxu0
  %v692 = vadd.f32 0.0, %v691
  %v693 = vpop.f32.mrf.mxu0
  %694 = vmatprep.mubr.bf16.mxu0 0
  %695 = vmatmul.mubr.bf16.gmra.mxu0 %v498
  %v696 = vpop.f32.mrf.mxu0
  %v697 = vadd.f32 0.0, %v696
  %v698 = vpop.f32.mrf.mxu0
  %v699 = vpop.f32.mrf.mxu0
  %v700 = vadd.f32 0.0, %v699
  %v701 = vpop.f32.mrf.mxu0
  %702 = vmatprep.mubr.bf16.mxu0 0
  %703 = vmatmul.mubr.bf16.gmra.mxu0 %v501
  %v704 = vpop.f32.mrf.mxu0
  %v705 = vadd.f32 0.0, %v704
  %v706 = vpop.f32.mrf.mxu0
  %v707 = vpop.f32.mrf.mxu0
  %v708 = vadd.f32 0.0, %v707
  %v709 = vpop.f32.mrf.mxu0
  %710 = vmatprep.mubr.bf16.mxu0 0
  %711 = vmatmul.mubr.bf16.gmra.mxu0 %v504
  %v712 = vpop.f32.mrf.mxu0
  %v713 = vadd.f32 0.0, %v712
  %v714 = vpop.f32.mrf.mxu0
  %v715 = vpop.f32.mrf.mxu0
  %v716 = vadd.f32 0.0, %v715
  %v717 = vpop.f32.mrf.mxu0
  %718 = vmatprep.mubr.bf16.mxu0 0
  %719 = vmatmul.mubr.bf16.gmra.mxu0 %v507
  %v720 = vpop.f32.mrf.mxu0
  %v721 = vadd.f32 0.0, %v720
  %v722 = vpop.f32.mrf.mxu0
  %v723 = vpop.f32.mrf.mxu0
  %v724 = vadd.f32 0.0, %v723
  %v725 = vpop.f32.mrf.mxu0
  %726 = vmatprep.mubr.bf16.mxu0 0
  %727 = vmatmul.mubr.bf16.gmra.mxu0 %v510
  %v728 = vpop.f32.mrf.mxu0
  %v729 = vadd.f32 0.0, %v728
  %v730 = vpop.f32.mrf.mxu0
  %v731 = vpop.f32.mrf.mxu0
  %v732 = vadd.f32 0.0, %v731
  %v733 = vpop.f32.mrf.mxu0
  %734 = vmatprep.mubr.bf16.mxu0 0
  %735 = vmatmul.mubr.bf16.gmra.mxu0 %v513
  %v736 = vpop.f32.mrf.mxu0
  %v737 = vadd.f32 0.0, %v736
  %v738 = vpop.f32.mrf.mxu0
  %v739 = vpop.f32.mrf.mxu0
  %v740 = vadd.f32 0.0, %v739
  %v741 = vpop.f32.mrf.mxu0
  %742 = vmatprep.mubr.bf16.mxu0 0
  %743 = vmatmul.mubr.bf16.gmra.mxu0 %v516
  %v744 = vpop.f32.mrf.mxu0
  %v745 = vadd.f32 0.0, %v744
  %v746 = vpop.f32.mrf.mxu0
  %v747 = vpop.f32.mrf.mxu0
  %v748 = vadd.f32 0.0, %v747
  %v749 = vpop.f32.mrf.mxu0
  %750 = vmatprep.mubr.bf16.mxu0 0
  %751 = vmatmul.mubr.bf16.gmra.mxu0 %v519
  %v752 = vpop.f32.mrf.mxu0
  %v753 = vadd.f32 0.0, %v752
  %v754 = vpop.f32.mrf.mxu0
  %v755 = vpop.f32.mrf.mxu0
  %v756 = vadd.f32 0.0, %v755
  %v757 = vpop.f32.mrf.mxu0
  %758 = vmatprep.mubr.bf16.mxu0 0
  %759 = vmatmul.mubr.bf16.gmra.mxu0 %v522
  %v760 = vpop.f32.mrf.mxu0
  %v761 = vadd.f32 0.0, %v760
  %v762 = vpop.f32.mrf.mxu0
  %v763 = vpop.f32.mrf.mxu0
  %v764 = vadd.f32 0.0, %v763
  %v765 = vpop.f32.mrf.mxu0
  %766 = vmatprep.mubr.bf16.mxu0 0
  %767 = vmatmul.mubr.bf16.gmra.mxu0 %v525
  %v768 = vpop.f32.mrf.mxu0
  %v769 = vadd.f32 0.0, %v768
  %v770 = vpop.f32.mrf.mxu0
  %v771 = vpop.f32.mrf.mxu0
  %v772 = vadd.f32 0.0, %v771
  %v773 = vpop.f32.mrf.mxu0
  %774 = vmatprep.mubr.bf16.mxu0 0
  %775 = vmatmul.mubr.bf16.gmra.mxu0 %v528
  %v776 = vpop.f32.mrf.mxu0
  %v777 = vadd.f32 0.0, %v776
  %v778 = vpop.f32.mrf.mxu0
  %v779 = vpop.f32.mrf.mxu0
  %v780 = vadd.f32 0.0, %v779
  %v781 = vpop.f32.mrf.mxu0
  %782 = vmatprep.mubr.bf16.mxu0 0
  %783 = vmatmul.mubr.bf16.gmra.mxu0 %v531
  %v784 = vpop.f32.mrf.mxu0
  %v785 = vadd.f32 0.0, %v784
  %v786 = vpop.f32.mrf.mxu0
  %v787 = vpop.f32.mrf.mxu0
  %v788 = vadd.f32 0.0, %v787
  %v789 = vpop.f32.mrf.mxu0
  %790 = vmatprep.mubr.bf16.mxu0 0
  %791 = vmatmul.mubr.bf16.gmra.mxu0 %v534
  %v792 = vpop.f32.mrf.mxu0
  %v793 = vadd.f32 0.0, %v792
  %v794 = vpop.f32.mrf.mxu0
  %v795 = vpop.f32.mrf.mxu0
  %v796 = vadd.f32 0.0, %v795
  %v797 = vpop.f32.mrf.mxu0
  %798 = vmatprep.mubr.bf16.mxu0 0
  %799 = vmatmul.mubr.bf16.gmra.mxu0 %v537
  %v800 = vpop.f32.mrf.mxu0
  %v801 = vadd.f32 0.0, %v800
  %v802 = vpop.f32.mrf.mxu0
  %v803 = vpop.f32.mrf.mxu0
  %v804 = vadd.f32 0.0, %v803
  %v805 = vpop.f32.mrf.mxu0
  %806 = vmatprep.mubr.bf16.mxu0 0
  %807 = vmatmul.mubr.bf16.gmra.mxu0 %v540
  %v808 = vpop.f32.mrf.mxu0
  %v809 = vadd.f32 0.0, %v808
  %v810 = vpop.f32.mrf.mxu0
  %v811 = vpop.f32.mrf.mxu0
  %v812 = vadd.f32 0.0, %v811
  %v813 = vpop.f32.mrf.mxu0
  %814 = vmatprep.mubr.bf16.mxu0 0
  %815 = vmatmul.mubr.bf16.gmra.mxu0 %v543
  %v816 = vpop.f32.mrf.mxu0
  %v817 = vadd.f32 0.0, %v816
  %v818 = vpop.f32.mrf.mxu0
  %v819 = vpop.f32.mrf.mxu0
  %v820 = vadd.f32 0.0, %v819
  %v821 = vpop.f32.mrf.mxu0
  %822 = vmatprep.mubr.bf16.mxu0 0
  %823 = vmatmul.mubr.bf16.gmra.mxu0 %v546
  %v824 = vpop.f32.mrf.mxu0
  %v825 = vadd.f32 0.0, %v824
  %v826 = vpop.f32.mrf.mxu0
  %v827 = vpop.f32.mrf.mxu0
  %v828 = vadd.f32 0.0, %v827
  %v829 = vpop.f32.mrf.mxu0
  %830 = vmatprep.mubr.bf16.mxu0 0
  %831 = vmatmul.mubr.bf16.gmra.mxu0 %v549
  %v832 = vpop.f32.mrf.mxu0
  %v833 = vadd.f32 0.0, %v832
  %v834 = vpop.f32.mrf.mxu0
  %v835 = vpop.f32.mrf.mxu0
  %v836 = vadd.f32 0.0, %v835
  %v837 = vpop.f32.mrf.mxu0
  %838 = vmatprep.mubr.bf16.mxu0 0
  %839 = vmatmul.mubr.bf16.gmra.mxu0 %v552
  %v840 = vpop.f32.mrf.mxu0
  %v841 = vadd.f32 0.0, %v840
  %v842 = vpop.f32.mrf.mxu0
  %v843 = vpop.f32.mrf.mxu0
  %v844 = vadd.f32 0.0, %v843
  %v845 = vpop.f32.mrf.mxu0
  %846 = vdwg.mxu0
  %v847 = vpack.c.bf16 %v596, %v593
  %v848 = vpack.c.bf16 %v604, %v601
  %v849 = vpack.c.bf16 %v612, %v609
  %v850 = vpack.c.bf16 %v620, %v617
  %v851 = vpack.c.bf16 %v628, %v625
  %v852 = vpack.c.bf16 %v636, %v633
  %v853 = vpack.c.bf16 %v644, %v641
  %v854 = vpack.c.bf16 %v652, %v649
  %v855 = vpack.c.bf16 %v660, %v657
  %v856 = vpack.c.bf16 %v668, %v665
  %v857 = vpack.c.bf16 %v676, %v673
  %v858 = vpack.c.bf16 %v684, %v681
  %v859 = vpack.c.bf16 %v692, %v689
  %v860 = vpack.c.bf16 %v700, %v697
  %v861 = vpack.c.bf16 %v708, %v705
  %v862 = vpack.c.bf16 %v716, %v713
  %v863 = vpack.c.bf16 %v724, %v721
  %v864 = vpack.c.bf16 %v732, %v729
  %v865 = vpack.c.bf16 %v740, %v737
  %v866 = vpack.c.bf16 %v748, %v745
  %v867 = vpack.c.bf16 %v756, %v753
  %v868 = vpack.c.bf16 %v764, %v761
  %v869 = vpack.c.bf16 %v772, %v769
  %v870 = vpack.c.bf16 %v780, %v777
  %v871 = vpack.c.bf16 %v788, %v785
  %v872 = vpack.c.bf16 %v796, %v793
  %v873 = vpack.c.bf16 %v804, %v801
  %v874 = vpack.c.bf16 %v812, %v809
  %v875 = vpack.c.bf16 %v820, %v817
  %v876 = vpack.c.bf16 %v828, %v825
  %v877 = vpack.c.bf16 %v836, %v833
  %v878 = vpack.c.bf16 %v844, %v841
  %v911 = vunpack.c.l.b16 %v847
  %v912 = vunpack.c.h.b16 %v847
  %v913 = vunpack.c.l.b16 %v848
  %v914 = vunpack.c.h.b16 %v848
  %v915 = vunpack.c.l.b16 %v849
  %v916 = vunpack.c.h.b16 %v849
  %v917 = vunpack.c.l.b16 %v850
  %v918 = vunpack.c.h.b16 %v850
  %v919 = vunpack.c.l.b16 %v851
  %v920 = vunpack.c.h.b16 %v851
  %v921 = vunpack.c.l.b16 %v852
  %v922 = vunpack.c.h.b16 %v852
  %v923 = vunpack.c.l.b16 %v853
  %v924 = vunpack.c.h.b16 %v853
  %v925 = vunpack.c.l.b16 %v854
  %v926 = vunpack.c.h.b16 %v854
  %v927 = vunpack.c.l.b16 %v855
  %v928 = vunpack.c.h.b16 %v855
  %v929 = vunpack.c.l.b16 %v856
  %v930 = vunpack.c.h.b16 %v856
  %v931 = vunpack.c.l.b16 %v857
  %v932 = vunpack.c.h.b16 %v857
  %v933 = vunpack.c.l.b16 %v858
  %v934 = vunpack.c.h.b16 %v858
  %v935 = vunpack.c.l.b16 %v859
  %v936 = vunpack.c.h.b16 %v859
  %v937 = vunpack.c.l.b16 %v860
  %v938 = vunpack.c.h.b16 %v860
  %v939 = vunpack.c.l.b16 %v861
  %v940 = vunpack.c.h.b16 %v861
  %v941 = vunpack.c.l.b16 %v862
  %v942 = vunpack.c.h.b16 %v862
  %v943 = vunpack.c.l.b16 %v863
  %v944 = vunpack.c.h.b16 %v863
  %v945 = vunpack.c.l.b16 %v864
  %v946 = vunpack.c.h.b16 %v864
  %v947 = vunpack.c.l.b16 %v865
  %v948 = vunpack.c.h.b16 %v865
  %v949 = vunpack.c.l.b16 %v866
  %v950 = vunpack.c.h.b16 %v866
  %v951 = vunpack.c.l.b16 %v867
  %v952 = vunpack.c.h.b16 %v867
  %v953 = vunpack.c.l.b16 %v868
  %v954 = vunpack.c.h.b16 %v868
  %v955 = vunpack.c.l.b16 %v869
  %v956 = vunpack.c.h.b16 %v869
  %v957 = vunpack.c.l.b16 %v870
  %v958 = vunpack.c.h.b16 %v870
  %v959 = vunpack.c.l.b16 %v871
  %v960 = vunpack.c.h.b16 %v871
  %v961 = vunpack.c.l.b16 %v872
  %v962 = vunpack.c.h.b16 %v872
  %v963 = vunpack.c.l.b16 %v873
  %v964 = vunpack.c.h.b16 %v873
  %v965 = vunpack.c.l.b16 %v874
  %v966 = vunpack.c.h.b16 %v874
  %v967 = vunpack.c.l.b16 %v875
  %v968 = vunpack.c.h.b16 %v875
  %v969 = vunpack.c.l.b16 %v876
  %v970 = vunpack.c.h.b16 %v876
  %v971 = vunpack.c.l.b16 %v877
  %v972 = vunpack.c.h.b16 %v877
  %v973 = vunpack.c.l.b16 %v878
  %v974 = vunpack.c.h.b16 %v878
  %v975 = vpack.c.b16 %v911, %v911
  %v976 = vpack.c.b16 %v912, %v912
  %v977 = vpack.c.b16 %v913, %v913
  %v978 = vpack.c.b16 %v914, %v914
  %v979 = vpack.c.b16 %v915, %v915
  %v980 = vpack.c.b16 %v916, %v916
  %v981 = vpack.c.b16 %v917, %v917
  %v982 = vpack.c.b16 %v918, %v918
  %v983 = vpack.c.b16 %v919, %v919
  %v984 = vpack.c.b16 %v920, %v920
  %v985 = vpack.c.b16 %v921, %v921
  %v986 = vpack.c.b16 %v922, %v922
  %v987 = vpack.c.b16 %v923, %v923
  %v988 = vpack.c.b16 %v924, %v924
  %v989 = vpack.c.b16 %v925, %v925
  %v990 = vpack.c.b16 %v926, %v926
  %v991 = vpack.c.b16 %v927, %v927
  %v992 = vpack.c.b16 %v928, %v928
  %v993 = vpack.c.b16 %v929, %v929
  %v994 = vpack.c.b16 %v930, %v930
  %v995 = vpack.c.b16 %v931, %v931
  %v996 = vpack.c.b16 %v932, %v932
  %v997 = vpack.c.b16 %v933, %v933
  %v998 = vpack.c.b16 %v934, %v934
  %v999 = vpack.c.b16 %v935, %v935
  %v1000 = vpack.c.b16 %v936, %v936
  %v1001 = vpack.c.b16 %v937, %v937
  %v1002 = vpack.c.b16 %v938, %v938
  %v1003 = vpack.c.b16 %v939, %v939
  %v1004 = vpack.c.b16 %v940, %v940
  %v1005 = vpack.c.b16 %v941, %v941
  %v1006 = vpack.c.b16 %v942, %v942
  %v1007 = vpack.c.b16 %v943, %v943
  %v1008 = vpack.c.b16 %v944, %v944
  %v1009 = vpack.c.b16 %v945, %v945
  %v1010 = vpack.c.b16 %v946, %v946
  %v1011 = vpack.c.b16 %v947, %v947
  %v1012 = vpack.c.b16 %v948, %v948
  %v1013 = vpack.c.b16 %v949, %v949
  %v1014 = vpack.c.b16 %v950, %v950
  %v1015 = vpack.c.b16 %v951, %v951
  %v1016 = vpack.c.b16 %v952, %v952
  %v1017 = vpack.c.b16 %v953, %v953
  %v1018 = vpack.c.b16 %v954, %v954
  %v1019 = vpack.c.b16 %v955, %v955
  %v1020 = vpack.c.b16 %v956, %v956
  %v1021 = vpack.c.b16 %v957, %v957
  %v1022 = vpack.c.b16 %v958, %v958
  %v1023 = vpack.c.b16 %v959, %v959
  %v1024 = vpack.c.b16 %v960, %v960
  %v1025 = vpack.c.b16 %v961, %v961
  %v1026 = vpack.c.b16 %v962, %v962
  %v1027 = vpack.c.b16 %v963, %v963
  %v1028 = vpack.c.b16 %v964, %v964
  %v1029 = vpack.c.b16 %v965, %v965
  %v1030 = vpack.c.b16 %v966, %v966
  %v1031 = vpack.c.b16 %v967, %v967
  %v1032 = vpack.c.b16 %v968, %v968
  %v1033 = vpack.c.b16 %v969, %v969
  %v1034 = vpack.c.b16 %v970, %v970
  %v1035 = vpack.c.b16 %v971, %v971
  %v1036 = vpack.c.b16 %v972, %v972
  %v1037 = vpack.c.b16 %v973, %v973
  %v1038 = vpack.c.b16 %v974, %v974
  %vm1103 = vcmask 27648
  %1104 = vst.msk [vmem:[%s5] sm:$0xf] %vm1103, %v975
  %1105 = vst.msk [vmem:[%s5 + $0x4] sm:$0xf] %vm1103, %v976
  %1106 = vst.msk [vmem:[%s5 + $0x8] sm:$0xf] %vm1103, %v977
  %1107 = vst.msk [vmem:[%s5 + $0xc] sm:$0xf] %vm1103, %v978
  %1108 = vst.msk [vmem:[%s5 + $0x10] sm:$0xf] %vm1103, %v979
  %1109 = vst.msk [vmem:[%s5 + $0x14] sm:$0xf] %vm1103, %v980
  %1110 = vst.msk [vmem:[%s5 + $0x18] sm:$0xf] %vm1103, %v981
  %1111 = vst.msk [vmem:[%s5 + $0x1c] sm:$0xf] %vm1103, %v982
  %1112 = vst.msk [vmem:[%s5 + $0x20] sm:$0xf] %vm1103, %v983
  %1113 = vst.msk [vmem:[%s5 + $0x24] sm:$0xf] %vm1103, %v984
  %1114 = vst.msk [vmem:[%s5 + $0x28] sm:$0xf] %vm1103, %v985
  %1115 = vst.msk [vmem:[%s5 + $0x2c] sm:$0xf] %vm1103, %v986
  %1116 = vst.msk [vmem:[%s5 + $0x30] sm:$0xf] %vm1103, %v987
  %1117 = vst.msk [vmem:[%s5 + $0x34] sm:$0xf] %vm1103, %v988
  %1118 = vst.msk [vmem:[%s5 + $0x38] sm:$0xf] %vm1103, %v989
  %1119 = vst.msk [vmem:[%s5 + $0x3c] sm:$0xf] %vm1103, %v990
  %1120 = vst.msk [vmem:[%s5 + $0x40] sm:$0xf] %vm1103, %v991
  %1121 = vst.msk [vmem:[%s5 + $0x44] sm:$0xf] %vm1103, %v992
  %1122 = vst.msk [vmem:[%s5 + $0x48] sm:$0xf] %vm1103, %v993
  %1123 = vst.msk [vmem:[%s5 + $0x4c] sm:$0xf] %vm1103, %v994
  %1124 = vst.msk [vmem:[%s5 + $0x50] sm:$0xf] %vm1103, %v995
  %1125 = vst.msk [vmem:[%s5 + $0x54] sm:$0xf] %vm1103, %v996
  %1126 = vst.msk [vmem:[%s5 + $0x58] sm:$0xf] %vm1103, %v997
  %1127 = vst.msk [vmem:[%s5 + $0x5c] sm:$0xf] %vm1103, %v998
  %1128 = vst.msk [vmem:[%s5 + $0x60] sm:$0xf] %vm1103, %v999
  %1129 = vst.msk [vmem:[%s5 + $0x64] sm:$0xf] %vm1103, %v1000
  %1130 = vst.msk [vmem:[%s5 + $0x68] sm:$0xf] %vm1103, %v1001
  %1131 = vst.msk [vmem:[%s5 + $0x6c] sm:$0xf] %vm1103, %v1002
  %1132 = vst.msk [vmem:[%s5 + $0x70] sm:$0xf] %vm1103, %v1003
  %1133 = vst.msk [vmem:[%s5 + $0x74] sm:$0xf] %vm1103, %v1004
  %1134 = vst.msk [vmem:[%s5 + $0x78] sm:$0xf] %vm1103, %v1005
  %1135 = vst.msk [vmem:[%s5 + $0x7c] sm:$0xf] %vm1103, %v1006
  %1136 = vst.msk [vmem:[%s5 + $0x80] sm:$0xf] %vm1103, %v1007
  %1137 = vst.msk [vmem:[%s5 + $0x84] sm:$0xf] %vm1103, %v1008
  %1138 = vst.msk [vmem:[%s5 + $0x88] sm:$0xf] %vm1103, %v1009
  %1139 = vst.msk [vmem:[%s5 + $0x8c] sm:$0xf] %vm1103, %v1010
  %1140 = vst.msk [vmem:[%s5 + $0x90] sm:$0xf] %vm1103, %v1011
  %1141 = vst.msk [vmem:[%s5 + $0x94] sm:$0xf] %vm1103, %v1012
  %1142 = vst.msk [vmem:[%s5 + $0x98] sm:$0xf] %vm1103, %v1013
  %1143 = vst.msk [vmem:[%s5 + $0x9c] sm:$0xf] %vm1103, %v1014
  %1144 = vst.msk [vmem:[%s5 + $0xa0] sm:$0xf] %vm1103, %v1015
  %1145 = vst.msk [vmem:[%s5 + $0xa4] sm:$0xf] %vm1103, %v1016
  %1146 = vst.msk [vmem:[%s5 + $0xa8] sm:$0xf] %vm1103, %v1017
  %1147 = vst.msk [vmem:[%s5 + $0xac] sm:$0xf] %vm1103, %v1018
  %1148 = vst.msk [vmem:[%s5 + $0xb0] sm:$0xf] %vm1103, %v1019
  %1149 = vst.msk [vmem:[%s5 + $0xb4] sm:$0xf] %vm1103, %v1020
  %1150 = vst.msk [vmem:[%s5 + $0xb8] sm:$0xf] %vm1103, %v1021
  %1151 = vst.msk [vmem:[%s5 + $0xbc] sm:$0xf] %vm1103, %v1022
  %1152 = vst.msk [vmem:[%s5 + $0xc0] sm:$0xf] %vm1103, %v1023
  %1153 = vst.msk [vmem:[%s5 + $0xc4] sm:$0xf] %vm1103, %v1024
  %1154 = vst.msk [vmem:[%s5 + $0xc8] sm:$0xf] %vm1103, %v1025
  %1155 = vst.msk [vmem:[%s5 + $0xcc] sm:$0xf] %vm1103, %v1026
  %1156 = vst.msk [vmem:[%s5 + $0xd0] sm:$0xf] %vm1103, %v1027
  %1157 = vst.msk [vmem:[%s5 + $0xd4] sm:$0xf] %vm1103, %v1028
  %1158 = vst.msk [vmem:[%s5 + $0xd8] sm:$0xf] %vm1103, %v1029
  %1159 = vst.msk [vmem:[%s5 + $0xdc] sm:$0xf] %vm1103, %v1030
  %1160 = vst.msk [vmem:[%s5 + $0xe0] sm:$0xf] %vm1103, %v1031
  %1161 = vst.msk [vmem:[%s5 + $0xe4] sm:$0xf] %vm1103, %v1032
  %1162 = vst.msk [vmem:[%s5 + $0xe8] sm:$0xf] %vm1103, %v1033
  %1163 = vst.msk [vmem:[%s5 + $0xec] sm:$0xf] %vm1103, %v1034
  %1164 = vst.msk [vmem:[%s5 + $0xf0] sm:$0xf] %vm1103, %v1035
  %1165 = vst.msk [vmem:[%s5 + $0xf4] sm:$0xf] %vm1103, %v1036
  %1166 = vst.msk [vmem:[%s5 + $0xf8] sm:$0xf] %vm1103, %v1037
  %1167 = vst.msk [vmem:[%s5 + $0xfc] sm:$0xf] %vm1103, %v1038
  %vm1168 = vcmask 31744
  %v1169 = vsel %vm1168, %v593, 0.0
  %v1170 = vsel %vm1168, %v596, 0.0
  %v1171 = vadd.f32 %v1169, %v1170
  %v1172 = vsel %vm1168, %v601, 0.0
  %v1173 = vadd.f32 %v1171, %v1172
  %v1174 = vsel %vm1168, %v604, 0.0
  %v1175 = vadd.f32 %v1173, %v1174
  %v1176 = vsel %vm1168, %v609, 0.0
  %v1177 = vadd.f32 %v1175, %v1176
  %v1178 = vsel %vm1168, %v612, 0.0
  %v1179 = vadd.f32 %v1177, %v1178
  %v1180 = vsel %vm1168, %v617, 0.0
  %v1181 = vadd.f32 %v1179, %v1180
  %v1182 = vsel %vm1168, %v620, 0.0
  %v1183 = vadd.f32 %v1181, %v1182
  %v1184 = vsel %vm1168, %v625, 0.0
  %v1185 = vadd.f32 %v1183, %v1184
  %v1186 = vsel %vm1168, %v628, 0.0
  %v1187 = vadd.f32 %v1185, %v1186
  %v1188 = vsel %vm1168, %v633, 0.0
  %v1189 = vadd.f32 %v1187, %v1188
  %v1190 = vsel %vm1168, %v636, 0.0
  %v1191 = vadd.f32 %v1189, %v1190
  %v1192 = vsel %vm1168, %v641, 0.0
  %v1193 = vadd.f32 %v1191, %v1192
  %v1194 = vsel %vm1168, %v644, 0.0
  %v1195 = vadd.f32 %v1193, %v1194
  %v1196 = vsel %vm1168, %v649, 0.0
  %v1197 = vadd.f32 %v1195, %v1196
  %v1198 = vsel %vm1168, %v652, 0.0
  %v1199 = vadd.f32 %v1197, %v1198
  %v1200 = vsel %vm1168, %v657, 0.0
  %v1201 = vadd.f32 %v1199, %v1200
  %v1202 = vsel %vm1168, %v660, 0.0
  %v1203 = vadd.f32 %v1201, %v1202
  %v1204 = vsel %vm1168, %v665, 0.0
  %v1205 = vadd.f32 %v1203, %v1204
  %v1206 = vsel %vm1168, %v668, 0.0
  %v1207 = vadd.f32 %v1205, %v1206
  %v1208 = vsel %vm1168, %v673, 0.0
  %v1209 = vadd.f32 %v1207, %v1208
  %v1210 = vsel %vm1168, %v676, 0.0
  %v1211 = vadd.f32 %v1209, %v1210
  %v1212 = vsel %vm1168, %v681, 0.0
  %v1213 = vadd.f32 %v1211, %v1212
  %v1214 = vsel %vm1168, %v684, 0.0
  %v1215 = vadd.f32 %v1213, %v1214
  %v1216 = vsel %vm1168, %v689, 0.0
  %v1217 = vadd.f32 %v1215, %v1216
  %v1218 = vsel %vm1168, %v692, 0.0
  %v1219 = vadd.f32 %v1217, %v1218
  %v1220 = vsel %vm1168, %v697, 0.0
  %v1221 = vadd.f32 %v1219, %v1220
  %v1222 = vsel %vm1168, %v700, 0.0
  %v1223 = vadd.f32 %v1221, %v1222
  %v1224 = vsel %vm1168, %v705, 0.0
  %v1225 = vadd.f32 %v1223, %v1224
  %v1226 = vsel %vm1168, %v708, 0.0
  %v1227 = vadd.f32 %v1225, %v1226
  %v1228 = vsel %vm1168, %v713, 0.0
  %v1229 = vadd.f32 %v1227, %v1228
  %v1230 = vsel %vm1168, %v716, 0.0
  %v1231 = vadd.f32 %v1229, %v1230
  %v1232 = vsel %vm1168, %v721, 0.0
  %v1233 = vadd.f32 %v1231, %v1232
  %v1234 = vsel %vm1168, %v724, 0.0
  %v1235 = vadd.f32 %v1233, %v1234
  %v1236 = vsel %vm1168, %v729, 0.0
  %v1237 = vadd.f32 %v1235, %v1236
  %v1238 = vsel %vm1168, %v732, 0.0
  %v1239 = vadd.f32 %v1237, %v1238
  %v1240 = vsel %vm1168, %v737, 0.0
  %v1241 = vadd.f32 %v1239, %v1240
  %v1242 = vsel %vm1168, %v740, 0.0
  %v1243 = vadd.f32 %v1241, %v1242
  %v1244 = vsel %vm1168, %v745, 0.0
  %v1245 = vadd.f32 %v1243, %v1244
  %v1246 = vsel %vm1168, %v748, 0.0
  %v1247 = vadd.f32 %v1245, %v1246
  %v1248 = vsel %vm1168, %v753, 0.0
  %v1249 = vadd.f32 %v1247, %v1248
  %v1250 = vsel %vm1168, %v756, 0.0
  %v1251 = vadd.f32 %v1249, %v1250
  %v1252 = vsel %vm1168, %v761, 0.0
  %v1253 = vadd.f32 %v1251, %v1252
  %v1254 = vsel %vm1168, %v764, 0.0
  %v1255 = vadd.f32 %v1253, %v1254
  %v1256 = vsel %vm1168, %v769, 0.0
  %v1257 = vadd.f32 %v1255, %v1256
  %v1258 = vsel %vm1168, %v772, 0.0
  %v1259 = vadd.f32 %v1257, %v1258
  %v1260 = vsel %vm1168, %v777, 0.0
  %v1261 = vadd.f32 %v1259, %v1260
  %v1262 = vsel %vm1168, %v780, 0.0
  %v1263 = vadd.f32 %v1261, %v1262
  %v1264 = vsel %vm1168, %v785, 0.0
  %v1265 = vadd.f32 %v1263, %v1264
  %v1266 = vsel %vm1168, %v788, 0.0
  %v1267 = vadd.f32 %v1265, %v1266
  %v1268 = vsel %vm1168, %v793, 0.0
  %v1269 = vadd.f32 %v1267, %v1268
  %v1270 = vsel %vm1168, %v796, 0.0
  %v1271 = vadd.f32 %v1269, %v1270
  %v1272 = vsel %vm1168, %v801, 0.0
  %v1273 = vadd.f32 %v1271, %v1272
  %v1274 = vsel %vm1168, %v804, 0.0
  %v1275 = vadd.f32 %v1273, %v1274
  %v1276 = vsel %vm1168, %v809, 0.0
  %v1277 = vadd.f32 %v1275, %v1276
  %v1278 = vsel %vm1168, %v812, 0.0
  %v1279 = vadd.f32 %v1277, %v1278
  %v1280 = vsel %vm1168, %v817, 0.0
  %v1281 = vadd.f32 %v1279, %v1280
  %v1282 = vsel %vm1168, %v820, 0.0
  %v1283 = vadd.f32 %v1281, %v1282
  %v1284 = vsel %vm1168, %v825, 0.0
  %v1285 = vadd.f32 %v1283, %v1284
  %v1286 = vsel %vm1168, %v828, 0.0
  %v1287 = vadd.f32 %v1285, %v1286
  %v1288 = vsel %vm1168, %v833, 0.0
  %v1289 = vadd.f32 %v1287, %v1288
  %v1290 = vsel %vm1168, %v836, 0.0
  %v1291 = vadd.f32 %v1289, %v1290
  %v1292 = vsel %vm1168, %v841, 0.0
  %v1293 = vadd.f32 %v1291, %v1292
  %v1294 = vsel %vm1168, %v844, 0.0
  %v1295 = vadd.f32 %v1293, %v1294
  %v1296 = vrot.slane %v1295, 4
  %v1297 = vadd.f32 %v1295, %v1296
  %v1298 = vrot.slane %v1297, 2
  %v1299 = vadd.f32 %v1297, %v1298
  %v1300 = vrot.slane %v1299, 1
  %v1301 = vadd.f32 %v1299, %v1300
  %v1302 = vmul.f32 %v593, %v593
  %v1303 = vmul.f32 %v596, %v596
  %v1304 = vmul.f32 %v601, %v601
  %v1305 = vmul.f32 %v604, %v604
  %v1306 = vmul.f32 %v609, %v609
  %v1307 = vmul.f32 %v612, %v612
  %v1308 = vmul.f32 %v617, %v617
  %v1309 = vmul.f32 %v620, %v620
  %v1310 = vmul.f32 %v625, %v625
  %v1311 = vmul.f32 %v628, %v628
  %v1312 = vmul.f32 %v633, %v633
  %v1313 = vmul.f32 %v636, %v636
  %v1314 = vmul.f32 %v641, %v641
  %v1315 = vmul.f32 %v644, %v644
  %v1316 = vmul.f32 %v649, %v649
  %v1317 = vmul.f32 %v652, %v652
  %v1318 = vmul.f32 %v657, %v657
  %v1319 = vmul.f32 %v660, %v660
  %v1320 = vmul.f32 %v665, %v665
  %v1321 = vmul.f32 %v668, %v668
  %v1322 = vmul.f32 %v673, %v673
  %v1323 = vmul.f32 %v676, %v676
  %v1324 = vmul.f32 %v681, %v681
  %v1325 = vmul.f32 %v684, %v684
  %v1326 = vmul.f32 %v689, %v689
  %v1327 = vmul.f32 %v692, %v692
  %v1328 = vmul.f32 %v697, %v697
  %v1329 = vmul.f32 %v700, %v700
  %v1330 = vmul.f32 %v705, %v705
  %v1331 = vmul.f32 %v708, %v708
  %v1332 = vmul.f32 %v713, %v713
  %v1333 = vmul.f32 %v716, %v716
  %v1334 = vmul.f32 %v721, %v721
  %v1335 = vmul.f32 %v724, %v724
  %v1336 = vmul.f32 %v729, %v729
  %v1337 = vmul.f32 %v732, %v732
  %v1338 = vmul.f32 %v737, %v737
  %v1339 = vmul.f32 %v740, %v740
  %v1340 = vmul.f32 %v745, %v745
  %v1341 = vmul.f32 %v748, %v748
  %v1342 = vmul.f32 %v753, %v753
  %v1343 = vmul.f32 %v756, %v756
  %v1344 = vmul.f32 %v761, %v761
  %v1345 = vmul.f32 %v764, %v764
  %v1346 = vmul.f32 %v769, %v769
  %v1347 = vmul.f32 %v772, %v772
  %v1348 = vmul.f32 %v777, %v777
  %v1349 = vmul.f32 %v780, %v780
  %v1350 = vmul.f32 %v785, %v785
  %v1351 = vmul.f32 %v788, %v788
  %v1352 = vmul.f32 %v793, %v793
  %v1353 = vmul.f32 %v796, %v796
  %v1354 = vmul.f32 %v801, %v801
  %v1355 = vmul.f32 %v804, %v804
  %v1356 = vmul.f32 %v809, %v809
  %v1357 = vmul.f32 %v812, %v812
  %v1358 = vmul.f32 %v817, %v817
  %v1359 = vmul.f32 %v820, %v820
  %v1360 = vmul.f32 %v825, %v825
  %v1361 = vmul.f32 %v828, %v828
  %v1362 = vmul.f32 %v833, %v833
  %v1363 = vmul.f32 %v836, %v836
  %v1364 = vmul.f32 %v841, %v841
  %v1365 = vmul.f32 %v844, %v844
  %v1366 = vsel %vm1168, %v1302, 0.0
  %v1367 = vsel %vm1168, %v1303, 0.0
  %v1368 = vadd.f32 %v1366, %v1367
  %v1369 = vsel %vm1168, %v1304, 0.0
  %v1370 = vadd.f32 %v1368, %v1369
  %v1371 = vsel %vm1168, %v1305, 0.0
  %v1372 = vadd.f32 %v1370, %v1371
  %v1373 = vsel %vm1168, %v1306, 0.0
  %v1374 = vadd.f32 %v1372, %v1373
  %v1375 = vsel %vm1168, %v1307, 0.0
  %v1376 = vadd.f32 %v1374, %v1375
  %v1377 = vsel %vm1168, %v1308, 0.0
  %v1378 = vadd.f32 %v1376, %v1377
  %v1379 = vsel %vm1168, %v1309, 0.0
  %v1380 = vadd.f32 %v1378, %v1379
  %v1381 = vsel %vm1168, %v1310, 0.0
  %v1382 = vadd.f32 %v1380, %v1381
  %v1383 = vsel %vm1168, %v1311, 0.0
  %v1384 = vadd.f32 %v1382, %v1383
  %v1385 = vsel %vm1168, %v1312, 0.0
  %v1386 = vadd.f32 %v1384, %v1385
  %v1387 = vsel %vm1168, %v1313, 0.0
  %v1388 = vadd.f32 %v1386, %v1387
  %v1389 = vsel %vm1168, %v1314, 0.0
  %v1390 = vadd.f32 %v1388, %v1389
  %v1391 = vsel %vm1168, %v1315, 0.0
  %v1392 = vadd.f32 %v1390, %v1391
  %v1393 = vsel %vm1168, %v1316, 0.0
  %v1394 = vadd.f32 %v1392, %v1393
  %v1395 = vsel %vm1168, %v1317, 0.0
  %v1396 = vadd.f32 %v1394, %v1395
  %v1397 = vsel %vm1168, %v1318, 0.0
  %v1398 = vadd.f32 %v1396, %v1397
  %v1399 = vsel %vm1168, %v1319, 0.0
  %v1400 = vadd.f32 %v1398, %v1399
  %v1401 = vsel %vm1168, %v1320, 0.0
  %v1402 = vadd.f32 %v1400, %v1401
  %v1403 = vsel %vm1168, %v1321, 0.0
  %v1404 = vadd.f32 %v1402, %v1403
  %v1405 = vsel %vm1168, %v1322, 0.0
  %v1406 = vadd.f32 %v1404, %v1405
  %v1407 = vsel %vm1168, %v1323, 0.0
  %v1408 = vadd.f32 %v1406, %v1407
  %v1409 = vsel %vm1168, %v1324, 0.0
  %v1410 = vadd.f32 %v1408, %v1409
  %v1411 = vsel %vm1168, %v1325, 0.0
  %v1412 = vadd.f32 %v1410, %v1411
  %v1413 = vsel %vm1168, %v1326, 0.0
  %v1414 = vadd.f32 %v1412, %v1413
  %v1415 = vsel %vm1168, %v1327, 0.0
  %v1416 = vadd.f32 %v1414, %v1415
  %v1417 = vsel %vm1168, %v1328, 0.0
  %v1418 = vadd.f32 %v1416, %v1417
  %v1419 = vsel %vm1168, %v1329, 0.0
  %v1420 = vadd.f32 %v1418, %v1419
  %v1421 = vsel %vm1168, %v1330, 0.0
  %v1422 = vadd.f32 %v1420, %v1421
  %v1423 = vsel %vm1168, %v1331, 0.0
  %v1424 = vadd.f32 %v1422, %v1423
  %v1425 = vsel %vm1168, %v1332, 0.0
  %v1426 = vadd.f32 %v1424, %v1425
  %v1427 = vsel %vm1168, %v1333, 0.0
  %v1428 = vadd.f32 %v1426, %v1427
  %v1429 = vsel %vm1168, %v1334, 0.0
  %v1430 = vadd.f32 %v1428, %v1429
  %v1431 = vsel %vm1168, %v1335, 0.0
  %v1432 = vadd.f32 %v1430, %v1431
  %v1433 = vsel %vm1168, %v1336, 0.0
  %v1434 = vadd.f32 %v1432, %v1433
  %v1435 = vsel %vm1168, %v1337, 0.0
  %v1436 = vadd.f32 %v1434, %v1435
  %v1437 = vsel %vm1168, %v1338, 0.0
  %v1438 = vadd.f32 %v1436, %v1437
  %v1439 = vsel %vm1168, %v1339, 0.0
  %v1440 = vadd.f32 %v1438, %v1439
  %v1441 = vsel %vm1168, %v1340, 0.0
  %v1442 = vadd.f32 %v1440, %v1441
  %v1443 = vsel %vm1168, %v1341, 0.0
  %v1444 = vadd.f32 %v1442, %v1443
  %v1445 = vsel %vm1168, %v1342, 0.0
  %v1446 = vadd.f32 %v1444, %v1445
  %v1447 = vsel %vm1168, %v1343, 0.0
  %v1448 = vadd.f32 %v1446, %v1447
  %v1449 = vsel %vm1168, %v1344, 0.0
  %v1450 = vadd.f32 %v1448, %v1449
  %v1451 = vsel %vm1168, %v1345, 0.0
  %v1452 = vadd.f32 %v1450, %v1451
  %v1453 = vsel %vm1168, %v1346, 0.0
  %v1454 = vadd.f32 %v1452, %v1453
  %v1455 = vsel %vm1168, %v1347, 0.0
  %v1456 = vadd.f32 %v1454, %v1455
  %v1457 = vsel %vm1168, %v1348, 0.0
  %v1458 = vadd.f32 %v1456, %v1457
  %v1459 = vsel %vm1168, %v1349, 0.0
  %v1460 = vadd.f32 %v1458, %v1459
  %v1461 = vsel %vm1168, %v1350, 0.0
  %v1462 = vadd.f32 %v1460, %v1461
  %v1463 = vsel %vm1168, %v1351, 0.0
  %v1464 = vadd.f32 %v1462, %v1463
  %v1465 = vsel %vm1168, %v1352, 0.0
  %v1466 = vadd.f32 %v1464, %v1465
  %v1467 = vsel %vm1168, %v1353, 0.0
  %v1468 = vadd.f32 %v1466, %v1467
  %v1469 = vsel %vm1168, %v1354, 0.0
  %v1470 = vadd.f32 %v1468, %v1469
  %v1471 = vsel %vm1168, %v1355, 0.0
  %v1472 = vadd.f32 %v1470, %v1471
  %v1473 = vsel %vm1168, %v1356, 0.0
  %v1474 = vadd.f32 %v1472, %v1473
  %v1475 = vsel %vm1168, %v1357, 0.0
  %v1476 = vadd.f32 %v1474, %v1475
  %v1477 = vsel %vm1168, %v1358, 0.0
  %v1478 = vadd.f32 %v1476, %v1477
  %v1479 = vsel %vm1168, %v1359, 0.0
  %v1480 = vadd.f32 %v1478, %v1479
  %v1481 = vsel %vm1168, %v1360, 0.0
  %v1482 = vadd.f32 %v1480, %v1481
  %v1483 = vsel %vm1168, %v1361, 0.0
  %v1484 = vadd.f32 %v1482, %v1483
  %v1485 = vsel %vm1168, %v1362, 0.0
  %v1486 = vadd.f32 %v1484, %v1485
  %v1487 = vsel %vm1168, %v1363, 0.0
  %v1488 = vadd.f32 %v1486, %v1487
  %v1489 = vsel %vm1168, %v1364, 0.0
  %v1490 = vadd.f32 %v1488, %v1489
  %v1491 = vsel %vm1168, %v1365, 0.0
  %v1492 = vadd.f32 %v1490, %v1491
  %v1493 = vrot.slane %v1492, 4
  %v1494 = vadd.f32 %v1492, %v1493
  %v1495 = vrot.slane %v1494, 2
  %v1496 = vadd.f32 %v1494, %v1495
  %v1497 = vrot.slane %v1496, 1
  %v1498 = vadd.f32 %v1496, %v1497
  %vm1499 = vcmask 1040384
  %v1500 = vsel %vm1499, %v1301, %v1498
  %vm1501 = vcmask 25600
  %1502 = vst.msk [vmem:[%s6] sm:$0x3] %vm1501, %v1500
  // Predicated region
  $region22: #{preact_bottleneck.3} parent=0 // pred_check
    _
  $region23: #{preact_bottleneck.3} parent=0 // pred_check_branch
    %1504 = sbr.rel (0) target = $region25
  $region24: #{preact_bottleneck.3} parent=0 // pred_region
    _
  $region25: #{preact_bottleneck.3} parent=0 // pred_fallthru
    _
  // Predicated region
  $region26: #{preact_bottleneck.3} parent=0 // pred_check
    _
  $region27: #{preact_bottleneck.3} parent=0 // pred_check_branch
    %1506 = sbr.rel (0) target = $region29
  $region28: #{preact_bottleneck.3} parent=0 // pred_region
    _
  $region29: #{preact_bottleneck.3} parent=0 // pred_fallthru
    _
  // Predicated region
  $region30: #{preact_bottleneck.3} parent=0 // pred_check
    _
  $region31: #{preact_bottleneck.3} parent=0 // pred_check_branch
    %1508 = sbr.rel (0) target = $region33
  $region32: #{preact_bottleneck.3} parent=0 // pred_region
    _
  $region33: #{preact_bottleneck.3} parent=0 // pred_fallthru
    _
  // Predicated region
  $region34: #{preact_bottleneck.3} parent=0 // pred_check
    _
  $region35: #{preact_bottleneck.3} parent=0 // pred_check_branch
    %1510 = sbr.rel (0) target = $region37
  $region36: #{preact_bottleneck.3} parent=0 // pred_region
    _
  $region37: #{preact_bottleneck.3} parent=0 // pred_fallthru
    _

// kernel: preact_bottleneck.4
$region0: #{preact_bottleneck.4}
  #allocation0 [shape = 'u32[]', space=smem, size = 0x4, offset = 0x4, fixed_abs, tag = 'smem constant byte address 0x4 - core index']
  #allocation1 [shape = 'u32[144,128]{1,0:T(1,128)}', space=vmem, size = 0x12000, scoped, tag = 'internal scratch']
  #allocation2 [shape = 'f32[18,32,4]{2,1,0:T(8,128)}', space=vmem, size = 0x48000, scoped, tag = 'scratch operand']
  #allocation3 [shape = 'f32[1,1]{1,0:T(1,128)S(6)}', space=smem, size = 0x200, scoped, tag = 'scoped memory for preact_bottleneck.4']
  %s0 = inlined_call_operand.vmem [shape: bf16[2,16,16,4], index: 0, kind: input, shape index: {}]
  %s1 = inlined_call_operand.vmem [shape: f32[1,4], index: 1, kind: input, shape index: {}]
  %s2 = inlined_call_operand.vmem [shape: f32[1,4], index: 2, kind: input, shape index: {}]
  %s3 = inlined_call_operand.<no memory space> [shape: f32[1,1], index: 3, kind: input, shape index: {}]
  %s4 = inlined_call_operand.vmem [shape: bf16[3,12,4], index: 4, kind: input, shape index: {}]
  %s5 = inlined_call_operand.vmem [shape: bf16[2,8,16,4], index: 5, kind: output, shape index: {0}]
  %s6 = inlined_call_operand.vmem [shape: f32[2,2,4], index: 6, kind: output, shape index: {1}]
  %7 = xla_tuple %s5, %s6
  %s8 = sld [smem:[#allocation0]]
  $region61: #{preact_bottleneck.4} parent=0
    _
  %s10 = ssub.s32 1, %s8
  %s11 = scalar_select 0, %s10, %s8
  %12 = sst [smem:[#allocation3]] %s3
  loop: start=0, step=1, limit=4
  $region2: #{preact_bottleneck.4} parent=0 // loop_pre_header
    _
  $region3: #{preact_bottleneck.4} parent=0 // loop_header
    %s14 = sphi 0, %s18
    %p15 = scmp.ge.s32.totalorder %s14, 4
    %s24 = sphi 0, %s26
    %s27 = sphi 0, %s24
    %s28 = sphi 0, %s27
    %s44 = sphi 0, %s28
    %s48 = sphi 0, %s48
    %s50 = sphi 0, %s48
    %s51 = sphi 0, %s50
    %s65 = sphi 0, %s51
    %s69 = sphi 0, %s69
    %s71 = sphi 0, %s69
    %s72 = sphi 0, %s71
    %s86 = sphi 0, %s72
    %s90 = sphi 0, %s90
    %s92 = sphi 0, %s90
    %s93 = sphi 0, %s92
    %s107 = sphi 0, %s93
    %s111 = sphi 0, %s111
    %s113 = sphi 0, %s111
    %s114 = sphi 0, %s113
    %s128 = sphi 0, %s114
    %s134 = sphi 0, %s136
    %s137 = sphi 0, %s134
    %s138 = sphi 0, %s137
    %s154 = sphi 0, %s138
    %s160 = sphi 0, %s162
    %s163 = sphi 0, %s160
    %s164 = sphi 0, %s163
    %s180 = sphi 0, %s164
  $region4: #{preact_bottleneck.4} parent=0 // loop_header_branch
    %17 = sbr.rel (%p15) target = $region8
  $region5: #{preact_bottleneck.4} parent=0 // loop_body
    %s19 = ssub.s32 %s14, 1
    %s20 = ssub.s32 %s14, 2
    %s21 = sadd.s32 %s14, 1
    %s22 = ssub.s32 %s14, %s21
    %p23 = scmp.eq.s32.totalorder %s22, 0
    %s25 = sadd.s32 %s24, 1
    %s26 = scalar_select %p23, %s24, %s25
    %p29 = pneg %p23
    %p30 = scmp.eq.s32.totalorder %s14, 1
    %p31 = por %p29, %p30
    %p32 = scmp.ne.s32.totalorder %s24, %s27
    %p33 = scmp.eq.s32.totalorder %s14, 0
    %p34 = por %p32, %p33
    %p35 = scmp.ne.s32.totalorder %s24, %s27
    %p36 = scmp.eq.s32.totalorder %s19, 1
    %p37 = por %p35, %p36
    %p38 = scmp.ne.s32.totalorder %s27, %s28
    %p39 = scmp.eq.s32.totalorder %s19, 0
    %p40 = por %p38, %p39
    %p41 = scmp.ne.s32.totalorder %s27, %s28
    %p42 = scmp.eq.s32.totalorder %s20, 1
    %p43 = por %p41, %p42
    %p45 = scmp.ne.s32.totalorder %s28, %s44
    %p46 = scmp.eq.s32.totalorder %s20, 0
    %p47 = por %p45, %p46
    %s49 = sadd.s32 %s48, 1
    %p52 = scmp.eq.s32.totalorder %s14, 1
    %p53 = scmp.ne.s32.totalorder %s48, %s50
    %p54 = scmp.eq.s32.totalorder %s14, 0
    %p55 = por %p53, %p54
    %p56 = scmp.ne.s32.totalorder %s48, %s50
    %p57 = scmp.eq.s32.totalorder %s19, 1
    %p58 = por %p56, %p57
    %p59 = scmp.ne.s32.totalorder %s50, %s51
    %p60 = scmp.eq.s32.totalorder %s19, 0
    %p61 = por %p59, %p60
    %p62 = scmp.ne.s32.totalorder %s50, %s51
    %p63 = scmp.eq.s32.totalorder %s20, 1
    %p64 = por %p62, %p63
    %p66 = scmp.ne.s32.totalorder %s51, %s65
    %p67 = scmp.eq.s32.totalorder %s20, 0
    %p68 = por %p66, %p67
    %s70 = sadd.s32 %s69, 1
    %p73 = scmp.eq.s32.totalorder %s14, 1
    %p74 = scmp.ne.s32.totalorder %s69, %s71
    %p75 = scmp.eq.s32.totalorder %s14, 0
    %p76 = por %p74, %p75
    %p77 = scmp.ne.s32.totalorder %s69, %s71
    %p78 = scmp.eq.s32.totalorder %s19, 1
    %p79 = por %p77, %p78
    %p80 = scmp.ne.s32.totalorder %s71, %s72
    %p81 = scmp.eq.s32.totalorder %s19, 0
    %p82 = por %p80, %p81
    %p83 = scmp.ne.s32.totalorder %s71, %s72
    %p84 = scmp.eq.s32.totalorder %s20, 1
    %p85 = por %p83, %p84
    %p87 = scmp.ne.s32.totalorder %s72, %s86
    %p88 = scmp.eq.s32.totalorder %s20, 0
    %p89 = por %p87, %p88
    %s91 = sadd.s32 %s90, 1
    %p94 = scmp.eq.s32.totalorder %s14, 1
    %p95 = scmp.ne.s32.totalorder %s90, %s92
    %p96 = scmp.eq.s32.totalorder %s14, 0
    %p97 = por %p95, %p96
    %p98 = scmp.ne.s32.totalorder %s90, %s92
    %p99 = scmp.eq.s32.totalorder %s19, 1
    %p100 = por %p98, %p99
    %p101 = scmp.ne.s32.totalorder %s92, %s93
    %p102 = scmp.eq.s32.totalorder %s19, 0
    %p103 = por %p101, %p102
    %p104 = scmp.ne.s32.totalorder %s92, %s93
    %p105 = scmp.eq.s32.totalorder %s20, 1
    %p106 = por %p104, %p105
    %p108 = scmp.ne.s32.totalorder %s93, %s107
    %p109 = scmp.eq.s32.totalorder %s20, 0
    %p110 = por %p108, %p109
    %s112 = sadd.s32 %s111, 1
    %p115 = scmp.eq.s32.totalorder %s14, 1
    %p116 = scmp.ne.s32.totalorder %s111, %s113
    %p117 = scmp.eq.s32.totalorder %s14, 0
    %p118 = por %p116, %p117
    %p119 = scmp.ne.s32.totalorder %s111, %s113
    %p120 = scmp.eq.s32.totalorder %s19, 1
    %p121 = por %p119, %p120
    %p122 = scmp.ne.s32.totalorder %s113, %s114
    %p123 = scmp.eq.s32.totalorder %s19, 0
    %p124 = por %p122, %p123
    %p125 = scmp.ne.s32.totalorder %s113, %s114
    %p126 = scmp.eq.s32.totalorder %s20, 1
    %p127 = por %p125, %p126
    %p129 = scmp.ne.s32.totalorder %s114, %s128
    %p130 = scmp.eq.s32.totalorder %s20, 0
    %p131 = por %p129, %p130
    %s132 = ssub.s32 %s14, %s21
    %p133 = scmp.eq.s32.totalorder %s132, 0
    %s135 = sadd.s32 %s134, 1
    %s136 = scalar_select %p133, %s134, %s135
    %p139 = pneg %p133
    %p140 = scmp.eq.s32.totalorder %s14, 1
    %p141 = por %p139, %p140
    %p142 = scmp.ne.s32.totalorder %s134, %s137
    %p143 = scmp.eq.s32.totalorder %s14, 0
    %p144 = por %p142, %p143
    %p145 = scmp.ne.s32.totalorder %s134, %s137
    %p146 = scmp.eq.s32.totalorder %s19, 1
    %p147 = por %p145, %p146
    %p148 = scmp.ne.s32.totalorder %s137, %s138
    %p149 = scmp.eq.s32.totalorder %s19, 0
    %p150 = por %p148, %p149
    %p151 = scmp.ne.s32.totalorder %s137, %s138
    %p152 = scmp.eq.s32.totalorder %s20, 1
    %p153 = por %p151, %p152
    %p155 = scmp.ne.s32.totalorder %s138, %s154
    %p156 = scmp.eq.s32.totalorder %s20, 0
    %p157 = por %p155, %p156
    %s158 = ssub.s32 %s14, %s21
    %p159 = scmp.eq.s32.totalorder %s158, 0
    %s161 = sadd.s32 %s160, 1
    %s162 = scalar_select %p159, %s160, %s161
    %p165 = pneg %p159
    %p166 = scmp.eq.s32.totalorder %s14, 1
    %p167 = por %p165, %p166
    %p168 = scmp.ne.s32.totalorder %s160, %s163
    %p169 = scmp.eq.s32.totalorder %s14, 0
    %p170 = por %p168, %p169
    %p171 = scmp.ne.s32.totalorder %s160, %s163
    %p172 = scmp.eq.s32.totalorder %s19, 1
    %p173 = por %p171, %p172
    %p174 = scmp.ne.s32.totalorder %s163, %s164
    %p175 = scmp.eq.s32.totalorder %s19, 0
    %p176 = por %p174, %p175
    %p177 = scmp.ne.s32.totalorder %s163, %s164
    %p178 = scmp.eq.s32.totalorder %s20, 1
    %p179 = por %p177, %p178
    %p181 = scmp.ne.s32.totalorder %s164, %s180
    %p182 = scmp.eq.s32.totalorder %s20, 0
    %p183 = por %p181, %p182
    %p184 = scmp.le.s32.totalorder 1, %s14
    %p185 = scmp.lt.s32.totalorder %s14, 3
    %p186 = pnand %p184, %p185
    %p187 = pneg %p186
    // Predicated region
    $region9: #{preact_bottleneck.4} parent=5 // pred_check
      _
    $region10: #{preact_bottleneck.4} parent=5 // pred_check_branch
      %189 = sbr.rel (%p186) target = $region12
    $region11: #{preact_bottleneck.4} parent=5 // pred_region
      %s190 = ssub.s32 %s14, 1
      // Predicated region
      $region13: #{preact_bottleneck.4} parent=11 // pred_check
        %p191 = pneg %p61
      $region14: #{preact_bottleneck.4} parent=11 // pred_check_branch
        %193 = sbr.rel (%p191) target = $region16
      $region15: #{preact_bottleneck.4} parent=11 // pred_region
        _
      $region16: #{preact_bottleneck.4} parent=11 // pred_fallthru
        _
      // Predicated region
      $region17: #{preact_bottleneck.4} parent=11 // pred_check
        %p194 = pneg %p82
      $region18: #{preact_bottleneck.4} parent=11 // pred_check_branch
        %196 = sbr.rel (%p194) target = $region20
      $region19: #{preact_bottleneck.4} parent=11 // pred_region
        _
      $region20: #{preact_bottleneck.4} parent=11 // pred_fallthru
        _
      // Predicated region
      $region21: #{preact_bottleneck.4} parent=11 // pred_check
        %p197 = pneg %p103
      $region22: #{preact_bottleneck.4} parent=11 // pred_check_branch
        %199 = sbr.rel (%p197) target = $region24
      $region23: #{preact_bottleneck.4} parent=11 // pred_region
        _
      $region24: #{preact_bottleneck.4} parent=11 // pred_fallthru
        _
      // Predicated region
      $region25: #{preact_bottleneck.4} parent=11 // pred_check
        %p200 = pneg %p124
      $region26: #{preact_bottleneck.4} parent=11 // pred_check_branch
        %202 = sbr.rel (%p200) target = $region28
      $region27: #{preact_bottleneck.4} parent=11 // pred_region
        _
      $region28: #{preact_bottleneck.4} parent=11 // pred_fallthru
        _
    $region12: #{preact_bottleneck.4} parent=5 // pred_fallthru
      _
    %p203 = scmp.lt.s32.totalorder %s14, 2
    // Predicated region
    $region29: #{preact_bottleneck.4} parent=5 // pred_check
      %p204 = pneg %p203
    $region30: #{preact_bottleneck.4} parent=5 // pred_check_branch
      %206 = sbr.rel (%p204) target = $region32
    $region31: #{preact_bottleneck.4} parent=5 // pred_region
      // Predicated region
      $region33: #{preact_bottleneck.4} parent=31 // pred_check
        %p207 = pneg %p34
      $region34: #{preact_bottleneck.4} parent=31 // pred_check_branch
        %209 = sbr.rel (%p207) target = $region36
      $region35: #{preact_bottleneck.4} parent=31 // pred_region
        %p210 = scmp.lt.s32.totalorder %s14, 1
        %s211 = scalar_select %p210, %s14, 1
        %s212 = smul.addr %s211, 32
        %s213 = smul.addr %s212, 4
        %s214 = scalar_lea.vmem %s0, %s213
      $region36: #{preact_bottleneck.4} parent=31 // pred_fallthru
        _
    $region32: #{preact_bottleneck.4} parent=5 // pred_fallthru
      _
    %p215 = scmp.le.s32.totalorder 1, %s14
    %p216 = scmp.lt.s32.totalorder %s14, 3
    %p217 = pnand %p215, %p216
    %p218 = pneg %p217
    // Predicated region
    $region37: #{preact_bottleneck.4} parent=5 // pred_check
      _
    $region38: #{preact_bottleneck.4} parent=5 // pred_check_branch
      %220 = sbr.rel (%p217) target = $region40
    $region39: #{preact_bottleneck.4} parent=5 // pred_region
      %s221 = ssub.s32 %s14, 1
      %p222 = scmp.lt.s32.totalorder %s19, 1
      %s223 = scalar_select %p222, %s19, 1
      %s224 = smul.addr %s223, 32
      %s225 = smul.addr %s224, 4
      %s226 = scalar_lea.vmem %s0, %s225
      %p227 = pneg %p40
      %p228 = pneg %p37
      %p229 = pneg %p61
      %p230 = pneg %p58
      %p231 = pneg %p82
      %p232 = pneg %p79
      %p233 = pneg %p103
      %p234 = pneg %p100
      %p235 = pneg %p124
      %p236 = pneg %p121
      %p237 = pneg %p150
      %p238 = pneg %p147
      %p239 = scmp.lt.s32.totalorder %s19, 1
      %s240 = scalar_select %p239, %s19, 1
      %s241 = smul.addr %s240, 16
      %s242 = smul.addr %s241, 4
      %s243 = scalar_lea.vmem %s5, %s242
      %p244 = pneg %p176
      %p245 = pneg %p173
      %p246 = scmp.lt.s32.totalorder %s19, 1
      %s247 = scalar_select %p246, %s19, 1
      %s248 = smul.addr %s247, 2
      %s249 = scalar_lea.vmem %s6, %s248
      %p250 = scmp.lt.s32.totalorder %s19, 1
      %s251 = scalar_select %p250, %s19, 1
      %s252 = smul.addr %s251, 32
      %s253 = smul.addr %s252, 4
      %s254 = scalar_lea.vmem %s0, %s253
      %p255 = scmp.lt.s32.totalorder %s19, 1
      %s256 = scalar_select %p255, %s19, 1
      %s257 = smul.addr %s256, 16
      %s258 = smul.addr %s257, 4
      %s259 = scalar_lea.vmem %s5, %s258
      %p260 = scmp.lt.s32.totalorder %s19, 1
      %s261 = scalar_select %p260, %s19, 1
      %s262 = smul.addr %s261, 2
      %s263 = scalar_lea.vmem %s6, %s262
      %v265 = vld [vmem:[%s254] sm:$0xf]
      %v266 = vld [vmem:[%s254 + $0x4] sm:$0xf]
      %v267 = vld [vmem:[%s254 + $0x8] sm:$0xf]
      %v268 = vld [vmem:[%s254 + $0xc] sm:$0xf]
      %v269 = vld [vmem:[%s254 + $0x10] sm:$0xf]
      %v270 = vld [vmem:[%s254 + $0x14] sm:$0xf]
      %v271 = vld [vmem:[%s254 + $0x18] sm:$0xf]
      %v272 = vld [vmem:[%s254 + $0x1c] sm:$0xf]
      %v273 = vld [vmem:[%s254 + $0x20] sm:$0xf]
      %v274 = vld [vmem:[%s254 + $0x24] sm:$0xf]
      %v275 = vld [vmem:[%s254 + $0x28] sm:$0xf]
      %v276 = vld [vmem:[%s254 + $0x2c] sm:$0xf]
      %v277 = vld [vmem:[%s254 + $0x30] sm:$0xf]
      %v278 = vld [vmem:[%s254 + $0x34] sm:$0xf]
      %v279 = vld [vmem:[%s254 + $0x38] sm:$0xf]
      %v280 = vld [vmem:[%s254 + $0x3c] sm:$0xf]
      %v281 = vld [vmem:[%s254 + $0x40] sm:$0xf]
      %v282 = vld [vmem:[%s254 + $0x44] sm:$0xf]
      %v283 = vld [vmem:[%s254 + $0x48] sm:$0xf]
      %v284 = vld [vmem:[%s254 + $0x4c] sm:$0xf]
      %v285 = vld [vmem:[%s254 + $0x50] sm:$0xf]
      %v286 = vld [vmem:[%s254 + $0x54] sm:$0xf]
      %v287 = vld [vmem:[%s254 + $0x58] sm:$0xf]
      %v288 = vld [vmem:[%s254 + $0x5c] sm:$0xf]
      %v289 = vld [vmem:[%s254 + $0x60] sm:$0xf]
      %v290 = vld [vmem:[%s254 + $0x64] sm:$0xf]
      %v291 = vld [vmem:[%s254 + $0x68] sm:$0xf]
      %v292 = vld [vmem:[%s254 + $0x6c] sm:$0xf]
      %v293 = vld [vmem:[%s254 + $0x70] sm:$0xf]
      %v294 = vld [vmem:[%s254 + $0x74] sm:$0xf]
      %v295 = vld [vmem:[%s254 + $0x78] sm:$0xf]
      %v296 = vld [vmem:[%s254 + $0x7c] sm:$0xf]
      %v297 = vunpack.c.l.bf16 %v265
      %v298 = vunpack.c.l.bf16 %v266
      %v299 = vunpack.c.l.bf16 %v267
      %v300 = vunpack.c.l.bf16 %v268
      %v301 = vunpack.c.l.bf16 %v269
      %v302 = vunpack.c.l.bf16 %v270
      %v303 = vunpack.c.l.bf16 %v271
      %v304 = vunpack.c.l.bf16 %v272
      %v305 = vunpack.c.l.bf16 %v273
      %v306 = vunpack.c.l.bf16 %v274
      %v307 = vunpack.c.l.bf16 %v275
      %v308 = vunpack.c.l.bf16 %v276
      %v309 = vunpack.c.l.bf16 %v277
      %v310 = vunpack.c.l.bf16 %v278
      %v311 = vunpack.c.l.bf16 %v279
      %v312 = vunpack.c.l.bf16 %v280
      %v313 = vunpack.c.l.bf16 %v281
      %v314 = vunpack.c.l.bf16 %v282
      %v315 = vunpack.c.l.bf16 %v283
      %v316 = vunpack.c.l.bf16 %v284
      %v317 = vunpack.c.l.bf16 %v285
      %v318 = vunpack.c.l.bf16 %v286
      %v319 = vunpack.c.l.bf16 %v287
      %v320 = vunpack.c.l.bf16 %v288
      %v321 = vunpack.c.l.bf16 %v289
      %v322 = vunpack.c.l.bf16 %v290
      %v323 = vunpack.c.l.bf16 %v291
      %v324 = vunpack.c.l.bf16 %v292
      %v325 = vunpack.c.l.bf16 %v293
      %v326 = vunpack.c.l.bf16 %v294
      %v327 = vunpack.c.l.bf16 %v295
      %v328 = vunpack.c.l.bf16 %v296
      %v329 = vld [vmem:[%s1] sm:$0x1]
      %v330 = vld [vmem:[%s2] sm:$0x1]
      %s331 = sld [smem:[#allocation3]]
      %v333 = vlaneseq
      %v334 = vshrl.u32 %v333, 7
      %v335 = vsub.s32 0, %v334
      %v336 = vrot.slane %v329, %v335
      %v338 = vmul.f32 %v297, %v336
      %v339 = vmul.f32 %v298, %v336
      %v340 = vmul.f32 %v299, %v336
      %v341 = vmul.f32 %v300, %v336
      %v342 = vmul.f32 %v301, %v336
      %v343 = vmul.f32 %v302, %v336
      %v344 = vmul.f32 %v303, %v336
      %v345 = vmul.f32 %v304, %v336
      %v346 = vmul.f32 %v305, %v336
      %v347 = vmul.f32 %v306, %v336
      %v348 = vmul.f32 %v307, %v336
      %v349 = vmul.f32 %v308, %v336
      %v350 = vmul.f32 %v309, %v336
      %v351 = vmul.f32 %v310, %v336
      %v352 = vmul.f32 %v311, %v336
      %v353 = vmul.f32 %v312, %v336
      %v354 = vmul.f32 %v313, %v336
      %v355 = vmul.f32 %v314, %v336
      %v356 = vmul.f32 %v315, %v336
      %v357 = vmul.f32 %v316, %v336
      %v358 = vmul.f32 %v317, %v336
      %v359 = vmul.f32 %v318, %v336
      %v360 = vmul.f32 %v319, %v336
      %v361 = vmul.f32 %v320, %v336
      %v362 = vmul.f32 %v321, %v336
      %v363 = vmul.f32 %v322, %v336
      %v364 = vmul.f32 %v323, %v336
      %v365 = vmul.f32 %v324, %v336
      %v366 = vmul.f32 %v325, %v336
      %v367 = vmul.f32 %v326, %v336
      %v368 = vmul.f32 %v327, %v336
      %v369 = vmul.f32 %v328, %v336
      %v371 = vlaneseq
      %v372 = vshrl.u32 %v371, 7
      %v373 = vsub.s32 0, %v372
      %v374 = vrot.slane %v330, %v373
      %v376 = vadd.f32 %v338, %v374
      %v377 = vadd.f32 %v339, %v374
      %v378 = vadd.f32 %v340, %v374
      %v379 = vadd.f32 %v341, %v374
      %v380 = vadd.f32 %v342, %v374
      %v381 = vadd.f32 %v343, %v374
      %v382 = vadd.f32 %v344, %v374
      %v383 = vadd.f32 %v345, %v374
      %v384 = vadd.f32 %v346, %v374
      %v385 = vadd.f32 %v347, %v374
      %v386 = vadd.f32 %v348, %v374
      %v387 = vadd.f32 %v349, %v374
      %v388 = vadd.f32 %v350, %v374
      %v389 = vadd.f32 %v351, %v374
      %v390 = vadd.f32 %v352, %v374
      %v391 = vadd.f32 %v353, %v374
      %v392 = vadd.f32 %v354, %v374
      %v393 = vadd.f32 %v355, %v374
      %v394 = vadd.f32 %v356, %v374
      %v395 = vadd.f32 %v357, %v374
      %v396 = vadd.f32 %v358, %v374
      %v397 = vadd.f32 %v359, %v374
      %v398 = vadd.f32 %v360, %v374
      %v399 = vadd.f32 %v361, %v374
      %v400 = vadd.f32 %v362, %v374
      %v401 = vadd.f32 %v363, %v374
      %v402 = vadd.f32 %v364, %v374
      %v403 = vadd.f32 %v365, %v374
      %v404 = vadd.f32 %v366, %v374
      %v405 = vadd.f32 %v367, %v374
      %v406 = vadd.f32 %v368, %v374
      %v407 = vadd.f32 %v369, %v374
      %vm408 = vcmp.ge.f32.partialorder %v376, 0.0
      %vm409 = vcmp.ge.f32.partialorder %v377, 0.0
      %vm410 = vcmp.ge.f32.partialorder %v378, 0.0
      %vm411 = vcmp.ge.f32.partialorder %v379, 0.0
      %vm412 = vcmp.ge.f32.partialorder %v380, 0.0
      %vm413 = vcmp.ge.f32.partialorder %v381, 0.0
      %vm414 = vcmp.ge.f32.partialorder %v382, 0.0
      %vm415 = vcmp.ge.f32.partialorder %v383, 0.0
      %vm416 = vcmp.ge.f32.partialorder %v384, 0.0
      %vm417 = vcmp.ge.f32.partialorder %v385, 0.0
      %vm418 = vcmp.ge.f32.partialorder %v386, 0.0
      %vm419 = vcmp.ge.f32.partialorder %v387, 0.0
      %vm420 = vcmp.ge.f32.partialorder %v388, 0.0
      %vm421 = vcmp.ge.f32.partialorder %v389, 0.0
      %vm422 = vcmp.ge.f32.partialorder %v390, 0.0
      %vm423 = vcmp.ge.f32.partialorder %v391, 0.0
      %vm424 = vcmp.ge.f32.partialorder %v392, 0.0
      %vm425 = vcmp.ge.f32.partialorder %v393, 0.0
      %vm426 = vcmp.ge.f32.partialorder %v394, 0.0
      %vm427 = vcmp.ge.f32.partialorder %v395, 0.0
      %vm428 = vcmp.ge.f32.partialorder %v396, 0.0
      %vm429 = vcmp.ge.f32.partialorder %v397, 0.0
      %vm430 = vcmp.ge.f32.partialorder %v398, 0.0
      %vm431 = vcmp.ge.f32.partialorder %v399, 0.0
      %vm432 = vcmp.ge.f32.partialorder %v400, 0.0
      %vm433 = vcmp.ge.f32.partialorder %v401, 0.0
      %vm434 = vcmp.ge.f32.partialorder %v402, 0.0
      %vm435 = vcmp.ge.f32.partialorder %v403, 0.0
      %vm436 = vcmp.ge.f32.partialorder %v404, 0.0
      %vm437 = vcmp.ge.f32.partialorder %v405, 0.0
      %vm438 = vcmp.ge.f32.partialorder %v406, 0.0
      %vm439 = vcmp.ge.f32.partialorder %v407, 0.0
      %v440 = vstv %s331
      %v441 = vmul.f32 %v440, %v376
      %v442 = vmul.f32 %v440, %v377
      %v443 = vmul.f32 %v440, %v378
      %v444 = vmul.f32 %v440, %v379
      %v445 = vmul.f32 %v440, %v380
      %v446 = vmul.f32 %v440, %v381
      %v447 = vmul.f32 %v440, %v382
      %v448 = vmul.f32 %v440, %v383
      %v449 = vmul.f32 %v440, %v384
      %v450 = vmul.f32 %v440, %v385
      %v451 = vmul.f32 %v440, %v386
      %v452 = vmul.f32 %v440, %v387
      %v453 = vmul.f32 %v440, %v388
      %v454 = vmul.f32 %v440, %v389
      %v455 = vmul.f32 %v440, %v390
      %v456 = vmul.f32 %v440, %v391
      %v457 = vmul.f32 %v440, %v392
      %v458 = vmul.f32 %v440, %v393
      %v459 = vmul.f32 %v440, %v394
      %v460 = vmul.f32 %v440, %v395
      %v461 = vmul.f32 %v440, %v396
      %v462 = vmul.f32 %v440, %v397
      %v463 = vmul.f32 %v440, %v398
      %v464 = vmul.f32 %v440, %v399
      %v465 = vmul.f32 %v440, %v400
      %v466 = vmul.f32 %v440, %v401
      %v467 = vmul.f32 %v440, %v402
      %v468 = vmul.f32 %v440, %v403
      %v469 = vmul.f32 %v440, %v404
      %v470 = vmul.f32 %v440, %v405
      %v471 = vmul.f32 %v440, %v406
      %v472 = vmul.f32 %v440, %v407
      %v473 = vsel %vm408, %v376, %v441
      %v474 = vsel %vm409, %v377, %v442
      %v475 = vsel %vm410, %v378, %v443
      %v476 = vsel %vm411, %v379, %v444
      %v477 = vsel %vm412, %v380, %v445
      %v478 = vsel %vm413, %v381, %v446
      %v479 = vsel %vm414, %v382, %v447
      %v480 = vsel %vm415, %v383, %v448
      %v481 = vsel %vm416, %v384, %v449
      %v482 = vsel %vm417, %v385, %v450
      %v483 = vsel %vm418, %v386, %v451
      %v484 = vsel %vm419, %v387, %v452
      %v485 = vsel %vm420, %v388, %v453
      %v486 = vsel %vm421, %v389, %v454
      %v487 = vsel %vm422, %v390, %v455
      %v488 = vsel %vm423, %v391, %v456
      %v489 = vsel %vm424, %v392, %v457
      %v490 = vsel %vm425, %v393, %v458
      %v491 = vsel %vm426, %v394, %v459
      %v492 = vsel %vm427, %v395, %v460
      %v493 = vsel %vm428, %v396, %v461
      %v494 = vsel %vm429, %v397, %v462
      %v495 = vsel %vm430, %v398, %v463
      %v496 = vsel %vm431, %v399, %v464
      %v497 = vsel %vm432, %v400, %v465
      %v498 = vsel %vm433, %v401, %v466
      %v499 = vsel %vm434, %v402, %v467
      %v500 = vsel %vm435, %v403, %v468
      %v501 = vsel %vm436, %v404, %v469
      %v502 = vsel %vm437, %v405, %v470
      %v503 = vsel %vm438, %v406, %v471
      %v504 = vsel %vm439, %v407, %v472
      %vm505 = vcmask 31744
      %506 = vst.msk [vmem:[#allocation2] sm:$0xff] %vm505, 0.0
      %507 = vst.msk [vmem:[#allocation2 + $0x8] sm:$0xff] %vm505, 0.0
      %508 = vst.msk [vmem:[#allocation2 + $0x10] sm:$0xff] %vm505, 0.0
      %509 = vst.msk [vmem:[#allocation2 + $0x18] sm:$0xff] %vm505, 0.0
      %510 = vst.msk [vmem:[#allocation2 + $0x20] sm:$0xff] %vm505, 0.0
      %511 = vst.msk [vmem:[#allocation2 + $0x28] sm:$0xff] %vm505, 0.0
      %512 = vst.msk [vmem:[#allocation2 + $0x30] sm:$0xff] %vm505, 0.0
      %513 = vst.msk [vmem:[#allocation2 + $0x38] sm:$0xff] %vm505, 0.0
      %514 = vst.msk [vmem:[#allocation2 + $0x40] sm:$0xff] %vm505, 0.0
      %515 = vst.msk [vmem:[#allocation2 + $0x48] sm:$0xff] %vm505, 0.0
      %516 = vst.msk [vmem:[#allocation2 + $0x50] sm:$0xff] %vm505, 0.0
      %517 = vst.msk [vmem:[#allocation2 + $0x58] sm:$0xff] %vm505, 0.0
      %518 = vst.msk [vmem:[#allocation2 + $0x60] sm:$0xff] %vm505, 0.0
      %519 = vst.msk [vmem:[#allocation2 + $0x68] sm:$0xff] %vm505, 0.0
      %520 = vst.msk [vmem:[#allocation2 + $0x70] sm:$0xff] %vm505, 0.0
      %521 = vst.msk [vmem:[#allocation2 + $0x78] sm:$0xff] %vm505, 0.0
      %522 = vst.msk [vmem:[#allocation2 + $0x80] sm:$0xff] %vm505, 0.0
      %523 = vst.msk [vmem:[#allocation2 + $0x88] sm:$0xff] %vm505, 0.0
      %524 = vst.msk [vmem:[#allocation2 + $0x90] sm:$0xff] %vm505, 0.0
      %525 = vst.msk [vmem:[#allocation2 + $0x98] sm:$0xff] %vm505, 0.0
      %526 = vst.msk [vmem:[#allocation2 + $0xa0] sm:$0xff] %vm505, 0.0
      %527 = vst.msk [vmem:[#allocation2 + $0xa8] sm:$0xff] %vm505, 0.0
      %528 = vst.msk [vmem:[#allocation2 + $0xb0] sm:$0xff] %vm505, 0.0
      %529 = vst.msk [vmem:[#allocation2 + $0xb8] sm:$0xff] %vm505, 0.0
      %530 = vst.msk [vmem:[#allocation2 + $0xc0] sm:$0xff] %vm505, 0.0
      %531 = vst.msk [vmem:[#allocation2 + $0xc8] sm:$0xff] %vm505, 0.0
      %532 = vst.msk [vmem:[#allocation2 + $0xd0] sm:$0xff] %vm505, 0.0
      %533 = vst.msk [vmem:[#allocation2 + $0xd8] sm:$0xff] %vm505, 0.0
      %534 = vst.msk [vmem:[#allocation2 + $0xe0] sm:$0xff] %vm505, 0.0
      %535 = vst.msk [vmem:[#allocation2 + $0xe8] sm:$0xff] %vm505, 0.0
      %536 = vst.msk [vmem:[#allocation2 + $0xf0] sm:$0xff] %vm505, 0.0
      %537 = vst.msk [vmem:[#allocation2 + $0xf8] sm:$0xff] %vm505, 0.0
      %538 = vst.msk [vmem:[#allocation2 + $0x100] sm:$0xff] %vm505, 0.0
      %539 = vst.msk [vmem:[#allocation2 + $0x108] sm:$0xff] %vm505, 0.0
      %540 = vst.msk [vmem:[#allocation2 + $0x110] sm:$0xff] %vm505, 0.0
      %541 = vst.msk [vmem:[#allocation2 + $0x118] sm:$0xff] %vm505, 0.0
      %542 = vst.msk [vmem:[#allocation2 + $0x120] sm:$0xff] %vm505, 0.0
      %543 = vst.msk [vmem:[#allocation2 + $0x128] sm:$0xff] %vm505, 0.0
      %544 = vst.msk [vmem:[#allocation2 + $0x130] sm:$0xff] %vm505, 0.0
      %545 = vst.msk [vmem:[#allocation2 + $0x138] sm:$0xff] %vm505, 0.0
      %546 = vst.msk [vmem:[#allocation2 + $0x140] sm:$0xff] %vm505, 0.0
      %547 = vst.msk [vmem:[#allocation2 + $0x148] sm:$0xff] %vm505, 0.0
      %548 = vst.msk [vmem:[#allocation2 + $0x150] sm:$0xff] %vm505, 0.0
      %549 = vst.msk [vmem:[#allocation2 + $0x158] sm:$0xff] %vm505, 0.0
      %550 = vst.msk [vmem:[#allocation2 + $0x160] sm:$0xff] %vm505, 0.0
      %551 = vst.msk [vmem:[#allocation2 + $0x168] sm:$0xff] %vm505, 0.0
      %552 = vst.msk [vmem:[#allocation2 + $0x170] sm:$0xff] %vm505, 0.0
      %553 = vst.msk [vmem:[#allocation2 + $0x178] sm:$0xff] %vm505, 0.0
      %554 = vst.msk [vmem:[#allocation2 + $0x180] sm:$0xff] %vm505, 0.0
      %555 = vst.msk [vmem:[#allocation2 + $0x188] sm:$0xff] %vm505, 0.0
      %556 = vst.msk [vmem:[#allocation2 + $0x190] sm:$0xff] %vm505, 0.0
      %557 = vst.msk [vmem:[#allocation2 + $0x198] sm:$0xff] %vm505, 0.0
      %558 = vst.msk [vmem:[#allocation2 + $0x1a0] sm:$0xff] %vm505, 0.0
      %559 = vst.msk [vmem:[#allocation2 + $0x1a8] sm:$0xff] %vm505, 0.0
      %560 = vst.msk [vmem:[#allocation2 + $0x1b0] sm:$0xff] %vm505, 0.0
      %561 = vst.msk [vmem:[#allocation2 + $0x1b8] sm:$0xff] %vm505, 0.0
      %562 = vst.msk [vmem:[#allocation2 + $0x1c0] sm:$0xff] %vm505, 0.0
      %563 = vst.msk [vmem:[#allocation2 + $0x1c8] sm:$0xff] %vm505, 0.0
      %564 = vst.msk [vmem:[#allocation2 + $0x1d0] sm:$0xff] %vm505, 0.0
      %565 = vst.msk [vmem:[#allocation2 + $0x1d8] sm:$0xff] %vm505, 0.0
      %566 = vst.msk [vmem:[#allocation2 + $0x1e0] sm:$0xff] %vm505, 0.0
      %567 = vst.msk [vmem:[#allocation2 + $0x1e8] sm:$0xff] %vm505, 0.0
      %568 = vst.msk [vmem:[#allocation2 + $0x1f0] sm:$0xff] %vm505, 0.0
      %569 = vst.msk [vmem:[#allocation2 + $0x1f8] sm:$0xff] %vm505, 0.0
      %570 = vst.msk [vmem:[#allocation2 + $0x200] sm:$0xff] %vm505, 0.0
      %571 = vst.msk [vmem:[#allocation2 + $0x208] sm:$0xff] %vm505, 0.0
      %572 = vst.msk [vmem:[#allocation2 + $0x210] sm:$0xff] %vm505, 0.0
      %573 = vst.msk [vmem:[#allocation2 + $0x218] sm:$0xff] %vm505, 0.0
      %574 = vst.msk [vmem:[#allocation2 + $0x220] sm:$0xff] %vm505, 0.0
      %575 = vst.msk [vmem:[#allocation2 + $0x228] sm:$0xff] %vm505, 0.0
      %576 = vst.msk [vmem:[#allocation2 + $0x230] sm:$0xff] %vm505, 0.0
      %577 = vst.msk [vmem:[#allocation2 + $0x238] sm:$0xff] %vm505, 0.0
      %s578 = scalar_lea.vmem [#allocation2], 32
      %579 = vst.msk [vmem:[%s578 + $0x8] sm:$0xff] %vm505, %v473
      %580 = vst.msk [vmem:[%s578 + $0x10] sm:$0xff] %vm505, %v474
      %581 = vst.msk [vmem:[%s578 + $0x28] sm:$0xff] %vm505, %v475
      %582 = vst.msk [vmem:[%s578 + $0x30] sm:$0xff] %vm505, %v476
      %583 = vst.msk [vmem:[%s578 + $0x48] sm:$0xff] %vm505, %v477
      %584 = vst.msk [vmem:[%s578 + $0x50] sm:$0xff] %vm505, %v478
      %585 = vst.msk [vmem:[%s578 + $0x68] sm:$0xff] %vm505, %v479
      %586 = vst.msk [vmem:[%s578 + $0x70] sm:$0xff] %vm505, %v480
      %587 = vst.msk [vmem:[%s578 + $0x88] sm:$0xff] %vm505, %v481
      %588 = vst.msk [vmem:[%s578 + $0x90] sm:$0xff] %vm505, %v482
      %589 = vst.msk [vmem:[%s578 + $0xa8] sm:$0xff] %vm505, %v483
      %590 = vst.msk [vmem:[%s578 + $0xb0] sm:$0xff] %vm505, %v484
      %591 = vst.msk [vmem:[%s578 + $0xc8] sm:$0xff] %vm505, %v485
      %592 = vst.msk [vmem:[%s578 + $0xd0] sm:$0xff] %vm505, %v486
      %593 = vst.msk [vmem:[%s578 + $0xe8] sm:$0xff] %vm505, %v487
      %594 = vst.msk [vmem:[%s578 + $0xf0] sm:$0xff] %vm505, %v488
      %595 = vst.msk [vmem:[%s578 + $0x108] sm:$0xff] %vm505, %v489
      %596 = vst.msk [vmem:[%s578 + $0x110] sm:$0xff] %vm505, %v490
      %597 = vst.msk [vmem:[%s578 + $0x128] sm:$0xff] %vm505, %v491
      %598 = vst.msk [vmem:[%s578 + $0x130] sm:$0xff] %vm505, %v492
      %599 = vst.msk [vmem:[%s578 + $0x148] sm:$0xff] %vm505, %v493
      %600 = vst.msk [vmem:[%s578 + $0x150] sm:$0xff] %vm505, %v494
      %601 = vst.msk [vmem:[%s578 + $0x168] sm:$0xff] %vm505, %v495
      %602 = vst.msk [vmem:[%s578 + $0x170] sm:$0xff] %vm505, %v496
      %603 = vst.msk [vmem:[%s578 + $0x188] sm:$0xff] %vm505, %v497
      %604 = vst.msk [vmem:[%s578 + $0x190] sm:$0xff] %vm505, %v498
      %605 = vst.msk [vmem:[%s578 + $0x1a8] sm:$0xff] %vm505, %v499
      %606 = vst.msk [vmem:[%s578 + $0x1b0] sm:$0xff] %vm505, %v500
      %607 = vst.msk [vmem:[%s578 + $0x1c8] sm:$0xff] %vm505, %v501
      %608 = vst.msk [vmem:[%s578 + $0x1d0] sm:$0xff] %vm505, %v502
      %609 = vst.msk [vmem:[%s578 + $0x1e8] sm:$0xff] %vm505, %v503
      %610 = vst.msk [vmem:[%s578 + $0x1f0] sm:$0xff] %vm505, %v504
      %v611 = vld [vmem:[#allocation2] sm:$0xff]
      %v612 = vld [vmem:[#allocation2 + $0x8] sm:$0xff]
      %v613 = vld [vmem:[#allocation2 + $0x10] sm:$0xff]
      %v614 = vld [vmem:[#allocation2 + $0x18] sm:$0xff]
      %v615 = vld [vmem:[#allocation2 + $0x20] sm:$0xff]
      %v616 = vld [vmem:[#allocation2 + $0x28] sm:$0xff]
      %v617 = vld [vmem:[#allocation2 + $0x30] sm:$0xff]
      %v618 = vld [vmem:[#allocation2 + $0x38] sm:$0xff]
      %v619 = vld [vmem:[#allocation2 + $0x40] sm:$0xff]
      %v620 = vld [vmem:[#allocation2 + $0x48] sm:$0xff]
      %v621 = vld [vmem:[#allocation2 + $0x50] sm:$0xff]
      %v622 = vld [vmem:[#allocation2 + $0x58] sm:$0xff]
      %v623 = vld [vmem:[#allocation2 + $0x60] sm:$0xff]
      %v624 = vld [vmem:[#allocation2 + $0x68] sm:$0xff]
      %v625 = vld [vmem:[#allocation2 + $0x70] sm:$0xff]
      %v626 = vld [vmem:[#allocation2 + $0x78] sm:$0xff]
      %v627 = vld [vmem:[#allocation2 + $0x80] sm:$0xff]
      %v628 = vld [vmem:[#allocation2 + $0x88] sm:$0xff]
      %v629 = vld [vmem:[#allocation2 + $0x90] sm:$0xff]
      %v630 = vld [vmem:[#allocation2 + $0x98] sm:$0xff]
      %v631 = vld [vmem:[#allocation2 + $0xa0] sm:$0xff]
      %v632 = vld [vmem:[#allocation2 + $0xa8] sm:$0xff]
      %v633 = vld [vmem:[#allocation2 + $0xb0] sm:$0xff]
      %v634 = vld [vmem:[#allocation2 + $0xb8] sm:$0xff]
      %v635 = vld [vmem:[#allocation2 + $0xc0] sm:$0xff]
      %v636 = vld [vmem:[#allocation2 + $0xc8] sm:$0xff]
      %v637 = vld [vmem:[#allocation2 + $0xd0] sm:$0xff]
      %v638 = vld [vmem:[#allocation2 + $0xd8] sm:$0xff]
      %v639 = vld [vmem:[#allocation2 + $0xe0] sm:$0xff]
      %v640 = vld [vmem:[#allocation2 + $0xe8] sm:$0xff]
      %v641 = vld [vmem:[#allocation2 + $0xf0] sm:$0xff]
      %v642 = vld [vmem:[#allocation2 + $0xf8] sm:$0xff]
      %v643 = vld [vmem:[#allocation2 + $0x100] sm:$0xff]
      %v644 = vld [vmem:[#allocation2 + $0x108] sm:$0xff]
      %v645 = vld [vmem:[#allocation2 + $0x110] sm:$0xff]
      %v646 = vld [vmem:[#allocation2 + $0x118] sm:$0xff]
      %v647 = vld [vmem:[#allocation2 + $0x120] sm:$0xff]
      %v648 = vld [vmem:[#allocation2 + $0x128] sm:$0xff]
      %v649 = vld [vmem:[#allocation2 + $0x130] sm:$0xff]
      %v650 = vld [vmem:[#allocation2 + $0x138] sm:$0xff]
      %v651 = vld [vmem:[#allocation2 + $0x140] sm:$0xff]
      %v652 = vld [vmem:[#allocation2 + $0x148] sm:$0xff]
      %v653 = vld [vmem:[#allocation2 + $0x150] sm:$0xff]
      %v654 = vld [vmem:[#allocation2 + $0x158] sm:$0xff]
      %v655 = vld [vmem:[#allocation2 + $0x160] sm:$0xff]
      %v656 = vld [vmem:[#allocation2 + $0x168] sm:$0xff]
      %v657 = vld [vmem:[#allocation2 + $0x170] sm:$0xff]
      %v658 = vld [vmem:[#allocation2 + $0x178] sm:$0xff]
      %v659 = vld [vmem:[#allocation2 + $0x180] sm:$0xff]
      %v660 = vld [vmem:[#allocation2 + $0x188] sm:$0xff]
      %v661 = vld [vmem:[#allocation2 + $0x190] sm:$0xff]
      %v662 = vld [vmem:[#allocation2 + $0x198] sm:$0xff]
      %v663 = vld [vmem:[#allocation2 + $0x1a0] sm:$0xff]
      %v664 = vld [vmem:[#allocation2 + $0x1a8] sm:$0xff]
      %v665 = vld [vmem:[#allocation2 + $0x1b0] sm:$0xff]
      %v666 = vld [vmem:[#allocation2 + $0x1b8] sm:$0xff]
      %v667 = vld [vmem:[#allocation2 + $0x1c0] sm:$0xff]
      %v668 = vld [vmem:[#allocation2 + $0x1c8] sm:$0xff]
      %v669 = vld [vmem:[#allocation2 + $0x1d0] sm:$0xff]
      %v670 = vld [vmem:[#allocation2 + $0x1d8] sm:$0xff]
      %v671 = vld [vmem:[#allocation2 + $0x1e0] sm:$0xff]
      %v672 = vld [vmem:[#allocation2 + $0x1e8] sm:$0xff]
      %v673 = vld [vmem:[#allocation2 + $0x1f0] sm:$0xff]
      %v674 = vld [vmem:[#allocation2 + $0x1f8] sm:$0xff]
      %vm707 = vcmask 1046528
      %v708 = vrot.slane %v612, 1
      %v709 = vrot.slane %v613, 1
      %v710 = vsel %vm707, %v708, %v709
      %v711 = vrot.slane %v616, 1
      %v712 = vrot.slane %v617, 1
      %v713 = vsel %vm707, %v711, %v712
      %v714 = vrot.slane %v620, 1
      %v715 = vrot.slane %v621, 1
      %v716 = vsel %vm707, %v714, %v715
      %v717 = vrot.slane %v624, 1
      %v718 = vrot.slane %v625, 1
      %v719 = vsel %vm707, %v717, %v718
      %v720 = vrot.slane %v628, 1
      %v721 = vrot.slane %v629, 1
      %v722 = vsel %vm707, %v720, %v721
      %v723 = vrot.slane %v632, 1
      %v724 = vrot.slane %v633, 1
      %v725 = vsel %vm707, %v723, %v724
      %v726 = vrot.slane %v636, 1
      %v727 = vrot.slane %v637, 1
      %v728 = vsel %vm707, %v726, %v727
      %v729 = vrot.slane %v640, 1
      %v730 = vrot.slane %v641, 1
      %v731 = vsel %vm707, %v729, %v730
      %v732 = vrot.slane %v644, 1
      %v733 = vrot.slane %v645, 1
      %v734 = vsel %vm707, %v732, %v733
      %v735 = vrot.slane %v648, 1
      %v736 = vrot.slane %v649, 1
      %v737 = vsel %vm707, %v735, %v736
      %v738 = vrot.slane %v652, 1
      %v739 = vrot.slane %v653, 1
      %v740 = vsel %vm707, %v738, %v739
      %v741 = vrot.slane %v656, 1
      %v742 = vrot.slane %v657, 1
      %v743 = vsel %vm707, %v741, %v742
      %v744 = vrot.slane %v660, 1
      %v745 = vrot.slane %v661, 1
      %v746 = vsel %vm707, %v744, %v745
      %v747 = vrot.slane %v664, 1
      %v748 = vrot.slane %v665, 1
      %v749 = vsel %vm707, %v747, %v748
      %v750 = vrot.slane %v668, 1
      %v751 = vrot.slane %v669, 1
      %v752 = vsel %vm707, %v750, %v751
      %v753 = vrot.slane %v672, 1
      %v754 = vrot.slane %v673, 1
      %v755 = vsel %vm707, %v753, %v754
      %756 = vrot.lane.b32.xlu0 %v708, 4
      %v757 = vpop.permute.xlu0 %756
      %758 = vrot.lane.b32.xlu0 %v710, 4
      %v759 = vpop.permute.xlu0 %758
      %760 = vrot.lane.b32.xlu0 %v709, 4
      %v761 = vpop.permute.xlu0 %760
      %762 = vrot.lane.b32.xlu0 %v711, 4
      %v763 = vpop.permute.xlu0 %762
      %764 = vrot.lane.b32.xlu0 %v713, 4
      %v765 = vpop.permute.xlu0 %764
      %766 = vrot.lane.b32.xlu0 %v712, 4
      %v767 = vpop.permute.xlu0 %766
      %768 = vrot.lane.b32.xlu0 %v714, 4
      %v769 = vpop.permute.xlu0 %768
      %770 = vrot.lane.b32.xlu0 %v716, 4
      %v771 = vpop.permute.xlu0 %770
      %772 = vrot.lane.b32.xlu0 %v715, 4
      %v773 = vpop.permute.xlu0 %772
      %774 = vrot.lane.b32.xlu0 %v717, 4
      %v775 = vpop.permute.xlu0 %774
      %776 = vrot.lane.b32.xlu0 %v719, 4
      %v777 = vpop.permute.xlu0 %776
      %778 = vrot.lane.b32.xlu0 %v718, 4
      %v779 = vpop.permute.xlu0 %778
      %780 = vrot.lane.b32.xlu0 %v720, 4
      %v781 = vpop.permute.xlu0 %780
      %782 = vrot.lane.b32.xlu0 %v722, 4
      %v783 = vpop.permute.xlu0 %782
      %784 = vrot.lane.b32.xlu0 %v721, 4
      %v785 = vpop.permute.xlu0 %784
      %786 = vrot.lane.b32.xlu0 %v723, 4
      %v787 = vpop.permute.xlu0 %786
      %788 = vrot.lane.b32.xlu0 %v725, 4
      %v789 = vpop.permute.xlu0 %788
      %790 = vrot.lane.b32.xlu0 %v724, 4
      %v791 = vpop.permute.xlu0 %790
      %792 = vrot.lane.b32.xlu0 %v726, 4
      %v793 = vpop.permute.xlu0 %792
      %794 = vrot.lane.b32.xlu0 %v728, 4
      %v795 = vpop.permute.xlu0 %794
      %796 = vrot.lane.b32.xlu0 %v727, 4
      %v797 = vpop.permute.xlu0 %796
      %798 = vrot.lane.b32.xlu0 %v729, 4
      %v799 = vpop.permute.xlu0 %798
      %800 = vrot.lane.b32.xlu0 %v731, 4
      %v801 = vpop.permute.xlu0 %800
      %802 = vrot.lane.b32.xlu0 %v730, 4
      %v803 = vpop.permute.xlu0 %802
      %804 = vrot.lane.b32.xlu0 %v732, 4
      %v805 = vpop.permute.xlu0 %804
      %806 = vrot.lane.b32.xlu0 %v734, 4
      %v807 = vpop.permute.xlu0 %806
      %808 = vrot.lane.b32.xlu0 %v733, 4
      %v809 = vpop.permute.xlu0 %808
      %810 = vrot.lane.b32.xlu0 %v735, 4
      %v811 = vpop.permute.xlu0 %810
      %812 = vrot.lane.b32.xlu0 %v737, 4
      %v813 = vpop.permute.xlu0 %812
      %814 = vrot.lane.b32.xlu0 %v736, 4
      %v815 = vpop.permute.xlu0 %814
      %816 = vrot.lane.b32.xlu0 %v738, 4
      %v817 = vpop.permute.xlu0 %816
      %818 = vrot.lane.b32.xlu0 %v740, 4
      %v819 = vpop.permute.xlu0 %818
      %820 = vrot.lane.b32.xlu0 %v739, 4
      %v821 = vpop.permute.xlu0 %820
      %822 = vrot.lane.b32.xlu0 %v741, 4
      %v823 = vpop.permute.xlu0 %822
      %824 = vrot.lane.b32.xlu0 %v743, 4
      %v825 = vpop.permute.xlu0 %824
      %826 = vrot.lane.b32.xlu0 %v742, 4
      %v827 = vpop.permute.xlu0 %826
      %828 = vrot.lane.b32.xlu0 %v744, 4
      %v829 = vpop.permute.xlu0 %828
      %830 = vrot.lane.b32.xlu0 %v746, 4
      %v831 = vpop.permute.xlu0 %830
      %832 = vrot.lane.b32.xlu0 %v745, 4
      %v833 = vpop.permute.xlu0 %832
      %834 = vrot.lane.b32.xlu0 %v747, 4
      %v835 = vpop.permute.xlu0 %834
      %836 = vrot.lane.b32.xlu0 %v749, 4
      %v837 = vpop.permute.xlu0 %836
      %838 = vrot.lane.b32.xlu0 %v748, 4
      %v839 = vpop.permute.xlu0 %838
      %840 = vrot.lane.b32.xlu0 %v750, 4
      %v841 = vpop.permute.xlu0 %840
      %842 = vrot.lane.b32.xlu0 %v752, 4
      %v843 = vpop.permute.xlu0 %842
      %844 = vrot.lane.b32.xlu0 %v751, 4
      %v845 = vpop.permute.xlu0 %844
      %846 = vrot.lane.b32.xlu0 %v753, 4
      %v847 = vpop.permute.xlu0 %846
      %848 = vrot.lane.b32.xlu0 %v755, 4
      %v849 = vpop.permute.xlu0 %848
      %850 = vrot.lane.b32.xlu0 %v754, 4
      %v851 = vpop.permute.xlu0 %850
      %vm916 = vcmask 1045504
      %v917 = vrot.slane %v612, 2
      %v918 = vrot.slane %v613, 2
      %v919 = vsel %vm916, %v917, %v918
      %v920 = vrot.slane %v614, 2
      %v921 = vsel %vm916, %v918, %v920
      %v922 = vrot.slane %v616, 2
      %v923 = vrot.slane %v617, 2
      %v924 = vsel %vm916, %v922, %v923
      %v925 = vrot.slane %v618, 2
      %v926 = vsel %vm916, %v923, %v925
      %v927 = vrot.slane %v620, 2
      %v928 = vrot.slane %v621, 2
      %v929 = vsel %vm916, %v927, %v928
      %v930 = vrot.slane %v622, 2
      %v931 = vsel %vm916, %v928, %v930
      %v932 = vrot.slane %v624, 2
      %v933 = vrot.slane %v625, 2
      %v934 = vsel %vm916, %v932, %v933
      %v935 = vrot.slane %v626, 2
      %v936 = vsel %vm916, %v933, %v935
      %v937 = vrot.slane %v628, 2
      %v938 = vrot.slane %v629, 2
      %v939 = vsel %vm916, %v937, %v938
      %v940 = vrot.slane %v630, 2
      %v941 = vsel %vm916, %v938, %v940
      %v942 = vrot.slane %v632, 2
      %v943 = vrot.slane %v633, 2
      %v944 = vsel %vm916, %v942, %v943
      %v945 = vrot.slane %v634, 2
      %v946 = vsel %vm916, %v943, %v945
      %v947 = vrot.slane %v636, 2
      %v948 = vrot.slane %v637, 2
      %v949 = vsel %vm916, %v947, %v948
      %v950 = vrot.slane %v638, 2
      %v951 = vsel %vm916, %v948, %v950
      %v952 = vrot.slane %v640, 2
      %v953 = vrot.slane %v641, 2
      %v954 = vsel %vm916, %v952, %v953
      %v955 = vrot.slane %v642, 2
      %v956 = vsel %vm916, %v953, %v955
      %v957 = vrot.slane %v644, 2
      %v958 = vrot.slane %v645, 2
      %v959 = vsel %vm916, %v957, %v958
      %v960 = vrot.slane %v646, 2
      %v961 = vsel %vm916, %v958, %v960
      %v962 = vrot.slane %v648, 2
      %v963 = vrot.slane %v649, 2
      %v964 = vsel %vm916, %v962, %v963
      %v965 = vrot.slane %v650, 2
      %v966 = vsel %vm916, %v963, %v965
      %v967 = vrot.slane %v652, 2
      %v968 = vrot.slane %v653, 2
      %v969 = vsel %vm916, %v967, %v968
      %v970 = vrot.slane %v654, 2
      %v971 = vsel %vm916, %v968, %v970
      %v972 = vrot.slane %v656, 2
      %v973 = vrot.slane %v657, 2
      %v974 = vsel %vm916, %v972, %v973
      %v975 = vrot.slane %v658, 2
      %v976 = vsel %vm916, %v973, %v975
      %v977 = vrot.slane %v660, 2
      %v978 = vrot.slane %v661, 2
      %v979 = vsel %vm916, %v977, %v978
      %v980 = vrot.slane %v662, 2
      %v981 = vsel %vm916, %v978, %v980
      %v982 = vrot.slane %v664, 2
      %v983 = vrot.slane %v665, 2
      %v984 = vsel %vm916, %v982, %v983
      %v985 = vrot.slane %v666, 2
      %v986 = vsel %vm916, %v983, %v985
      %v987 = vrot.slane %v668, 2
      %v988 = vrot.slane %v669, 2
      %v989 = vsel %vm916, %v987, %v988
      %v990 = vrot.slane %v670, 2
      %v991 = vsel %vm916, %v988, %v990
      %v992 = vrot.slane %v672, 2
      %v993 = vrot.slane %v673, 2
      %v994 = vsel %vm916, %v992, %v993
      %v995 = vrot.slane %v674, 2
      %v996 = vsel %vm916, %v993, %v995
      %997 = vrot.lane.b32.xlu0 %v917, 8
      %v998 = vpop.permute.xlu0 %997
      %999 = vrot.lane.b32.xlu0 %v919, 8
      %v1000 = vpop.permute.xlu0 %999
      %1001 = vrot.lane.b32.xlu0 %v921, 8
      %v1002 = vpop.permute.xlu0 %1001
      %1003 = vrot.lane.b32.xlu0 %v922, 8
      %v1004 = vpop.permute.xlu0 %1003
      %1005 = vrot.lane.b32.xlu0 %v924, 8
      %v1006 = vpop.permute.xlu0 %1005
      %1007 = vrot.lane.b32.xlu0 %v926, 8
      %v1008 = vpop.permute.xlu0 %1007
      %1009 = vrot.lane.b32.xlu0 %v927, 8
      %v1010 = vpop.permute.xlu0 %1009
      %1011 = vrot.lane.b32.xlu0 %v929, 8
      %v1012 = vpop.permute.xlu0 %1011
      %1013 = vrot.lane.b32.xlu0 %v931, 8
      %v1014 = vpop.permute.xlu0 %1013
      %1015 = vrot.lane.b32.xlu0 %v932, 8
      %v1016 = vpop.permute.xlu0 %1015
      %1017 = vrot.lane.b32.xlu0 %v934, 8
      %v1018 = vpop.permute.xlu0 %1017
      %1019 = vrot.lane.b32.xlu0 %v936, 8
      %v1020 = vpop.permute.xlu0 %1019
      %1021 = vrot.lane.b32.xlu0 %v937, 8
      %v1022 = vpop.permute.xlu0 %1021
      %1023 = vrot.lane.b32.xlu0 %v939, 8
      %v1024 = vpop.permute.xlu0 %1023
      %1025 = vrot.lane.b32.xlu0 %v941, 8
      %v1026 = vpop.permute.xlu0 %1025
      %1027 = vrot.lane.b32.xlu0 %v942, 8
      %v1028 = vpop.permute.xlu0 %1027
      %1029 = vrot.lane.b32.xlu0 %v944, 8
      %v1030 = vpop.permute.xlu0 %1029
      %1031 = vrot.lane.b32.xlu0 %v946, 8
      %v1032 = vpop.permute.xlu0 %1031
      %1033 = vrot.lane.b32.xlu0 %v947, 8
      %v1034 = vpop.permute.xlu0 %1033
      %1035 = vrot.lane.b32.xlu0 %v949, 8
      %v1036 = vpop.permute.xlu0 %1035
      %1037 = vrot.lane.b32.xlu0 %v951, 8
      %v1038 = vpop.permute.xlu0 %1037
      %1039 = vrot.lane.b32.xlu0 %v952, 8
      %v1040 = vpop.permute.xlu0 %1039
      %1041 = vrot.lane.b32.xlu0 %v954, 8
      %v1042 = vpop.permute.xlu0 %1041
      %1043 = vrot.lane.b32.xlu0 %v956, 8
      %v1044 = vpop.permute.xlu0 %1043
      %1045 = vrot.lane.b32.xlu0 %v957, 8
      %v1046 = vpop.permute.xlu0 %1045
      %1047 = vrot.lane.b32.xlu0 %v959, 8
      %v1048 = vpop.permute.xlu0 %1047
      %1049 = vrot.lane.b32.xlu0 %v961, 8
      %v1050 = vpop.permute.xlu0 %1049
      %1051 = vrot.lane.b32.xlu0 %v962, 8
      %v1052 = vpop.permute.xlu0 %1051
      %1053 = vrot.lane.b32.xlu0 %v964, 8
      %v1054 = vpop.permute.xlu0 %1053
      %1055 = vrot.lane.b32.xlu0 %v966, 8
      %v1056 = vpop.permute.xlu0 %1055
      %1057 = vrot.lane.b32.xlu0 %v967, 8
      %v1058 = vpop.permute.xlu0 %1057
      %1059 = vrot.lane.b32.xlu0 %v969, 8
      %v1060 = vpop.permute.xlu0 %1059
      %1061 = vrot.lane.b32.xlu0 %v971, 8
      %v1062 = vpop.permute.xlu0 %1061
      %1063 = vrot.lane.b32.xlu0 %v972, 8
      %v1064 = vpop.permute.xlu0 %1063
      %1065 = vrot.lane.b32.xlu0 %v974, 8
      %v1066 = vpop.permute.xlu0 %1065
      %1067 = vrot.lane.b32.xlu0 %v976, 8
      %v1068 = vpop.permute.xlu0 %1067
      %1069 = vrot.lane.b32.xlu0 %v977, 8
      %v1070 = vpop.permute.xlu0 %1069
      %1071 = vrot.lane.b32.xlu0 %v979, 8
      %v1072 = vpop.permute.xlu0 %1071
      %1073 = vrot.lane.b32.xlu0 %v981, 8
      %v1074 = vpop.permute.xlu0 %1073
      %1075 = vrot.lane.b32.xlu0 %v982, 8
      %v1076 = vpop.permute.xlu0 %1075
      %1077 = vrot.lane.b32.xlu0 %v984, 8
      %v1078 = vpop.permute.xlu0 %1077
      %1079 = vrot.lane.b32.xlu0 %v986, 8
      %v1080 = vpop.permute.xlu0 %1079
      %1081 = vrot.lane.b32.xlu0 %v987, 8
      %v1082 = vpop.permute.xlu0 %1081
      %1083 = vrot.lane.b32.xlu0 %v989, 8
      %v1084 = vpop.permute.xlu0 %1083
      %1085 = vrot.lane.b32.xlu0 %v991, 8
      %v1086 = vpop.permute.xlu0 %1085
      %1087 = vrot.lane.b32.xlu0 %v992, 8
      %v1088 = vpop.permute.xlu0 %1087
      %1089 = vrot.lane.b32.xlu0 %v994, 8
      %v1090 = vpop.permute.xlu0 %1089
      %1091 = vrot.lane.b32.xlu0 %v996, 8
      %v1092 = vpop.permute.xlu0 %1091
      %v1141 = vsel %vm505, %v611, %v757
      %v1142 = vsel %vm505, %v612, %v759
      %v1143 = vsel %vm505, %v613, %v761
      %v1144 = vsel %vm505, %v615, %v763
      %v1145 = vsel %vm505, %v616, %v765
      %v1146 = vsel %vm505, %v617, %v767
      %v1147 = vsel %vm505, %v619, %v769
      %v1148 = vsel %vm505, %v620, %v771
      %v1149 = vsel %vm505, %v621, %v773
      %v1150 = vsel %vm505, %v623, %v775
      %v1151 = vsel %vm505, %v624, %v777
      %v1152 = vsel %vm505, %v625, %v779
      %v1153 = vsel %vm505, %v627, %v781
      %v1154 = vsel %vm505, %v628, %v783
      %v1155 = vsel %vm505, %v629, %v785
      %v1156 = vsel %vm505, %v631, %v787
      %v1157 = vsel %vm505, %v632, %v789
      %v1158 = vsel %vm505, %v633, %v791
      %v1159 = vsel %vm505, %v635, %v793
      %v1160 = vsel %vm505, %v636, %v795
      %v1161 = vsel %vm505, %v637, %v797
      %v1162 = vsel %vm505, %v639, %v799
      %v1163 = vsel %vm505, %v640, %v801
      %v1164 = vsel %vm505, %v641, %v803
      %v1165 = vsel %vm505, %v643, %v805
      %v1166 = vsel %vm505, %v644, %v807
      %v1167 = vsel %vm505, %v645, %v809
      %v1168 = vsel %vm505, %v647, %v811
      %v1169 = vsel %vm505, %v648, %v813
      %v1170 = vsel %vm505, %v649, %v815
      %v1171 = vsel %vm505, %v651, %v817
      %v1172 = vsel %vm505, %v652, %v819
      %v1173 = vsel %vm505, %v653, %v821
      %v1174 = vsel %vm505, %v655, %v823
      %v1175 = vsel %vm505, %v656, %v825
      %v1176 = vsel %vm505, %v657, %v827
      %v1177 = vsel %vm505, %v659, %v829
      %v1178 = vsel %vm505, %v660, %v831
      %v1179 = vsel %vm505, %v661, %v833
      %v1180 = vsel %vm505, %v663, %v835
      %v1181 = vsel %vm505, %v664, %v837
      %v1182 = vsel %vm505, %v665, %v839
      %v1183 = vsel %vm505, %v667, %v841
      %v1184 = vsel %vm505, %v668, %v843
      %v1185 = vsel %vm505, %v669, %v845
      %v1186 = vsel %vm505, %v671, %v847
      %v1187 = vsel %vm505, %v672, %v849
      %v1188 = vsel %vm505, %v673, %v851
      %vm1189 = vcmask 64512
      %v1190 = vsel %vm1189, %v1141, %v998
      %v1191 = vsel %vm1189, %v1142, %v1000
      %v1192 = vsel %vm1189, %v1143, %v1002
      %v1193 = vsel %vm1189, %v1144, %v1004
      %v1194 = vsel %vm1189, %v1145, %v1006
      %v1195 = vsel %vm1189, %v1146, %v1008
      %v1196 = vsel %vm1189, %v1147, %v1010
      %v1197 = vsel %vm1189, %v1148, %v1012
      %v1198 = vsel %vm1189, %v1149, %v1014
      %v1199 = vsel %vm1189, %v1150, %v1016
      %v1200 = vsel %vm1189, %v1151, %v1018
      %v1201 = vsel %vm1189, %v1152, %v1020
      %v1202 = vsel %vm1189, %v1153, %v1022
      %v1203 = vsel %vm1189, %v1154, %v1024
      %v1204 = vsel %vm1189, %v1155, %v1026
      %v1205 = vsel %vm1189, %v1156, %v1028
      %v1206 = vsel %vm1189, %v1157, %v1030
      %v1207 = vsel %vm1189, %v1158, %v1032
      %v1208 = vsel %vm1189, %v1159, %v1034
      %v1209 = vsel %vm1189, %v1160, %v1036
      %v1210 = vsel %vm1189, %v1161, %v1038
      %v1211 = vsel %vm1189, %v1162, %v1040
      %v1212 = vsel %vm1189, %v1163, %v1042
      %v1213 = vsel %vm1189, %v1164, %v1044
      %v1214 = vsel %vm1189, %v1165, %v1046
      %v1215 = vsel %vm1189, %v1166, %v1048
      %v1216 = vsel %vm1189, %v1167, %v1050
      %v1217 = vsel %vm1189, %v1168, %v1052
      %v1218 = vsel %vm1189, %v1169, %v1054
      %v1219 = vsel %vm1189, %v1170, %v1056
      %v1220 = vsel %vm1189, %v1171, %v1058
      %v1221 = vsel %vm1189, %v1172, %v1060
      %v1222 = vsel %vm1189, %v1173, %v1062
      %v1223 = vsel %vm1189, %v1174, %v1064
      %v1224 = vsel %vm1189, %v1175, %v1066
      %v1225 = vsel %vm1189, %v1176, %v1068
      %v1226 = vsel %vm1189, %v1177, %v1070
      %v1227 = vsel %vm1189, %v1178, %v1072
      %v1228 = vsel %vm1189, %v1179, %v1074
      %v1229 = vsel %vm1189, %v1180, %v1076
      %v1230 = vsel %vm1189, %v1181, %v1078
      %v1231 = vsel %vm1189, %v1182, %v1080
      %v1232 = vsel %vm1189, %v1183, %v1082
      %v1233 = vsel %vm1189, %v1184, %v1084
      %v1234 = vsel %vm1189, %v1185, %v1086
      %v1235 = vsel %vm1189, %v1186, %v1088
      %v1236 = vsel %vm1189, %v1187, %v1090
      %v1237 = vsel %vm1189, %v1188, %v1092
      %vm1286 = vcmask 1040384
      %v1287 = vrot.slane %v1190, 7
      %v1288 = vrot.slane %v1191, 7
      %v1289 = vsel %vm1286, %v1287, %v1288
      %v1290 = vrot.slane %v1192, 7
      %v1291 = vsel %vm1286, %v1288, %v1290
      %v1292 = vrot.slane %v1193, 7
      %v1293 = vrot.slane %v1194, 7
      %v1294 = vsel %vm1286, %v1292, %v1293
      %v1295 = vrot.slane %v1195, 7
      %v1296 = vsel %vm1286, %v1293, %v1295
      %v1297 = vrot.slane %v1196, 7
      %v1298 = vrot.slane %v1197, 7
      %v1299 = vsel %vm1286, %v1297, %v1298
      %v1300 = vrot.slane %v1198, 7
      %v1301 = vsel %vm1286, %v1298, %v1300
      %v1302 = vrot.slane %v1199, 7
      %v1303 = vrot.slane %v1200, 7
      %v1304 = vsel %vm1286, %v1302, %v1303
      %v1305 = vrot.slane %v1201, 7
      %v1306 = vsel %vm1286, %v1303, %v1305
      %v1307 = vrot.slane %v1202, 7
      %v1308 = vrot.slane %v1203, 7
      %v1309 = vsel %vm1286, %v1307, %v1308
      %v1310 = vrot.slane %v1204, 7
      %v1311 = vsel %vm1286, %v1308, %v1310
      %v1312 = vrot.slane %v1205, 7
      %v1313 = vrot.slane %v1206, 7
      %v1314 = vsel %vm1286, %v1312, %v1313
      %v1315 = vrot.slane %v1207, 7
      %v1316 = vsel %vm1286, %v1313, %v1315
      %v1317 = vrot.slane %v1208, 7
      %v1318 = vrot.slane %v1209, 7
      %v1319 = vsel %vm1286, %v1317, %v1318
      %v1320 = vrot.slane %v1210, 7
      %v1321 = vsel %vm1286, %v1318, %v1320
      %v1322 = vrot.slane %v1211, 7
      %v1323 = vrot.slane %v1212, 7
      %v1324 = vsel %vm1286, %v1322, %v1323
      %v1325 = vrot.slane %v1213, 7
      %v1326 = vsel %vm1286, %v1323, %v1325
      %v1327 = vrot.slane %v1214, 7
      %v1328 = vrot.slane %v1215, 7
      %v1329 = vsel %vm1286, %v1327, %v1328
      %v1330 = vrot.slane %v1216, 7
      %v1331 = vsel %vm1286, %v1328, %v1330
      %v1332 = vrot.slane %v1217, 7
      %v1333 = vrot.slane %v1218, 7
      %v1334 = vsel %vm1286, %v1332, %v1333
      %v1335 = vrot.slane %v1219, 7
      %v1336 = vsel %vm1286, %v1333, %v1335
      %v1337 = vrot.slane %v1220, 7
      %v1338 = vrot.slane %v1221, 7
      %v1339 = vsel %vm1286, %v1337, %v1338
      %v1340 = vrot.slane %v1222, 7
      %v1341 = vsel %vm1286, %v1338, %v1340
      %v1342 = vrot.slane %v1223, 7
      %v1343 = vrot.slane %v1224, 7
      %v1344 = vsel %vm1286, %v1342, %v1343
      %v1345 = vrot.slane %v1225, 7
      %v1346 = vsel %vm1286, %v1343, %v1345
      %v1347 = vrot.slane %v1226, 7
      %v1348 = vrot.slane %v1227, 7
      %v1349 = vsel %vm1286, %v1347, %v1348
      %v1350 = vrot.slane %v1228, 7
      %v1351 = vsel %vm1286, %v1348, %v1350
      %v1352 = vrot.slane %v1229, 7
      %v1353 = vrot.slane %v1230, 7
      %v1354 = vsel %vm1286, %v1352, %v1353
      %v1355 = vrot.slane %v1231, 7
      %v1356 = vsel %vm1286, %v1353, %v1355
      %v1357 = vrot.slane %v1232, 7
      %v1358 = vrot.slane %v1233, 7
      %v1359 = vsel %vm1286, %v1357, %v1358
      %v1360 = vrot.slane %v1234, 7
      %v1361 = vsel %vm1286, %v1358, %v1360
      %v1362 = vrot.slane %v1235, 7
      %v1363 = vrot.slane %v1236, 7
      %v1364 = vsel %vm1286, %v1362, %v1363
      %v1365 = vrot.slane %v1237, 7
      %v1366 = vsel %vm1286, %v1363, %v1365
      %v1399 = vpack.c.bf16 %v1291, %v1289
      %v1400 = vpack.c.bf16 %v1296, %v1294
      %v1401 = vpack.c.bf16 %v1301, %v1299
      %v1402 = vpack.c.bf16 %v1306, %v1304
      %v1403 = vpack.c.bf16 %v1311, %v1309
      %v1404 = vpack.c.bf16 %v1316, %v1314
      %v1405 = vpack.c.bf16 %v1321, %v1319
      %v1406 = vpack.c.bf16 %v1326, %v1324
      %v1407 = vpack.c.bf16 %v1331, %v1329
      %v1408 = vpack.c.bf16 %v1336, %v1334
      %v1409 = vpack.c.bf16 %v1341, %v1339
      %v1410 = vpack.c.bf16 %v1346, %v1344
      %v1411 = vpack.c.bf16 %v1351, %v1349
      %v1412 = vpack.c.bf16 %v1356, %v1354
      %v1413 = vpack.c.bf16 %v1361, %v1359
      %v1414 = vpack.c.bf16 %v1366, %v1364
      %v1415 = vld [vmem:[%s4] sm:$0xf]
      %v1416 = vld [vmem:[%s4 + $0x4] sm:$0x3]
      %v1417 = vld [vmem:[%s578] sm:$0xff]
      %v1418 = vld [vmem:[%s578 + $0x8] sm:$0xff]
      %v1419 = vld [vmem:[%s578 + $0x10] sm:$0xff]
      %v1420 = vld [vmem:[%s578 + $0x18] sm:$0xff]
      %v1421 = vld [vmem:[%s578 + $0x20] sm:$0xff]
      %v1422 = vld [vmem:[%s578 + $0x28] sm:$0xff]
      %v1423 = vld [vmem:[%s578 + $0x30] sm:$0xff]
      %v1424 = vld [vmem:[%s578 + $0x38] sm:$0xff]
      %v1425 = vld [vmem:[%s578 + $0x40] sm:$0xff]
      %v1426 = vld [vmem:[%s578 + $0x48] sm:$0xff]
      %v1427 = vld [vmem:[%s578 + $0x50] sm:$0xff]
      %v1428 = vld [vmem:[%s578 + $0x58] sm:$0xff]
      %v1429 = vld [vmem:[%s578 + $0x60] sm:$0xff]
      %v1430 = vld [vmem:[%s578 + $0x68] sm:$0xff]
      %v1431 = vld [vmem:[%s578 + $0x70] sm:$0xff]
      %v1432 = vld [vmem:[%s578 + $0x78] sm:$0xff]
      %v1433 = vld [vmem:[%s578 + $0x80] sm:$0xff]
      %v1434 = vld [vmem:[%s578 + $0x88] sm:$0xff]
      %v1435 = vld [vmem:[%s578 + $0x90] sm:$0xff]
      %v1436 = vld [vmem:[%s578 + $0x98] sm:$0xff]
      %v1437 = vld [vmem:[%s578 + $0xa0] sm:$0xff]
      %v1438 = vld [vmem:[%s578 + $0xa8] sm:$0xff]
      %v1439 = vld [vmem:[%s578 + $0xb0] sm:$0xff]
      %v1440 = vld [vmem:[%s578 + $0xb8] sm:$0xff]
      %v1441 = vld [vmem:[%s578 + $0xc0] sm:$0xff]
      %v1442 = vld [vmem:[%s578 + $0xc8] sm:$0xff]
      %v1443 = vld [vmem:[%s578 + $0xd0] sm:$0xff]
      %v1444 = vld [vmem:[%s578 + $0xd8] sm:$0xff]
      %v1445 = vld [vmem:[%s578 + $0xe0] sm:$0xff]
      %v1446 = vld [vmem:[%s578 + $0xe8] sm:$0xff]
      %v1447 = vld [vmem:[%s578 + $0xf0] sm:$0xff]
      %v1448 = vld [vmem:[%s578 + $0xf8] sm:$0xff]
      %v1449 = vld [vmem:[%s578 + $0x100] sm:$0xff]
      %v1450 = vld [vmem:[%s578 + $0x108] sm:$0xff]
      %v1451 = vld [vmem:[%s578 + $0x110] sm:$0xff]
      %v1452 = vld [vmem:[%s578 + $0x118] sm:$0xff]
      %v1453 = vld [vmem:[%s578 + $0x120] sm:$0xff]
      %v1454 = vld [vmem:[%s578 + $0x128] sm:$0xff]
      %v1455 = vld [vmem:[%s578 + $0x130] sm:$0xff]
      %v1456 = vld [vmem:[%s578 + $0x138] sm:$0xff]
      %v1457 = vld [vmem:[%s578 + $0x140] sm:$0xff]
      %v1458 = vld [vmem:[%s578 + $0x148] sm:$0xff]
      %v1459 = vld [vmem:[%s578 + $0x150] sm:$0xff]
      %v1460 = vld [vmem:[%s578 + $0x158] sm:$0xff]
      %v1461 = vld [vmem:[%s578 + $0x160] sm:$0xff]
      %v1462 = vld [vmem:[%s578 + $0x168] sm:$0xff]
      %v1463 = vld [vmem:[%s578 + $0x170] sm:$0xff]
      %v1464 = vld [vmem:[%s578 + $0x178] sm:$0xff]
      %v1465 = vld [vmem:[%s578 + $0x180] sm:$0xff]
      %v1466 = vld [vmem:[%s578 + $0x188] sm:$0xff]
      %v1467 = vld [vmem:[%s578 + $0x190] sm:$0xff]
      %v1468 = vld [vmem:[%s578 + $0x198] sm:$0xff]
      %v1469 = vld [vmem:[%s578 + $0x1a0] sm:$0xff]
      %v1470 = vld [vmem:[%s578 + $0x1a8] sm:$0xff]
      %v1471 = vld [vmem:[%s578 + $0x1b0] sm:$0xff]
      %v1472 = vld [vmem:[%s578 + $0x1b8] sm:$0xff]
      %v1473 = vld [vmem:[%s578 + $0x1c0] sm:$0xff]
      %v1474 = vld [vmem:[%s578 + $0x1c8] sm:$0xff]
      %v1475 = vld [vmem:[%s578 + $0x1d0] sm:$0xff]
      %v1476 = vld [vmem:[%s578 + $0x1d8] sm:$0xff]
      %v1477 = vld [vmem:[%s578 + $0x1e0] sm:$0xff]
      %v1478 = vld [vmem:[%s578 + $0x1e8] sm:$0xff]
      %v1479 = vld [vmem:[%s578 + $0x1f0] sm:$0xff]
      %v1480 = vld [vmem:[%s578 + $0x1f8] sm:$0xff]
      %v1513 = vrot.slane %v1418, 1
      %v1514 = vrot.slane %v1419, 1
      %v1515 = vsel %vm707, %v1513, %v1514
      %v1516 = vrot.slane %v1422, 1
      %v1517 = vrot.slane %v1423, 1
      %v1518 = vsel %vm707, %v1516, %v1517
      %v1519 = vrot.slane %v1426, 1
      %v1520 = vrot.slane %v1427, 1
      %v1521 = vsel %vm707, %v1519, %v1520
      %v1522 = vrot.slane %v1430, 1
      %v1523 = vrot.slane %v1431, 1
      %v1524 = vsel %vm707, %v1522, %v1523
      %v1525 = vrot.slane %v1434, 1
      %v1526 = vrot.slane %v1435, 1
      %v1527 = vsel %vm707, %v1525, %v1526
      %v1528 = vrot.slane %v1438, 1
      %v1529 = vrot.slane %v1439, 1
      %v1530 = vsel %vm707, %v1528, %v1529
      %v1531 = vrot.slane %v1442, 1
      %v1532 = vrot.slane %v1443, 1
      %v1533 = vsel %vm707, %v1531, %v1532
      %v1534 = vrot.slane %v1446, 1
      %v1535 = vrot.slane %v1447, 1
      %v1536 = vsel %vm707, %v1534, %v1535
      %v1537 = vrot.slane %v1450, 1
      %v1538 = vrot.slane %v1451, 1
      %v1539 = vsel %vm707, %v1537, %v1538
      %v1540 = vrot.slane %v1454, 1
      %v1541 = vrot.slane %v1455, 1
      %v1542 = vsel %vm707, %v1540, %v1541
      %v1543 = vrot.slane %v1458, 1
      %v1544 = vrot.slane %v1459, 1
      %v1545 = vsel %vm707, %v1543, %v1544
      %v1546 = vrot.slane %v1462, 1
      %v1547 = vrot.slane %v1463, 1
      %v1548 = vsel %vm707, %v1546, %v1547
      %v1549 = vrot.slane %v1466, 1
      %v1550 = vrot.slane %v1467, 1
      %v1551 = vsel %vm707, %v1549, %v1550
      %v1552 = vrot.slane %v1470, 1
      %v1553 = vrot.slane %v1471, 1
      %v1554 = vsel %vm707, %v1552, %v1553
      %v1555 = vrot.slane %v1474, 1
      %v1556 = vrot.slane %v1475, 1
      %v1557 = vsel %vm707, %v1555, %v1556
      %v1558 = vrot.slane %v1478, 1
      %v1559 = vrot.slane %v1479, 1
      %v1560 = vsel %vm707, %v1558, %v1559
      %1561 = vrot.lane.b32.xlu0 %v1513, 4
      %v1562 = vpop.permute.xlu0 %1561
      %1563 = vrot.lane.b32.xlu0 %v1515, 4
      %v1564 = vpop.permute.xlu0 %1563
      %1565 = vrot.lane.b32.xlu0 %v1514, 4
      %v1566 = vpop.permute.xlu0 %1565
      %1567 = vrot.lane.b32.xlu0 %v1516, 4
      %v1568 = vpop.permute.xlu0 %1567
      %1569 = vrot.lane.b32.xlu0 %v1518, 4
      %v1570 = vpop.permute.xlu0 %1569
      %1571 = vrot.lane.b32.xlu0 %v1517, 4
      %v1572 = vpop.permute.xlu0 %1571
      %1573 = vrot.lane.b32.xlu0 %v1519, 4
      %v1574 = vpop.permute.xlu0 %1573
      %1575 = vrot.lane.b32.xlu0 %v1521, 4
      %v1576 = vpop.permute.xlu0 %1575
      %1577 = vrot.lane.b32.xlu0 %v1520, 4
      %v1578 = vpop.permute.xlu0 %1577
      %1579 = vrot.lane.b32.xlu0 %v1522, 4
      %v1580 = vpop.permute.xlu0 %1579
      %1581 = vrot.lane.b32.xlu0 %v1524, 4
      %v1582 = vpop.permute.xlu0 %1581
      %1583 = vrot.lane.b32.xlu0 %v1523, 4
      %v1584 = vpop.permute.xlu0 %1583
      %1585 = vrot.lane.b32.xlu0 %v1525, 4
      %v1586 = vpop.permute.xlu0 %1585
      %1587 = vrot.lane.b32.xlu0 %v1527, 4
      %v1588 = vpop.permute.xlu0 %1587
      %1589 = vrot.lane.b32.xlu0 %v1526, 4
      %v1590 = vpop.permute.xlu0 %1589
      %1591 = vrot.lane.b32.xlu0 %v1528, 4
      %v1592 = vpop.permute.xlu0 %1591
      %1593 = vrot.lane.b32.xlu0 %v1530, 4
      %v1594 = vpop.permute.xlu0 %1593
      %1595 = vrot.lane.b32.xlu0 %v1529, 4
      %v1596 = vpop.permute.xlu0 %1595
      %1597 = vrot.lane.b32.xlu0 %v1531, 4
      %v1598 = vpop.permute.xlu0 %1597
      %1599 = vrot.lane.b32.xlu0 %v1533, 4
      %v1600 = vpop.permute.xlu0 %1599
      %1601 = vrot.lane.b32.xlu0 %v1532, 4
      %v1602 = vpop.permute.xlu0 %1601
      %1603 = vrot.lane.b32.xlu0 %v1534, 4
      %v1604 = vpop.permute.xlu0 %1603
      %1605 = vrot.lane.b32.xlu0 %v1536, 4
      %v1606 = vpop.permute.xlu0 %1605
      %1607 = vrot.lane.b32.xlu0 %v1535, 4
      %v1608 = vpop.permute.xlu0 %1607
      %1609 = vrot.lane.b32.xlu0 %v1537, 4
      %v1610 = vpop.permute.xlu0 %1609
      %1611 = vrot.lane.b32.xlu0 %v1539, 4
      %v1612 = vpop.permute.xlu0 %1611
      %1613 = vrot.lane.b32.xlu0 %v1538, 4
      %v1614 = vpop.permute.xlu0 %1613
      %1615 = vrot.lane.b32.xlu0 %v1540, 4
      %v1616 = vpop.permute.xlu0 %1615
      %1617 = vrot.lane.b32.xlu0 %v1542, 4
      %v1618 = vpop.permute.xlu0 %1617
      %1619 = vrot.lane.b32.xlu0 %v1541, 4
      %v1620 = vpop.permute.xlu0 %1619
      %1621 = vrot.lane.b32.xlu0 %v1543, 4
      %v1622 = vpop.permute.xlu0 %1621
      %1623 = vrot.lane.b32.xlu0 %v1545, 4
      %v1624 = vpop.permute.xlu0 %1623
      %1625 = vrot.lane.b32.xlu0 %v1544, 4
      %v1626 = vpop.permute.xlu0 %1625
      %1627 = vrot.lane.b32.xlu0 %v1546, 4
      %v1628 = vpop.permute.xlu0 %1627
      %1629 = vrot.lane.b32.xlu0 %v1548, 4
      %v1630 = vpop.permute.xlu0 %1629
      %1631 = vrot.lane.b32.xlu0 %v1547, 4
      %v1632 = vpop.permute.xlu0 %1631
      %1633 = vrot.lane.b32.xlu0 %v1549, 4
      %v1634 = vpop.permute.xlu0 %1633
      %1635 = vrot.lane.b32.xlu0 %v1551, 4
      %v1636 = vpop.permute.xlu0 %1635
      %1637 = vrot.lane.b32.xlu0 %v1550, 4
      %v1638 = vpop.permute.xlu0 %1637
      %1639 = vrot.lane.b32.xlu0 %v1552, 4
      %v1640 = vpop.permute.xlu0 %1639
      %1641 = vrot.lane.b32.xlu0 %v1554, 4
      %v1642 = vpop.permute.xlu0 %1641
      %1643 = vrot.lane.b32.xlu0 %v1553, 4
      %v1644 = vpop.permute.xlu0 %1643
      %1645 = vrot.lane.b32.xlu0 %v1555, 4
      %v1646 = vpop.permute.xlu0 %1645
      %1647 = vrot.lane.b32.xlu0 %v1557, 4
      %v1648 = vpop.permute.xlu0 %1647
      %1649 = vrot.lane.b32.xlu0 %v1556, 4
      %v1650 = vpop.permute.xlu0 %1649
      %1651 = vrot.lane.b32.xlu0 %v1558, 4
      %v1652 = vpop.permute.xlu0 %1651
      %1653 = vrot.lane.b32.xlu0 %v1560, 4
      %v1654 = vpop.permute.xlu0 %1653
      %1655 = vrot.lane.b32.xlu0 %v1559, 4
      %v1656 = vpop.permute.xlu0 %1655
      %v1721 = vrot.slane %v1418, 2
      %v1722 = vrot.slane %v1419, 2
      %v1723 = vsel %vm916, %v1721, %v1722
      %v1724 = vrot.slane %v1420, 2
      %v1725 = vsel %vm916, %v1722, %v1724
      %v1726 = vrot.slane %v1422, 2
      %v1727 = vrot.slane %v1423, 2
      %v1728 = vsel %vm916, %v1726, %v1727
      %v1729 = vrot.slane %v1424, 2
      %v1730 = vsel %vm916, %v1727, %v1729
      %v1731 = vrot.slane %v1426, 2
      %v1732 = vrot.slane %v1427, 2
      %v1733 = vsel %vm916, %v1731, %v1732
      %v1734 = vrot.slane %v1428, 2
      %v1735 = vsel %vm916, %v1732, %v1734
      %v1736 = vrot.slane %v1430, 2
      %v1737 = vrot.slane %v1431, 2
      %v1738 = vsel %vm916, %v1736, %v1737
      %v1739 = vrot.slane %v1432, 2
      %v1740 = vsel %vm916, %v1737, %v1739
      %v1741 = vrot.slane %v1434, 2
      %v1742 = vrot.slane %v1435, 2
      %v1743 = vsel %vm916, %v1741, %v1742
      %v1744 = vrot.slane %v1436, 2
      %v1745 = vsel %vm916, %v1742, %v1744
      %v1746 = vrot.slane %v1438, 2
      %v1747 = vrot.slane %v1439, 2
      %v1748 = vsel %vm916, %v1746, %v1747
      %v1749 = vrot.slane %v1440, 2
      %v1750 = vsel %vm916, %v1747, %v1749
      %v1751 = vrot.slane %v1442, 2
      %v1752 = vrot.slane %v1443, 2
      %v1753 = vsel %vm916, %v1751, %v1752
      %v1754 = vrot.slane %v1444, 2
      %v1755 = vsel %vm916, %v1752, %v1754
      %v1756 = vrot.slane %v1446, 2
      %v1757 = vrot.slane %v1447, 2
      %v1758 = vsel %vm916, %v1756, %v1757
      %v1759 = vrot.slane %v1448, 2
      %v1760 = vsel %vm916, %v1757, %v1759
      %v1761 = vrot.slane %v1450, 2
      %v1762 = vrot.slane %v1451, 2
      %v1763 = vsel %vm916, %v1761, %v1762
      %v1764 = vrot.slane %v1452, 2
      %v1765 = vsel %vm916, %v1762, %v1764
      %v1766 = vrot.slane %v1454, 2
      %v1767 = vrot.slane %v1455, 2
      %v1768 = vsel %vm916, %v1766, %v1767
      %v1769 = vrot.slane %v1456, 2
      %v1770 = vsel %vm916, %v1767, %v1769
      %v1771 = vrot.slane %v1458, 2
      %v1772 = vrot.slane %v1459, 2
      %v1773 = vsel %vm916, %v1771, %v1772
      %v1774 = vrot.slane %v1460, 2
      %v1775 = vsel %vm916, %v1772, %v1774
      %v1776 = vrot.slane %v1462, 2
      %v1777 = vrot.slane %v1463, 2
      %v1778 = vsel %vm916, %v1776, %v1777
      %v1779 = vrot.slane %v1464, 2
      %v1780 = vsel %vm916, %v1777, %v1779
      %v1781 = vrot.slane %v1466, 2
      %v1782 = vrot.slane %v1467, 2
      %v1783 = vsel %vm916, %v1781, %v1782
      %v1784 = vrot.slane %v1468, 2
      %v1785 = vsel %vm916, %v1782, %v1784
      %v1786 = vrot.slane %v1470, 2
      %v1787 = vrot.slane %v1471, 2
      %v1788 = vsel %vm916, %v1786, %v1787
      %v1789 = vrot.slane %v1472, 2
      %v1790 = vsel %vm916, %v1787, %v1789
      %v1791 = vrot.slane %v1474, 2
      %v1792 = vrot.slane %v1475, 2
      %v1793 = vsel %vm916, %v1791, %v1792
      %v1794 = vrot.slane %v1476, 2
      %v1795 = vsel %vm916, %v1792, %v1794
      %v1796 = vrot.slane %v1478, 2
      %v1797 = vrot.slane %v1479, 2
      %v1798 = vsel %vm916, %v1796, %v1797
      %v1799 = vrot.slane %v1480, 2
      %v1800 = vsel %vm916, %v1797, %v1799
      %1801 = vrot.lane.b32.xlu0 %v1721, 8
      %v1802 = vpop.permute.xlu0 %1801
      %1803 = vrot.lane.b32.xlu0 %v1723, 8
      %v1804 = vpop.permute.xlu0 %1803
      %1805 = vrot.lane.b32.xlu0 %v1725, 8
      %v1806 = vpop.permute.xlu0 %1805
      %1807 = vrot.lane.b32.xlu0 %v1726, 8
      %v1808 = vpop.permute.xlu0 %1807
      %1809 = vrot.lane.b32.xlu0 %v1728, 8
      %v1810 = vpop.permute.xlu0 %1809
      %1811 = vrot.lane.b32.xlu0 %v1730, 8
      %v1812 = vpop.permute.xlu0 %1811
      %1813 = vrot.lane.b32.xlu0 %v1731, 8
      %v1814 = vpop.permute.xlu0 %1813
      %1815 = vrot.lane.b32.xlu0 %v1733, 8
      %v1816 = vpop.permute.xlu0 %1815
      %1817 = vrot.lane.b32.xlu0 %v1735, 8
      %v1818 = vpop.permute.xlu0 %1817
      %1819 = vrot.lane.b32.xlu0 %v1736, 8
      %v1820 = vpop.permute.xlu0 %1819
      %1821 = vrot.lane.b32.xlu0 %v1738, 8
      %v1822 = vpop.permute.xlu0 %1821
      %1823 = vrot.lane.b32.xlu0 %v1740, 8
      %v1824 = vpop.permute.xlu0 %1823
      %1825 = vrot.lane.b32.xlu0 %v1741, 8
      %v1826 = vpop.permute.xlu0 %1825
      %1827 = vrot.lane.b32.xlu0 %v1743, 8
      %v1828 = vpop.permute.xlu0 %1827
      %1829 = vrot.lane.b32.xlu0 %v1745, 8
      %v1830 = vpop.permute.xlu0 %1829
      %1831 = vrot.lane.b32.xlu0 %v1746, 8
      %v1832 = vpop.permute.xlu0 %1831
      %1833 = vrot.lane.b32.xlu0 %v1748, 8
      %v1834 = vpop.permute.xlu0 %1833
      %1835 = vrot.lane.b32.xlu0 %v1750, 8
      %v1836 = vpop.permute.xlu0 %1835
      %1837 = vrot.lane.b32.xlu0 %v1751, 8
      %v1838 = vpop.permute.xlu0 %1837
      %1839 = vrot.lane.b32.xlu0 %v1753, 8
      %v1840 = vpop.permute.xlu0 %1839
      %1841 = vrot.lane.b32.xlu0 %v1755, 8
      %v1842 = vpop.permute.xlu0 %1841
      %1843 = vrot.lane.b32.xlu0 %v1756, 8
      %v1844 = vpop.permute.xlu0 %1843
      %1845 = vrot.lane.b32.xlu0 %v1758, 8
      %v1846 = vpop.permute.xlu0 %1845
      %1847 = vrot.lane.b32.xlu0 %v1760, 8
      %v1848 = vpop.permute.xlu0 %1847
      %1849 = vrot.lane.b32.xlu0 %v1761, 8
      %v1850 = vpop.permute.xlu0 %1849
      %1851 = vrot.lane.b32.xlu0 %v1763, 8
      %v1852 = vpop.permute.xlu0 %1851
      %1853 = vrot.lane.b32.xlu0 %v1765, 8
      %v1854 = vpop.permute.xlu0 %1853
      %1855 = vrot.lane.b32.xlu0 %v1766, 8
      %v1856 = vpop.permute.xlu0 %1855
      %1857 = vrot.lane.b32.xlu0 %v1768, 8
      %v1858 = vpop.permute.xlu0 %1857
      %1859 = vrot.lane.b32.xlu0 %v1770, 8
      %v1860 = vpop.permute.xlu0 %1859
      %1861 = vrot.lane.b32.xlu0 %v1771, 8
      %v1862 = vpop.permute.xlu0 %1861
      %1863 = vrot.lane.b32.xlu0 %v1773, 8
      %v1864 = vpop.permute.xlu0 %1863
      %1865 = vrot.lane.b32.xlu0 %v1775, 8
      %v1866 = vpop.permute.xlu0 %1865
      %1867 = vrot.lane.b32.xlu0 %v1776, 8
      %v1868 = vpop.permute.xlu0 %1867
      %1869 = vrot.lane.b32.xlu0 %v1778, 8
      %v1870 = vpop.permute.xlu0 %1869
      %1871 = vrot.lane.b32.xlu0 %v1780, 8
      %v1872 = vpop.permute.xlu0 %1871
      %1873 = vrot.lane.b32.xlu0 %v1781, 8
      %v1874 = vpop.permute.xlu0 %1873
      %1875 = vrot.lane.b32.xlu0 %v1783, 8
      %v1876 = vpop.permute.xlu0 %1875
      %1877 = vrot.lane.b32.xlu0 %v1785, 8
      %v1878 = vpop.permute.xlu0 %1877
      %1879 = vrot.lane.b32.xlu0 %v1786, 8
      %v1880 = vpop.permute.xlu0 %1879
      %1881 = vrot.lane.b32.xlu0 %v1788, 8
      %v1882 = vpop.permute.xlu0 %1881
      %1883 = vrot.lane.b32.xlu0 %v1790, 8
      %v1884 = vpop.permute.xlu0 %1883
      %1885 = vrot.lane.b32.xlu0 %v1791, 8
      %v1886 = vpop.permute.xlu0 %1885
      %1887 = vrot.lane.b32.xlu0 %v1793, 8
      %v1888 = vpop.permute.xlu0 %1887
      %1889 = vrot.lane.b32.xlu0 %v1795, 8
      %v1890 = vpop.permute.xlu0 %1889
      %1891 = vrot.lane.b32.xlu0 %v1796, 8
      %v1892 = vpop.permute.xlu0 %1891
      %1893 = vrot.lane.b32.xlu0 %v1798, 8
      %v1894 = vpop.permute.xlu0 %1893
      %1895 = vrot.lane.b32.xlu0 %v1800, 8
      %v1896 = vpop.permute.xlu0 %1895
      %v1945 = vsel %vm505, %v1417, %v1562
      %v1946 = vsel %vm505, %v1418, %v1564
      %v1947 = vsel %vm505, %v1419, %v1566
      %v1948 = vsel %vm505, %v1421, %v1568
      %v1949 = vsel %vm505, %v1422, %v1570
      %v1950 = vsel %vm505, %v1423, %v1572
      %v1951 = vsel %vm505, %v1425, %v1574
      %v1952 = vsel %vm505, %v1426, %v1576
      %v1953 = vsel %vm505, %v1427, %v1578
      %v1954 = vsel %vm505, %v1429, %v1580
      %v1955 = vsel %vm505, %v1430, %v1582
      %v1956 = vsel %vm505, %v1431, %v1584
      %v1957 = vsel %vm505, %v1433, %v1586
      %v1958 = vsel %vm505, %v1434, %v1588
      %v1959 = vsel %vm505, %v1435, %v1590
      %v1960 = vsel %vm505, %v1437, %v1592
      %v1961 = vsel %vm505, %v1438, %v1594
      %v1962 = vsel %vm505, %v1439, %v1596
      %v1963 = vsel %vm505, %v1441, %v1598
      %v1964 = vsel %vm505, %v1442, %v1600
      %v1965 = vsel %vm505, %v1443, %v1602
      %v1966 = vsel %vm505, %v1445, %v1604
      %v1967 = vsel %vm505, %v1446, %v1606
      %v1968 = vsel %vm505, %v1447, %v1608
      %v1969 = vsel %vm505, %v1449, %v1610
      %v1970 = vsel %vm505, %v1450, %v1612
      %v1971 = vsel %vm505, %v1451, %v1614
      %v1972 = vsel %vm505, %v1453, %v1616
      %v1973 = vsel %vm505, %v1454, %v1618
      %v1974 = vsel %vm505, %v1455, %v1620
      %v1975 = vsel %vm505, %v1457, %v1622
      %v1976 = vsel %vm505, %v1458, %v1624
      %v1977 = vsel %vm505, %v1459, %v1626
      %v1978 = vsel %vm505, %v1461, %v1628
      %v1979 = vsel %vm505, %v1462, %v1630
      %v1980 = vsel %vm505, %v1463, %v1632
      %v1981 = vsel %vm505, %v1465, %v1634
      %v1982 = vsel %vm505, %v1466, %v1636
      %v1983 = vsel %vm505, %v1467, %v1638
      %v1984 = vsel %vm505, %v1469, %v1640
      %v1985 = vsel %vm505, %v1470, %v1642
      %v1986 = vsel %vm505, %v1471, %v1644
      %v1987 = vsel %vm505, %v1473, %v1646
      %v1988 = vsel %vm505, %v1474, %v1648
      %v1989 = vsel %vm505, %v1475, %v1650
      %v1990 = vsel %vm505, %v1477, %v1652
      %v1991 = vsel %vm505, %v1478, %v1654
      %v1992 = vsel %vm505, %v1479, %v1656
      %v1993 = vsel %vm1189, %v1945, %v1802
      %v1994 = vsel %vm1189, %v1946, %v1804
      %v1995 = vsel %vm1189, %v1947, %v1806
      %v1996 = vsel %vm1189, %v1948, %v1808
      %v1997 = vsel %vm1189, %v1949, %v1810
      %v1998 = vsel %vm1189, %v1950, %v1812
      %v1999 = vsel %vm1189, %v1951, %v1814
      %v2000 = vsel %vm1189, %v1952, %v1816
      %v2001 = vsel %vm1189, %v1953, %v1818
      %v2002 = vsel %vm1189, %v1954, %v1820
      %v2003 = vsel %vm1189, %v1955, %v1822
      %v2004 = vsel %vm1189, %v1956, %v1824
      %v2005 = vsel %vm1189, %v1957, %v1826
      %v2006 = vsel %vm1189, %v1958, %v1828
      %v2007 = vsel %vm1189, %v1959, %v1830
      %v2008 = vsel %vm1189, %v1960, %v1832
      %v2009 = vsel %vm1189, %v1961, %v1834
      %v2010 = vsel %vm1189, %v1962, %v1836
      %v2011 = vsel %vm1189, %v1963, %v1838
      %v2012 = vsel %vm1189, %v1964, %v1840
      %v2013 = vsel %vm1189, %v1965, %v1842
      %v2014 = vsel %vm1189, %v1966, %v1844
      %v2015 = vsel %vm1189, %v1967, %v1846
      %v2016 = vsel %vm1189, %v1968, %v1848
      %v2017 = vsel %vm1189, %v1969, %v1850
      %v2018 = vsel %vm1189, %v1970, %v1852
      %v2019 = vsel %vm1189, %v1971, %v1854
      %v2020 = vsel %vm1189, %v1972, %v1856
      %v2021 = vsel %vm1189, %v1973, %v1858
      %v2022 = vsel %vm1189, %v1974, %v1860
      %v2023 = vsel %vm1189, %v1975, %v1862
      %v2024 = vsel %vm1189, %v1976, %v1864
      %v2025 = vsel %vm1189, %v1977, %v1866
      %v2026 = vsel %vm1189, %v1978, %v1868
      %v2027 = vsel %vm1189, %v1979, %v1870
      %v2028 = vsel %vm1189, %v1980, %v1872
      %v2029 = vsel %vm1189, %v1981, %v1874
      %v2030 = vsel %vm1189, %v1982, %v1876
      %v2031 = vsel %vm1189, %v1983, %v1878
      %v2032 = vsel %vm1189, %v1984, %v1880
      %v2033 = vsel %vm1189, %v1985, %v1882
      %v2034 = vsel %vm1189, %v1986, %v1884
      %v2035 = vsel %vm1189, %v1987, %v1886
      %v2036 = vsel %vm1189, %v1988, %v1888
      %v2037 = vsel %vm1189, %v1989, %v1890
      %v2038 = vsel %vm1189, %v1990, %v1892
      %v2039 = vsel %vm1189, %v1991, %v1894
      %v2040 = vsel %vm1189, %v1992, %v1896
      %v2089 = vrot.slane %v1993, 7
      %v2090 = vrot.slane %v1994, 7
      %v2091 = vsel %vm1286, %v2089, %v2090
      %v2092 = vrot.slane %v1995, 7
      %v2093 = vsel %vm1286, %v2090, %v2092
      %v2094 = vrot.slane %v1996, 7
      %v2095 = vrot.slane %v1997, 7
      %v2096 = vsel %vm1286, %v2094, %v2095
      %v2097 = vrot.slane %v1998, 7
      %v2098 = vsel %vm1286, %v2095, %v2097
      %v2099 = vrot.slane %v1999, 7
      %v2100 = vrot.slane %v2000, 7
      %v2101 = vsel %vm1286, %v2099, %v2100
      %v2102 = vrot.slane %v2001, 7
      %v2103 = vsel %vm1286, %v2100, %v2102
      %v2104 = vrot.slane %v2002, 7
      %v2105 = vrot.slane %v2003, 7
      %v2106 = vsel %vm1286, %v2104, %v2105
      %v2107 = vrot.slane %v2004, 7
      %v2108 = vsel %vm1286, %v2105, %v2107
      %v2109 = vrot.slane %v2005, 7
      %v2110 = vrot.slane %v2006, 7
      %v2111 = vsel %vm1286, %v2109, %v2110
      %v2112 = vrot.slane %v2007, 7
      %v2113 = vsel %vm1286, %v2110, %v2112
      %v2114 = vrot.slane %v2008, 7
      %v2115 = vrot.slane %v2009, 7
      %v2116 = vsel %vm1286, %v2114, %v2115
      %v2117 = vrot.slane %v2010, 7
      %v2118 = vsel %vm1286, %v2115, %v2117
      %v2119 = vrot.slane %v2011, 7
      %v2120 = vrot.slane %v2012, 7
      %v2121 = vsel %vm1286, %v2119, %v2120
      %v2122 = vrot.slane %v2013, 7
      %v2123 = vsel %vm1286, %v2120, %v2122
      %v2124 = vrot.slane %v2014, 7
      %v2125 = vrot.slane %v2015, 7
      %v2126 = vsel %vm1286, %v2124, %v2125
      %v2127 = vrot.slane %v2016, 7
      %v2128 = vsel %vm1286, %v2125, %v2127
      %v2129 = vrot.slane %v2017, 7
      %v2130 = vrot.slane %v2018, 7
      %v2131 = vsel %vm1286, %v2129, %v2130
      %v2132 = vrot.slane %v2019, 7
      %v2133 = vsel %vm1286, %v2130, %v2132
      %v2134 = vrot.slane %v2020, 7
      %v2135 = vrot.slane %v2021, 7
      %v2136 = vsel %vm1286, %v2134, %v2135
      %v2137 = vrot.slane %v2022, 7
      %v2138 = vsel %vm1286, %v2135, %v2137
      %v2139 = vrot.slane %v2023, 7
      %v2140 = vrot.slane %v2024, 7
      %v2141 = vsel %vm1286, %v2139, %v2140
      %v2142 = vrot.slane %v2025, 7
      %v2143 = vsel %vm1286, %v2140, %v2142
      %v2144 = vrot.slane %v2026, 7
      %v2145 = vrot.slane %v2027, 7
      %v2146 = vsel %vm1286, %v2144, %v2145
      %v2147 = vrot.slane %v2028, 7
      %v2148 = vsel %vm1286, %v2145, %v2147
      %v2149 = vrot.slane %v2029, 7
      %v2150 = vrot.slane %v2030, 7
      %v2151 = vsel %vm1286, %v2149, %v2150
      %v2152 = vrot.slane %v2031, 7
      %v2153 = vsel %vm1286, %v2150, %v2152
      %v2154 = vrot.slane %v2032, 7
      %v2155 = vrot.slane %v2033, 7
      %v2156 = vsel %vm1286, %v2154, %v2155
      %v2157 = vrot.slane %v2034, 7
      %v2158 = vsel %vm1286, %v2155, %v2157
      %v2159 = vrot.slane %v2035, 7
      %v2160 = vrot.slane %v2036, 7
      %v2161 = vsel %vm1286, %v2159, %v2160
      %v2162 = vrot.slane %v2037, 7
      %v2163 = vsel %vm1286, %v2160, %v2162
      %v2164 = vrot.slane %v2038, 7
      %v2165 = vrot.slane %v2039, 7
      %v2166 = vsel %vm1286, %v2164, %v2165
      %v2167 = vrot.slane %v2040, 7
      %v2168 = vsel %vm1286, %v2165, %v2167
      %v2201 = vpack.c.bf16 %v2093, %v2091
      %v2202 = vpack.c.bf16 %v2098, %v2096
      %v2203 = vpack.c.bf16 %v2103, %v2101
      %v2204 = vpack.c.bf16 %v2108, %v2106
      %v2205 = vpack.c.bf16 %v2113, %v2111
      %v2206 = vpack.c.bf16 %v2118, %v2116
      %v2207 = vpack.c.bf16 %v2123, %v2121
      %v2208 = vpack.c.bf16 %v2128, %v2126
      %v2209 = vpack.c.bf16 %v2133, %v2131
      %v2210 = vpack.c.bf16 %v2138, %v2136
      %v2211 = vpack.c.bf16 %v2143, %v2141
      %v2212 = vpack.c.bf16 %v2148, %v2146
      %v2213 = vpack.c.bf16 %v2153, %v2151
      %v2214 = vpack.c.bf16 %v2158, %v2156
      %v2215 = vpack.c.bf16 %v2163, %v2161
      %v2216 = vpack.c.bf16 %v2168, %v2166
      %s2217 = scalar_lea.vmem %s4, 8
      %v2218 = vld [vmem:[%s2217] sm:$0xf]
      %v2219 = vld [vmem:[%s2217 + $0x4] sm:$0x3]
      %v2222 = vunpack.c.l.b16 %v2218
      %v2223 = vunpack.c.l.b16 %v2219
      %v2224 = vpack.c.b16 %v2223, %v2222
      %vm2225 = vcmask 97280
      %v2227 = vsel %vm2225, %v2201, 0
      %v2230 = vsel %vm2225, %v2202, 0
      %v2233 = vsel %vm2225, %v2203, 0
      %v2236 = vsel %vm2225, %v2204, 0
      %v2239 = vsel %vm2225, %v2205, 0
      %v2242 = vsel %vm2225, %v2206, 0
      %v2245 = vsel %vm2225, %v2207, 0
      %v2248 = vsel %vm2225, %v2208, 0
      %v2251 = vsel %vm2225, %v2209, 0
      %v2254 = vsel %vm2225, %v2210, 0
      %v2257 = vsel %vm2225, %v2211, 0
      %v2260 = vsel %vm2225, %v2212, 0
      %v2263 = vsel %vm2225, %v2213, 0
      %v2266 = vsel %vm2225, %v2214, 0
      %v2269 = vsel %vm2225, %v2215, 0
      %v2272 = vsel %vm2225, %v2216, 0
      %v2275 = vsel %vm916, %v2224, 0
      %2277 = vmatprep.subr.bf16.mxu0 0
      %2278 = vmatpush1.bf16.msra.mxu0 0
      %2279 = vmatprep.subr.bf16.mxu0 0
      %2280 = vmatpush1.bf16.msra.mxu0 0
      %2281 = vmatprep.subr.bf16.mxu0 0
      %2282 = vmatpush1.bf16.msra.mxu0 0
      %2283 = vmatprep.subr.bf16.mxu0 0
      %2284 = vmatpush1.bf16.msra.mxu0 0
      %2285 = vmatprep.subr.bf16.mxu0 0
      %2286 = vmatpush1.bf16.msra.mxu0 0
      %2287 = vmatprep.subr.bf16.mxu0 0
      %2288 = vmatpush1.bf16.msra.mxu0 0
      %2289 = vmatprep.subr.bf16.mxu0 0
      %2290 = vmatpush1.bf16.msra.mxu0 0
      %2291 = vmatprep.subr.bf16.mxu0 0
      %2292 = vmatpush1.bf16.msra.mxu0 %v2275
      %2293 = vmatprep.subr.bf16.mxu0 0
      %2294 = vmatpush2.bf16.msra.mxu0 0
      %2295 = vmatprep.subr.bf16.mxu0 0
      %2296 = vmatpush2.bf16.msra.mxu0 0
      %2297 = vmatprep.subr.bf16.mxu0 0
      %2298 = vmatpush2.bf16.msra.mxu0 0
      %2299 = vmatprep.subr.bf16.mxu0 0
      %2300 = vmatpush2.bf16.msra.mxu0 0
      %2301 = vmatprep.subr.bf16.mxu0 0
      %2302 = vmatpush2.bf16.msra.mxu0 0
      %2303 = vmatprep.subr.bf16.mxu0 0
      %2304 = vmatpush2.bf16.msra.mxu0 0
      %2305 = vmatprep.subr.bf16.mxu0 0
      %2306 = vmatpush2.bf16.msra.mxu0 0
      %2307 = vmatprep.subr.bf16.mxu0 0
      %2308 = vmatpush2.bf16.msra.mxu0 0
      %2309 = vmatprep.mubr.bf16.mxu0 0
      %2310 = vmatmul.mubr.bf16.gmra.mxu0 %v2227
      %v2311 = vpop.f32.mrf.mxu0
      %v2312 = vadd.f32 0.0, %v2311
      %v2313 = vpop.f32.mrf.mxu0
      %v2314 = vpop.f32.mrf.mxu0
      %v2315 = vadd.f32 0.0, %v2314
      %v2316 = vpop.f32.mrf.mxu0
      %2317 = vmatprep.mubr.bf16.mxu0 0
      %2318 = vmatmul.mubr.bf16.gmra.mxu0 %v2230
      %v2319 = vpop.f32.mrf.mxu0
      %v2320 = vpop.f32.mrf.mxu0
      %v2321 = vpop.f32.mrf.mxu0
      %v2322 = vpop.f32.mrf.mxu0
      %2323 = vmatprep.mubr.bf16.mxu0 0
      %2324 = vmatmul.mubr.bf16.gmra.mxu0 %v2233
      %v2325 = vpop.f32.mrf.mxu0
      %v2326 = vadd.f32 0.0, %v2325
      %v2327 = vpop.f32.mrf.mxu0
      %v2328 = vpop.f32.mrf.mxu0
      %v2329 = vadd.f32 0.0, %v2328
      %v2330 = vpop.f32.mrf.mxu0
      %2331 = vmatprep.mubr.bf16.mxu0 0
      %2332 = vmatmul.mubr.bf16.gmra.mxu0 %v2236
      %v2333 = vpop.f32.mrf.mxu0
      %v2334 = vpop.f32.mrf.mxu0
      %v2335 = vpop.f32.mrf.mxu0
      %v2336 = vpop.f32.mrf.mxu0
      %2337 = vmatprep.mubr.bf16.mxu0 0
      %2338 = vmatmul.mubr.bf16.gmra.mxu0 %v2239
      %v2339 = vpop.f32.mrf.mxu0
      %v2340 = vadd.f32 0.0, %v2339
      %v2341 = vpop.f32.mrf.mxu0
      %v2342 = vpop.f32.mrf.mxu0
      %v2343 = vadd.f32 0.0, %v2342
      %v2344 = vpop.f32.mrf.mxu0
      %2345 = vmatprep.mubr.bf16.mxu0 0
      %2346 = vmatmul.mubr.bf16.gmra.mxu0 %v2242
      %v2347 = vpop.f32.mrf.mxu0
      %v2348 = vpop.f32.mrf.mxu0
      %v2349 = vpop.f32.mrf.mxu0
      %v2350 = vpop.f32.mrf.mxu0
      %2351 = vmatprep.mubr.bf16.mxu0 0
      %2352 = vmatmul.mubr.bf16.gmra.mxu0 %v2245
      %v2353 = vpop.f32.mrf.mxu0
      %v2354 = vadd.f32 0.0, %v2353
      %v2355 = vpop.f32.mrf.mxu0
      %v2356 = vpop.f32.mrf.mxu0
      %v2357 = vadd.f32 0.0, %v2356
      %v2358 = vpop.f32.mrf.mxu0
      %2359 = vmatprep.mubr.bf16.mxu0 0
      %2360 = vmatmul.mubr.bf16.gmra.mxu0 %v2248
      %v2361 = vpop.f32.mrf.mxu0
      %v2362 = vpop.f32.mrf.mxu0
      %v2363 = vpop.f32.mrf.mxu0
      %v2364 = vpop.f32.mrf.mxu0
      %2365 = vmatprep.mubr.bf16.mxu0 0
      %2366 = vmatmul.mubr.bf16.gmra.mxu0 %v2251
      %v2367 = vpop.f32.mrf.mxu0
      %v2368 = vadd.f32 0.0, %v2367
      %v2369 = vpop.f32.mrf.mxu0
      %v2370 = vpop.f32.mrf.mxu0
      %v2371 = vadd.f32 0.0, %v2370
      %v2372 = vpop.f32.mrf.mxu0
      %2373 = vmatprep.mubr.bf16.mxu0 0
      %2374 = vmatmul.mubr.bf16.gmra.mxu0 %v2254
      %v2375 = vpop.f32.mrf.mxu0
      %v2376 = vpop.f32.mrf.mxu0
      %v2377 = vpop.f32.mrf.mxu0
      %v2378 = vpop.f32.mrf.mxu0
      %2379 = vmatprep.mubr.bf16.mxu0 0
      %2380 = vmatmul.mubr.bf16.gmra.mxu0 %v2257
      %v2381 = vpop.f32.mrf.mxu0
      %v2382 = vadd.f32 0.0, %v2381
      %v2383 = vpop.f32.mrf.mxu0
      %v2384 = vpop.f32.mrf.mxu0
      %v2385 = vadd.f32 0.0, %v2384
      %v2386 = vpop.f32.mrf.mxu0
      %2387 = vmatprep.mubr.bf16.mxu0 0
      %2388 = vmatmul.mubr.bf16.gmra.mxu0 %v2260
      %v2389 = vpop.f32.mrf.mxu0
      %v2390 = vpop.f32.mrf.mxu0
      %v2391 = vpop.f32.mrf.mxu0
      %v2392 = vpop.f32.mrf.mxu0
      %2393 = vmatprep.mubr.bf16.mxu0 0
      %2394 = vmatmul.mubr.bf16.gmra.mxu0 %v2263
      %v2395 = vpop.f32.mrf.mxu0
      %v2396 = vadd.f32 0.0, %v2395
      %v2397 = vpop.f32.mrf.mxu0
      %v2398 = vpop.f32.mrf.mxu0
      %v2399 = vadd.f32 0.0, %v2398
      %v2400 = vpop.f32.mrf.mxu0
      %2401 = vmatprep.mubr.bf16.mxu0 0
      %2402 = vmatmul.mubr.bf16.gmra.mxu0 %v2266
      %v2403 = vpop.f32.mrf.mxu0
      %v2404 = vpop.f32.mrf.mxu0
      %v2405 = vpop.f32.mrf.mxu0
      %v2406 = vpop.f32.mrf.mxu0
      %2407 = vmatprep.mubr.bf16.mxu0 0
      %2408 = vmatmul.mubr.bf16.gmra.mxu0 %v2269
      %v2409 = vpop.f32.mrf.mxu0
      %v2410 = vadd.f32 0.0, %v2409
      %v2411 = vpop.f32.mrf.mxu0
      %v2412 = vpop.f32.mrf.mxu0
      %v2413 = vadd.f32 0.0, %v2412
      %v2414 = vpop.f32.mrf.mxu0
      %2415 = vmatprep.mubr.bf16.mxu0 0
      %2416 = vmatmul.mubr.bf16.gmra.mxu0 %v2272
      %v2417 = vpop.f32.mrf.mxu0
      %v2418 = vpop.f32.mrf.mxu0
      %v2419 = vpop.f32.mrf.mxu0
      %v2420 = vpop.f32.mrf.mxu0
      %2421 = vdwg.mxu0
      %v2424 = vunpack.c.l.b16 %v1415
      %v2425 = vunpack.c.l.b16 %v1416
      %v2426 = vpack.c.b16 %v2425, %v2424
      %v2428 = vsel %vm2225, %v1399, 0
      %v2431 = vsel %vm2225, %v1400, 0
      %v2434 = vsel %vm2225, %v1401, 0
      %v2437 = vsel %vm2225, %v1402, 0
      %v2440 = vsel %vm2225, %v1403, 0
      %v2443 = vsel %vm2225, %v1404, 0
      %v2446 = vsel %vm2225, %v1405, 0
      %v2449 = vsel %vm2225, %v1406, 0
      %v2452 = vsel %vm2225, %v1407, 0
      %v2455 = vsel %vm2225, %v1408, 0
      %v2458 = vsel %vm2225, %v1409, 0
      %v2461 = vsel %vm2225, %v1410, 0
      %v2464 = vsel %vm2225, %v1411, 0
      %v2467 = vsel %vm2225, %v1412, 0
      %v2470 = vsel %vm2225, %v1413, 0
      %v2473 = vsel %vm2225, %v1414, 0
      %v2476 = vsel %vm916, %v2426, 0
      %2478 = vmatprep.subr.bf16.mxu0 0
      %2479 = vmatpush1.bf16.msra.mxu0 0
      %2480 = vmatprep.subr.bf16.mxu0 0
      %2481 = vmatpush1.bf16.msra.mxu0 0
      %2482 = vmatprep.subr.bf16.mxu0 0
      %2483 = vmatpush1.bf16.msra.mxu0 0
      %2484 = vmatprep.subr.bf16.mxu0 0
      %2485 = vmatpush1.bf16.msra.mxu0 0
      %2486 = vmatprep.subr.bf16.mxu0 0
      %2487 = vmatpush1.bf16.msra.mxu0 0
      %2488 = vmatprep.subr.bf16.mxu0 0
      %2489 = vmatpush1.bf16.msra.mxu0 0
      %2490 = vmatprep.subr.bf16.mxu0 0
      %2491 = vmatpush1.bf16.msra.mxu0 0
      %2492 = vmatprep.subr.bf16.mxu0 0
      %2493 = vmatpush1.bf16.msra.mxu0 %v2476
      %2494 = vmatprep.subr.bf16.mxu0 0
      %2495 = vmatpush2.bf16.msra.mxu0 0
      %2496 = vmatprep.subr.bf16.mxu0 0
      %2497 = vmatpush2.bf16.msra.mxu0 0
      %2498 = vmatprep.subr.bf16.mxu0 0
      %2499 = vmatpush2.bf16.msra.mxu0 0
      %2500 = vmatprep.subr.bf16.mxu0 0
      %2501 = vmatpush2.bf16.msra.mxu0 0
      %2502 = vmatprep.subr.bf16.mxu0 0
      %2503 = vmatpush2.bf16.msra.mxu0 0
      %2504 = vmatprep.subr.bf16.mxu0 0
      %2505 = vmatpush2.bf16.msra.mxu0 0
      %2506 = vmatprep.subr.bf16.mxu0 0
      %2507 = vmatpush2.bf16.msra.mxu0 0
      %2508 = vmatprep.subr.bf16.mxu0 0
      %2509 = vmatpush2.bf16.msra.mxu0 0
      %2510 = vmatprep.mubr.bf16.mxu0 0
      %2511 = vmatmul.mubr.bf16.gmra.mxu0 %v2428
      %v2512 = vpop.f32.mrf.mxu0
      %v2513 = vadd.f32 %v2312, %v2512
      %v2514 = vpop.f32.mrf.mxu0
      %v2515 = vpop.f32.mrf.mxu0
      %v2516 = vadd.f32 %v2315, %v2515
      %v2517 = vpop.f32.mrf.mxu0
      %2518 = vmatprep.mubr.bf16.mxu0 0
      %2519 = vmatmul.mubr.bf16.gmra.mxu0 %v2431
      %v2520 = vpop.f32.mrf.mxu0
      %v2521 = vpop.f32.mrf.mxu0
      %v2522 = vpop.f32.mrf.mxu0
      %v2523 = vpop.f32.mrf.mxu0
      %2524 = vmatprep.mubr.bf16.mxu0 0
      %2525 = vmatmul.mubr.bf16.gmra.mxu0 %v2434
      %v2526 = vpop.f32.mrf.mxu0
      %v2527 = vadd.f32 %v2326, %v2526
      %v2528 = vpop.f32.mrf.mxu0
      %v2529 = vpop.f32.mrf.mxu0
      %v2530 = vadd.f32 %v2329, %v2529
      %v2531 = vpop.f32.mrf.mxu0
      %2532 = vmatprep.mubr.bf16.mxu0 0
      %2533 = vmatmul.mubr.bf16.gmra.mxu0 %v2437
      %v2534 = vpop.f32.mrf.mxu0
      %v2535 = vpop.f32.mrf.mxu0
      %v2536 = vpop.f32.mrf.mxu0
      %v2537 = vpop.f32.mrf.mxu0
      %2538 = vmatprep.mubr.bf16.mxu0 0
      %2539 = vmatmul.mubr.bf16.gmra.mxu0 %v2440
      %v2540 = vpop.f32.mrf.mxu0
      %v2541 = vadd.f32 %v2340, %v2540
      %v2542 = vpop.f32.mrf.mxu0
      %v2543 = vpop.f32.mrf.mxu0
      %v2544 = vadd.f32 %v2343, %v2543
      %v2545 = vpop.f32.mrf.mxu0
      %2546 = vmatprep.mubr.bf16.mxu0 0
      %2547 = vmatmul.mubr.bf16.gmra.mxu0 %v2443
      %v2548 = vpop.f32.mrf.mxu0
      %v2549 = vpop.f32.mrf.mxu0
      %v2550 = vpop.f32.mrf.mxu0
      %v2551 = vpop.f32.mrf.mxu0
      %2552 = vmatprep.mubr.bf16.mxu0 0
      %2553 = vmatmul.mubr.bf16.gmra.mxu0 %v2446
      %v2554 = vpop.f32.mrf.mxu0
      %v2555 = vadd.f32 %v2354, %v2554
      %v2556 = vpop.f32.mrf.mxu0
      %v2557 = vpop.f32.mrf.mxu0
      %v2558 = vadd.f32 %v2357, %v2557
      %v2559 = vpop.f32.mrf.mxu0
      %2560 = vmatprep.mubr.bf16.mxu0 0
      %2561 = vmatmul.mubr.bf16.gmra.mxu0 %v2449
      %v2562 = vpop.f32.mrf.mxu0
      %v2563 = vpop.f32.mrf.mxu0
      %v2564 = vpop.f32.mrf.mxu0
      %v2565 = vpop.f32.mrf.mxu0
      %2566 = vmatprep.mubr.bf16.mxu0 0
      %2567 = vmatmul.mubr.bf16.gmra.mxu0 %v2452
      %v2568 = vpop.f32.mrf.mxu0
      %v2569 = vadd.f32 %v2368, %v2568
      %v2570 = vpop.f32.mrf.mxu0
      %v2571 = vpop.f32.mrf.mxu0
      %v2572 = vadd.f32 %v2371, %v2571
      %v2573 = vpop.f32.mrf.mxu0
      %2574 = vmatprep.mubr.bf16.mxu0 0
      %2575 = vmatmul.mubr.bf16.gmra.mxu0 %v2455
      %v2576 = vpop.f32.mrf.mxu0
      %v2577 = vpop.f32.mrf.mxu0
      %v2578 = vpop.f32.mrf.mxu0
      %v2579 = vpop.f32.mrf.mxu0
      %2580 = vmatprep.mubr.bf16.mxu0 0
      %2581 = vmatmul.mubr.bf16.gmra.mxu0 %v2458
      %v2582 = vpop.f32.mrf.mxu0
      %v2583 = vadd.f32 %v2382, %v2582
      %v2584 = vpop.f32.mrf.mxu0
      %v2585 = vpop.f32.mrf.mxu0
      %v2586 = vadd.f32 %v2385, %v2585
      %v2587 = vpop.f32.mrf.mxu0
      %2588 = vmatprep.mubr.bf16.mxu0 0
      %2589 = vmatmul.mubr.bf16.gmra.mxu0 %v2461
      %v2590 = vpop.f32.mrf.mxu0
      %v2591 = vpop.f32.mrf.mxu0
      %v2592 = vpop.f32.mrf.mxu0
      %v2593 = vpop.f32.mrf.mxu0
      %2594 = vmatprep.mubr.bf16.mxu0 0
      %2595 = vmatmul.mubr.bf16.gmra.mxu0 %v2464
      %v2596 = vpop.f32.mrf.mxu0
      %v2597 = vadd.f32 %v2396, %v2596
      %v2598 = vpop.f32.mrf.mxu0
      %v2599 = vpop.f32.mrf.mxu0
      %v2600 = vadd.f32 %v2399, %v2599
      %v2601 = vpop.f32.mrf.mxu0
      %2602 = vmatprep.mubr.bf16.mxu0 0
      %2603 = vmatmul.mubr.bf16.gmra.mxu0 %v2467
      %v2604 = vpop.f32.mrf.mxu0
      %v2605 = vpop.f32.mrf.mxu0
      %v2606 = vpop.f32.mrf.mxu0
      %v2607 = vpop.f32.mrf.mxu0
      %2608 = vmatprep.mubr.bf16.mxu0 0
      %2609 = vmatmul.mubr.bf16.gmra.mxu0 %v2470
      %v2610 = vpop.f32.mrf.mxu0
      %v2611 = vadd.f32 %v2410, %v2610
      %v2612 = vpop.f32.mrf.mxu0
      %v2613 = vpop.f32.mrf.mxu0
      %v2614 = vadd.f32 %v2413, %v2613
      %v2615 = vpop.f32.mrf.mxu0
      %2616 = vmatprep.mubr.bf16.mxu0 0
      %2617 = vmatmul.mubr.bf16.gmra.mxu0 %v2473
      %v2618 = vpop.f32.mrf.mxu0
      %v2619 = vpop.f32.mrf.mxu0
      %v2620 = vpop.f32.mrf.mxu0
      %v2621 = vpop.f32.mrf.mxu0
      %2622 = vdwg.mxu0
      %s2623 = scalar_lea.vmem [#allocation2], 64
      %v2624 = vld [vmem:[%s2623] sm:$0xff]
      %v2625 = vld [vmem:[%s2623 + $0x8] sm:$0xff]
      %v2626 = vld [vmem:[%s2623 + $0x10] sm:$0xff]
      %v2627 = vld [vmem:[%s2623 + $0x18] sm:$0xff]
      %v2628 = vld [vmem:[%s2623 + $0x20] sm:$0xff]
      %v2629 = vld [vmem:[%s2623 + $0x28] sm:$0xff]
      %v2630 = vld [vmem:[%s2623 + $0x30] sm:$0xff]
      %v2631 = vld [vmem:[%s2623 + $0x38] sm:$0xff]
      %v2632 = vld [vmem:[%s2623 + $0x40] sm:$0xff]
      %v2633 = vld [vmem:[%s2623 + $0x48] sm:$0xff]
      %v2634 = vld [vmem:[%s2623 + $0x50] sm:$0xff]
      %v2635 = vld [vmem:[%s2623 + $0x58] sm:$0xff]
      %v2636 = vld [vmem:[%s2623 + $0x60] sm:$0xff]
      %v2637 = vld [vmem:[%s2623 + $0x68] sm:$0xff]
      %v2638 = vld [vmem:[%s2623 + $0x70] sm:$0xff]
      %v2639 = vld [vmem:[%s2623 + $0x78] sm:$0xff]
      %v2640 = vld [vmem:[%s2623 + $0x80] sm:$0xff]
      %v2641 = vld [vmem:[%s2623 + $0x88] sm:$0xff]
      %v2642 = vld [vmem:[%s2623 + $0x90] sm:$0xff]
      %v2643 = vld [vmem:[%s2623 + $0x98] sm:$0xff]
      %v2644 = vld [vmem:[%s2623 + $0xa0] sm:$0xff]
      %v2645 = vld [vmem:[%s2623 + $0xa8] sm:$0xff]
      %v2646 = vld [vmem:[%s2623 + $0xb0] sm:$0xff]
      %v2647 = vld [vmem:[%s2623 + $0xb8] sm:$0xff]
      %v2648 = vld [vmem:[%s2623 + $0xc0] sm:$0xff]
      %v2649 = vld [vmem:[%s2623 + $0xc8] sm:$0xff]
      %v2650 = vld [vmem:[%s2623 + $0xd0] sm:$0xff]
      %v2651 = vld [vmem:[%s2623 + $0xd8] sm:$0xff]
      %v2652 = vld [vmem:[%s2623 + $0xe0] sm:$0xff]
      %v2653 = vld [vmem:[%s2623 + $0xe8] sm:$0xff]
      %v2654 = vld [vmem:[%s2623 + $0xf0] sm:$0xff]
      %v2655 = vld [vmem:[%s2623 + $0xf8] sm:$0xff]
      %v2656 = vld [vmem:[%s2623 + $0x100] sm:$0xff]
      %v2657 = vld [vmem:[%s2623 + $0x108] sm:$0xff]
      %v2658 = vld [vmem:[%s2623 + $0x110] sm:$0xff]
      %v2659 = vld [vmem:[%s2623 + $0x118] sm:$0xff]
      %v2660 = vld [vmem:[%s2623 + $0x120] sm:$0xff]
      %v2661 = vld [vmem:[%s2623 + $0x128] sm:$0xff]
      %v2662 = vld [vmem:[%s2623 + $0x130] sm:$0xff]
      %v2663 = vld [vmem:[%s2623 + $0x138] sm:$0xff]
      %v2664 = vld [vmem:[%s2623 + $0x140] sm:$0xff]
      %v2665 = vld [vmem:[%s2623 + $0x148] sm:$0xff]
      %v2666 = vld [vmem:[%s2623 + $0x150] sm:$0xff]
      %v2667 = vld [vmem:[%s2623 + $0x158] sm:$0xff]
      %v2668 = vld [vmem:[%s2623 + $0x160] sm:$0xff]
      %v2669 = vld [vmem:[%s2623 + $0x168] sm:$0xff]
      %v2670 = vld [vmem:[%s2623 + $0x170] sm:$0xff]
      %v2671 = vld [vmem:[%s2623 + $0x178] sm:$0xff]
      %v2672 = vld [vmem:[%s2623 + $0x180] sm:$0xff]
      %v2673 = vld [vmem:[%s2623 + $0x188] sm:$0xff]
      %v2674 = vld [vmem:[%s2623 + $0x190] sm:$0xff]
      %v2675 = vld [vmem:[%s2623 + $0x198] sm:$0xff]
      %v2676 = vld [vmem:[%s2623 + $0x1a0] sm:$0xff]
      %v2677 = vld [vmem:[%s2623 + $0x1a8] sm:$0xff]
      %v2678 = vld [vmem:[%s2623 + $0x1b0] sm:$0xff]
      %v2679 = vld [vmem:[%s2623 + $0x1b8] sm:$0xff]
      %v2680 = vld [vmem:[%s2623 + $0x1c0] sm:$0xff]
      %v2681 = vld [vmem:[%s2623 + $0x1c8] sm:$0xff]
      %v2682 = vld [vmem:[%s2623 + $0x1d0] sm:$0xff]
      %v2683 = vld [vmem:[%s2623 + $0x1d8] sm:$0xff]
      %v2684 = vld [vmem:[%s2623 + $0x1e0] sm:$0xff]
      %v2685 = vld [vmem:[%s2623 + $0x1e8] sm:$0xff]
      %v2686 = vld [vmem:[%s2623 + $0x1f0] sm:$0xff]
      %v2687 = vld [vmem:[%s2623 + $0x1f8] sm:$0xff]
      %v2720 = vrot.slane %v2625, 1
      %v2721 = vrot.slane %v2626, 1
      %v2722 = vsel %vm707, %v2720, %v2721
      %v2723 = vrot.slane %v2629, 1
      %v2724 = vrot.slane %v2630, 1
      %v2725 = vsel %vm707, %v2723, %v2724
      %v2726 = vrot.slane %v2633, 1
      %v2727 = vrot.slane %v2634, 1
      %v2728 = vsel %vm707, %v2726, %v2727
      %v2729 = vrot.slane %v2637, 1
      %v2730 = vrot.slane %v2638, 1
      %v2731 = vsel %vm707, %v2729, %v2730
      %v2732 = vrot.slane %v2641, 1
      %v2733 = vrot.slane %v2642, 1
      %v2734 = vsel %vm707, %v2732, %v2733
      %v2735 = vrot.slane %v2645, 1
      %v2736 = vrot.slane %v2646, 1
      %v2737 = vsel %vm707, %v2735, %v2736
      %v2738 = vrot.slane %v2649, 1
      %v2739 = vrot.slane %v2650, 1
      %v2740 = vsel %vm707, %v2738, %v2739
      %v2741 = vrot.slane %v2653, 1
      %v2742 = vrot.slane %v2654, 1
      %v2743 = vsel %vm707, %v2741, %v2742
      %v2744 = vrot.slane %v2657, 1
      %v2745 = vrot.slane %v2658, 1
      %v2746 = vsel %vm707, %v2744, %v2745
      %v2747 = vrot.slane %v2661, 1
      %v2748 = vrot.slane %v2662, 1
      %v2749 = vsel %vm707, %v2747, %v2748
      %v2750 = vrot.slane %v2665, 1
      %v2751 = vrot.slane %v2666, 1
      %v2752 = vsel %vm707, %v2750, %v2751
      %v2753 = vrot.slane %v2669, 1
      %v2754 = vrot.slane %v2670, 1
      %v2755 = vsel %vm707, %v2753, %v2754
      %v2756 = vrot.slane %v2673, 1
      %v2757 = vrot.slane %v2674, 1
      %v2758 = vsel %vm707, %v2756, %v2757
      %v2759 = vrot.slane %v2677, 1
      %v2760 = vrot.slane %v2678, 1
      %v2761 = vsel %vm707, %v2759, %v2760
      %v2762 = vrot.slane %v2681, 1
      %v2763 = vrot.slane %v2682, 1
      %v2764 = vsel %vm707, %v2762, %v2763
      %v2765 = vrot.slane %v2685, 1
      %v2766 = vrot.slane %v2686, 1
      %v2767 = vsel %vm707, %v2765, %v2766
      %2768 = vrot.lane.b32.xlu0 %v2720, 4
      %v2769 = vpop.permute.xlu0 %2768
      %2770 = vrot.lane.b32.xlu0 %v2722, 4
      %v2771 = vpop.permute.xlu0 %2770
      %2772 = vrot.lane.b32.xlu0 %v2721, 4
      %v2773 = vpop.permute.xlu0 %2772
      %2774 = vrot.lane.b32.xlu0 %v2723, 4
      %v2775 = vpop.permute.xlu0 %2774
      %2776 = vrot.lane.b32.xlu0 %v2725, 4
      %v2777 = vpop.permute.xlu0 %2776
      %2778 = vrot.lane.b32.xlu0 %v2724, 4
      %v2779 = vpop.permute.xlu0 %2778
      %2780 = vrot.lane.b32.xlu0 %v2726, 4
      %v2781 = vpop.permute.xlu0 %2780
      %2782 = vrot.lane.b32.xlu0 %v2728, 4
      %v2783 = vpop.permute.xlu0 %2782
      %2784 = vrot.lane.b32.xlu0 %v2727, 4
      %v2785 = vpop.permute.xlu0 %2784
      %2786 = vrot.lane.b32.xlu0 %v2729, 4
      %v2787 = vpop.permute.xlu0 %2786
      %2788 = vrot.lane.b32.xlu0 %v2731, 4
      %v2789 = vpop.permute.xlu0 %2788
      %2790 = vrot.lane.b32.xlu0 %v2730, 4
      %v2791 = vpop.permute.xlu0 %2790
      %2792 = vrot.lane.b32.xlu0 %v2732, 4
      %v2793 = vpop.permute.xlu0 %2792
      %2794 = vrot.lane.b32.xlu0 %v2734, 4
      %v2795 = vpop.permute.xlu0 %2794
      %2796 = vrot.lane.b32.xlu0 %v2733, 4
      %v2797 = vpop.permute.xlu0 %2796
      %2798 = vrot.lane.b32.xlu0 %v2735, 4
      %v2799 = vpop.permute.xlu0 %2798
      %2800 = vrot.lane.b32.xlu0 %v2737, 4
      %v2801 = vpop.permute.xlu0 %2800
      %2802 = vrot.lane.b32.xlu0 %v2736, 4
      %v2803 = vpop.permute.xlu0 %2802
      %2804 = vrot.lane.b32.xlu0 %v2738, 4
      %v2805 = vpop.permute.xlu0 %2804
      %2806 = vrot.lane.b32.xlu0 %v2740, 4
      %v2807 = vpop.permute.xlu0 %2806
      %2808 = vrot.lane.b32.xlu0 %v2739, 4
      %v2809 = vpop.permute.xlu0 %2808
      %2810 = vrot.lane.b32.xlu0 %v2741, 4
      %v2811 = vpop.permute.xlu0 %2810
      %2812 = vrot.lane.b32.xlu0 %v2743, 4
      %v2813 = vpop.permute.xlu0 %2812
      %2814 = vrot.lane.b32.xlu0 %v2742, 4
      %v2815 = vpop.permute.xlu0 %2814
      %2816 = vrot.lane.b32.xlu0 %v2744, 4
      %v2817 = vpop.permute.xlu0 %2816
      %2818 = vrot.lane.b32.xlu0 %v2746, 4
      %v2819 = vpop.permute.xlu0 %2818
      %2820 = vrot.lane.b32.xlu0 %v2745, 4
      %v2821 = vpop.permute.xlu0 %2820
      %2822 = vrot.lane.b32.xlu0 %v2747, 4
      %v2823 = vpop.permute.xlu0 %2822
      %2824 = vrot.lane.b32.xlu0 %v2749, 4
      %v2825 = vpop.permute.xlu0 %2824
      %2826 = vrot.lane.b32.xlu0 %v2748, 4
      %v2827 = vpop.permute.xlu0 %2826
      %2828 = vrot.lane.b32.xlu0 %v2750, 4
      %v2829 = vpop.permute.xlu0 %2828
      %2830 = vrot.lane.b32.xlu0 %v2752, 4
      %v2831 = vpop.permute.xlu0 %2830
      %2832 = vrot.lane.b32.xlu0 %v2751, 4
      %v2833 = vpop.permute.xlu0 %2832
      %2834 = vrot.lane.b32.xlu0 %v2753, 4
      %v2835 = vpop.permute.xlu0 %2834
      %2836 = vrot.lane.b32.xlu0 %v2755, 4
      %v2837 = vpop.permute.xlu0 %2836
      %2838 = vrot.lane.b32.xlu0 %v2754, 4
      %v2839 = vpop.permute.xlu0 %2838
      %2840 = vrot.lane.b32.xlu0 %v2756, 4
      %v2841 = vpop.permute.xlu0 %2840
      %2842 = vrot.lane.b32.xlu0 %v2758, 4
      %v2843 = vpop.permute.xlu0 %2842
      %2844 = vrot.lane.b32.xlu0 %v2757, 4
      %v2845 = vpop.permute.xlu0 %2844
      %2846 = vrot.lane.b32.xlu0 %v2759, 4
      %v2847 = vpop.permute.xlu0 %2846
      %2848 = vrot.lane.b32.xlu0 %v2761, 4
      %v2849 = vpop.permute.xlu0 %2848
      %2850 = vrot.lane.b32.xlu0 %v2760, 4
      %v2851 = vpop.permute.xlu0 %2850
      %2852 = vrot.lane.b32.xlu0 %v2762, 4
      %v2853 = vpop.permute.xlu0 %2852
      %2854 = vrot.lane.b32.xlu0 %v2764, 4
      %v2855 = vpop.permute.xlu0 %2854
      %2856 = vrot.lane.b32.xlu0 %v2763, 4
      %v2857 = vpop.permute.xlu0 %2856
      %2858 = vrot.lane.b32.xlu0 %v2765, 4
      %v2859 = vpop.permute.xlu0 %2858
      %2860 = vrot.lane.b32.xlu0 %v2767, 4
      %v2861 = vpop.permute.xlu0 %2860
      %2862 = vrot.lane.b32.xlu0 %v2766, 4
      %v2863 = vpop.permute.xlu0 %2862
      %v2928 = vrot.slane %v2625, 2
      %v2929 = vrot.slane %v2626, 2
      %v2930 = vsel %vm916, %v2928, %v2929
      %v2931 = vrot.slane %v2627, 2
      %v2932 = vsel %vm916, %v2929, %v2931
      %v2933 = vrot.slane %v2629, 2
      %v2934 = vrot.slane %v2630, 2
      %v2935 = vsel %vm916, %v2933, %v2934
      %v2936 = vrot.slane %v2631, 2
      %v2937 = vsel %vm916, %v2934, %v2936
      %v2938 = vrot.slane %v2633, 2
      %v2939 = vrot.slane %v2634, 2
      %v2940 = vsel %vm916, %v2938, %v2939
      %v2941 = vrot.slane %v2635, 2
      %v2942 = vsel %vm916, %v2939, %v2941
      %v2943 = vrot.slane %v2637, 2
      %v2944 = vrot.slane %v2638, 2
      %v2945 = vsel %vm916, %v2943, %v2944
      %v2946 = vrot.slane %v2639, 2
      %v2947 = vsel %vm916, %v2944, %v2946
      %v2948 = vrot.slane %v2641, 2
      %v2949 = vrot.slane %v2642, 2
      %v2950 = vsel %vm916, %v2948, %v2949
      %v2951 = vrot.slane %v2643, 2
      %v2952 = vsel %vm916, %v2949, %v2951
      %v2953 = vrot.slane %v2645, 2
      %v2954 = vrot.slane %v2646, 2
      %v2955 = vsel %vm916, %v2953, %v2954
      %v2956 = vrot.slane %v2647, 2
      %v2957 = vsel %vm916, %v2954, %v2956
      %v2958 = vrot.slane %v2649, 2
      %v2959 = vrot.slane %v2650, 2
      %v2960 = vsel %vm916, %v2958, %v2959
      %v2961 = vrot.slane %v2651, 2
      %v2962 = vsel %vm916, %v2959, %v2961
      %v2963 = vrot.slane %v2653, 2
      %v2964 = vrot.slane %v2654, 2
      %v2965 = vsel %vm916, %v2963, %v2964
      %v2966 = vrot.slane %v2655, 2
      %v2967 = vsel %vm916, %v2964, %v2966
      %v2968 = vrot.slane %v2657, 2
      %v2969 = vrot.slane %v2658, 2
      %v2970 = vsel %vm916, %v2968, %v2969
      %v2971 = vrot.slane %v2659, 2
      %v2972 = vsel %vm916, %v2969, %v2971
      %v2973 = vrot.slane %v2661, 2
      %v2974 = vrot.slane %v2662, 2
      %v2975 = vsel %vm916, %v2973, %v2974
      %v2976 = vrot.slane %v2663, 2
      %v2977 = vsel %vm916, %v2974, %v2976
      %v2978 = vrot.slane %v2665, 2
      %v2979 = vrot.slane %v2666, 2
      %v2980 = vsel %vm916, %v2978, %v2979
      %v2981 = vrot.slane %v2667, 2
      %v2982 = vsel %vm916, %v2979, %v2981
      %v2983 = vrot.slane %v2669, 2
      %v2984 = vrot.slane %v2670, 2
      %v2985 = vsel %vm916, %v2983, %v2984
      %v2986 = vrot.slane %v2671, 2
      %v2987 = vsel %vm916, %v2984, %v2986
      %v2988 = vrot.slane %v2673, 2
      %v2989 = vrot.slane %v2674, 2
      %v2990 = vsel %vm916, %v2988, %v2989
      %v2991 = vrot.slane %v2675, 2
      %v2992 = vsel %vm916, %v2989, %v2991
      %v2993 = vrot.slane %v2677, 2
      %v2994 = vrot.slane %v2678, 2
      %v2995 = vsel %vm916, %v2993, %v2994
      %v2996 = vrot.slane %v2679, 2
      %v2997 = vsel %vm916, %v2994, %v2996
      %v2998 = vrot.slane %v2681, 2
      %v2999 = vrot.slane %v2682, 2
      %v3000 = vsel %vm916, %v2998, %v2999
      %v3001 = vrot.slane %v2683, 2
      %v3002 = vsel %vm916, %v2999, %v3001
      %v3003 = vrot.slane %v2685, 2
      %v3004 = vrot.slane %v2686, 2
      %v3005 = vsel %vm916, %v3003, %v3004
      %v3006 = vrot.slane %v2687, 2
      %v3007 = vsel %vm916, %v3004, %v3006
      %3008 = vrot.lane.b32.xlu0 %v2928, 8
      %v3009 = vpop.permute.xlu0 %3008
      %3010 = vrot.lane.b32.xlu0 %v2930, 8
      %v3011 = vpop.permute.xlu0 %3010
      %3012 = vrot.lane.b32.xlu0 %v2932, 8
      %v3013 = vpop.permute.xlu0 %3012
      %3014 = vrot.lane.b32.xlu0 %v2933, 8
      %v3015 = vpop.permute.xlu0 %3014
      %3016 = vrot.lane.b32.xlu0 %v2935, 8
      %v3017 = vpop.permute.xlu0 %3016
      %3018 = vrot.lane.b32.xlu0 %v2937, 8
      %v3019 = vpop.permute.xlu0 %3018
      %3020 = vrot.lane.b32.xlu0 %v2938, 8
      %v3021 = vpop.permute.xlu0 %3020
      %3022 = vrot.lane.b32.xlu0 %v2940, 8
      %v3023 = vpop.permute.xlu0 %3022
      %3024 = vrot.lane.b32.xlu0 %v2942, 8
      %v3025 = vpop.permute.xlu0 %3024
      %3026 = vrot.lane.b32.xlu0 %v2943, 8
      %v3027 = vpop.permute.xlu0 %3026
      %3028 = vrot.lane.b32.xlu0 %v2945, 8
      %v3029 = vpop.permute.xlu0 %3028
      %3030 = vrot.lane.b32.xlu0 %v2947, 8
      %v3031 = vpop.permute.xlu0 %3030
      %3032 = vrot.lane.b32.xlu0 %v2948, 8
      %v3033 = vpop.permute.xlu0 %3032
      %3034 = vrot.lane.b32.xlu0 %v2950, 8
      %v3035 = vpop.permute.xlu0 %3034
      %3036 = vrot.lane.b32.xlu0 %v2952, 8
      %v3037 = vpop.permute.xlu0 %3036
      %3038 = vrot.lane.b32.xlu0 %v2953, 8
      %v3039 = vpop.permute.xlu0 %3038
      %3040 = vrot.lane.b32.xlu0 %v2955, 8
      %v3041 = vpop.permute.xlu0 %3040
      %3042 = vrot.lane.b32.xlu0 %v2957, 8
      %v3043 = vpop.permute.xlu0 %3042
      %3044 = vrot.lane.b32.xlu0 %v2958, 8
      %v3045 = vpop.permute.xlu0 %3044
      %3046 = vrot.lane.b32.xlu0 %v2960, 8
      %v3047 = vpop.permute.xlu0 %3046
      %3048 = vrot.lane.b32.xlu0 %v2962, 8
      %v3049 = vpop.permute.xlu0 %3048
      %3050 = vrot.lane.b32.xlu0 %v2963, 8
      %v3051 = vpop.permute.xlu0 %3050
      %3052 = vrot.lane.b32.xlu0 %v2965, 8
      %v3053 = vpop.permute.xlu0 %3052
      %3054 = vrot.lane.b32.xlu0 %v2967, 8
      %v3055 = vpop.permute.xlu0 %3054
      %3056 = vrot.lane.b32.xlu0 %v2968, 8
      %v3057 = vpop.permute.xlu0 %3056
      %3058 = vrot.lane.b32.xlu0 %v2970, 8
      %v3059 = vpop.permute.xlu0 %3058
      %3060 = vrot.lane.b32.xlu0 %v2972, 8
      %v3061 = vpop.permute.xlu0 %3060
      %3062 = vrot.lane.b32.xlu0 %v2973, 8
      %v3063 = vpop.permute.xlu0 %3062
      %3064 = vrot.lane.b32.xlu0 %v2975, 8
      %v3065 = vpop.permute.xlu0 %3064
      %3066 = vrot.lane.b32.xlu0 %v2977, 8
      %v3067 = vpop.permute.xlu0 %3066
      %3068 = vrot.lane.b32.xlu0 %v2978, 8
      %v3069 = vpop.permute.xlu0 %3068
      %3070 = vrot.lane.b32.xlu0 %v2980, 8
      %v3071 = vpop.permute.xlu0 %3070
      %3072 = vrot.lane.b32.xlu0 %v2982, 8
      %v3073 = vpop.permute.xlu0 %3072
      %3074 = vrot.lane.b32.xlu0 %v2983, 8
      %v3075 = vpop.permute.xlu0 %3074
      %3076 = vrot.lane.b32.xlu0 %v2985, 8
      %v3077 = vpop.permute.xlu0 %3076
      %3078 = vrot.lane.b32.xlu0 %v2987, 8
      %v3079 = vpop.permute.xlu0 %3078
      %3080 = vrot.lane.b32.xlu0 %v2988, 8
      %v3081 = vpop.permute.xlu0 %3080
      %3082 = vrot.lane.b32.xlu0 %v2990, 8
      %v3083 = vpop.permute.xlu0 %3082
      %3084 = vrot.lane.b32.xlu0 %v2992, 8
      %v3085 = vpop.permute.xlu0 %3084
      %3086 = vrot.lane.b32.xlu0 %v2993, 8
      %v3087 = vpop.permute.xlu0 %3086
      %3088 = vrot.lane.b32.xlu0 %v2995, 8
      %v3089 = vpop.permute.xlu0 %3088
      %3090 = vrot.lane.b32.xlu0 %v2997, 8
      %v3091 = vpop.permute.xlu0 %3090
      %3092 = vrot.lane.b32.xlu0 %v2998, 8
      %v3093 = vpop.permute.xlu0 %3092
      %3094 = vrot.lane.b32.xlu0 %v3000, 8
      %v3095 = vpop.permute.xlu0 %3094
      %3096 = vrot.lane.b32.xlu0 %v3002, 8
      %v3097 = vpop.permute.xlu0 %3096
      %3098 = vrot.lane.b32.xlu0 %v3003, 8
      %v3099 = vpop.permute.xlu0 %3098
      %3100 = vrot.lane.b32.xlu0 %v3005, 8
      %v3101 = vpop.permute.xlu0 %3100
      %3102 = vrot.lane.b32.xlu0 %v3007, 8
      %v3103 = vpop.permute.xlu0 %3102
      %v3152 = vsel %vm505, %v2624, %v2769
      %v3153 = vsel %vm505, %v2625, %v2771
      %v3154 = vsel %vm505, %v2626, %v2773
      %v3155 = vsel %vm505, %v2628, %v2775
      %v3156 = vsel %vm505, %v2629, %v2777
      %v3157 = vsel %vm505, %v2630, %v2779
      %v3158 = vsel %vm505, %v2632, %v2781
      %v3159 = vsel %vm505, %v2633, %v2783
      %v3160 = vsel %vm505, %v2634, %v2785
      %v3161 = vsel %vm505, %v2636, %v2787
      %v3162 = vsel %vm505, %v2637, %v2789
      %v3163 = vsel %vm505, %v2638, %v2791
      %v3164 = vsel %vm505, %v2640, %v2793
      %v3165 = vsel %vm505, %v2641, %v2795
      %v3166 = vsel %vm505, %v2642, %v2797
      %v3167 = vsel %vm505, %v2644, %v2799
      %v3168 = vsel %vm505, %v2645, %v2801
      %v3169 = vsel %vm505, %v2646, %v2803
      %v3170 = vsel %vm505, %v2648, %v2805
      %v3171 = vsel %vm505, %v2649, %v2807
      %v3172 = vsel %vm505, %v2650, %v2809
      %v3173 = vsel %vm505, %v2652, %v2811
      %v3174 = vsel %vm505, %v2653, %v2813
      %v3175 = vsel %vm505, %v2654, %v2815
      %v3176 = vsel %vm505, %v2656, %v2817
      %v3177 = vsel %vm505, %v2657, %v2819
      %v3178 = vsel %vm505, %v2658, %v2821
      %v3179 = vsel %vm505, %v2660, %v2823
      %v3180 = vsel %vm505, %v2661, %v2825
      %v3181 = vsel %vm505, %v2662, %v2827
      %v3182 = vsel %vm505, %v2664, %v2829
      %v3183 = vsel %vm505, %v2665, %v2831
      %v3184 = vsel %vm505, %v2666, %v2833
      %v3185 = vsel %vm505, %v2668, %v2835
      %v3186 = vsel %vm505, %v2669, %v2837
      %v3187 = vsel %vm505, %v2670, %v2839
      %v3188 = vsel %vm505, %v2672, %v2841
      %v3189 = vsel %vm505, %v2673, %v2843
      %v3190 = vsel %vm505, %v2674, %v2845
      %v3191 = vsel %vm505, %v2676, %v2847
      %v3192 = vsel %vm505, %v2677, %v2849
      %v3193 = vsel %vm505, %v2678, %v2851
      %v3194 = vsel %vm505, %v2680, %v2853
      %v3195 = vsel %vm505, %v2681, %v2855
      %v3196 = vsel %vm505, %v2682, %v2857
      %v3197 = vsel %vm505, %v2684, %v2859
      %v3198 = vsel %vm505, %v2685, %v2861
      %v3199 = vsel %vm505, %v2686, %v2863
      %v3200 = vsel %vm1189, %v3152, %v3009
      %v3201 = vsel %vm1189, %v3153, %v3011
      %v3202 = vsel %vm1189, %v3154, %v3013
      %v3203 = vsel %vm1189, %v3155, %v3015
      %v3204 = vsel %vm1189, %v3156, %v3017
      %v3205 = vsel %vm1189, %v3157, %v3019
      %v3206 = vsel %vm1189, %v3158, %v3021
      %v3207 = vsel %vm1189, %v3159, %v3023
      %v3208 = vsel %vm1189, %v3160, %v3025
      %v3209 = vsel %vm1189, %v3161, %v3027
      %v3210 = vsel %vm1189, %v3162, %v3029
      %v3211 = vsel %vm1189, %v3163, %v3031
      %v3212 = vsel %vm1189, %v3164, %v3033
      %v3213 = vsel %vm1189, %v3165, %v3035
      %v3214 = vsel %vm1189, %v3166, %v3037
      %v3215 = vsel %vm1189, %v3167, %v3039
      %v3216 = vsel %vm1189, %v3168, %v3041
      %v3217 = vsel %vm1189, %v3169, %v3043
      %v3218 = vsel %vm1189, %v3170, %v3045
      %v3219 = vsel %vm1189, %v3171, %v3047
      %v3220 = vsel %vm1189, %v3172, %v3049
      %v3221 = vsel %vm1189, %v3173, %v3051
      %v3222 = vsel %vm1189, %v3174, %v3053
      %v3223 = vsel %vm1189, %v3175, %v3055
      %v3224 = vsel %vm1189, %v3176, %v3057
      %v3225 = vsel %vm1189, %v3177, %v3059
      %v3226 = vsel %vm1189, %v3178, %v3061
      %v3227 = vsel %vm1189, %v3179, %v3063
      %v3228 = vsel %vm1189, %v3180, %v3065
      %v3229 = vsel %vm1189, %v3181, %v3067
      %v3230 = vsel %vm1189, %v3182, %v3069
      %v3231 = vsel %vm1189, %v3183, %v3071
      %v3232 = vsel %vm1189, %v3184, %v3073
      %v3233 = vsel %vm1189, %v3185, %v3075
      %v3234 = vsel %vm1189, %v3186, %v3077
      %v3235 = vsel %vm1189, %v3187, %v3079
      %v3236 = vsel %vm1189, %v3188, %v3081
      %v3237 = vsel %vm1189, %v3189, %v3083
      %v3238 = vsel %vm1189, %v3190, %v3085
      %v3239 = vsel %vm1189, %v3191, %v3087
      %v3240 = vsel %vm1189, %v3192, %v3089
      %v3241 = vsel %vm1189, %v3193, %v3091
      %v3242 = vsel %vm1189, %v3194, %v3093
      %v3243 = vsel %vm1189, %v3195, %v3095
      %v3244 = vsel %vm1189, %v3196, %v3097
      %v3245 = vsel %vm1189, %v3197, %v3099
      %v3246 = vsel %vm1189, %v3198, %v3101
      %v3247 = vsel %vm1189, %v3199, %v3103
      %v3296 = vrot.slane %v3200, 7
      %v3297 = vrot.slane %v3201, 7
      %v3298 = vsel %vm1286, %v3296, %v3297
      %v3299 = vrot.slane %v3202, 7
      %v3300 = vsel %vm1286, %v3297, %v3299
      %v3301 = vrot.slane %v3203, 7
      %v3302 = vrot.slane %v3204, 7
      %v3303 = vsel %vm1286, %v3301, %v3302
      %v3304 = vrot.slane %v3205, 7
      %v3305 = vsel %vm1286, %v3302, %v3304
      %v3306 = vrot.slane %v3206, 7
      %v3307 = vrot.slane %v3207, 7
      %v3308 = vsel %vm1286, %v3306, %v3307
      %v3309 = vrot.slane %v3208, 7
      %v3310 = vsel %vm1286, %v3307, %v3309
      %v3311 = vrot.slane %v3209, 7
      %v3312 = vrot.slane %v3210, 7
      %v3313 = vsel %vm1286, %v3311, %v3312
      %v3314 = vrot.slane %v3211, 7
      %v3315 = vsel %vm1286, %v3312, %v3314
      %v3316 = vrot.slane %v3212, 7
      %v3317 = vrot.slane %v3213, 7
      %v3318 = vsel %vm1286, %v3316, %v3317
      %v3319 = vrot.slane %v3214, 7
      %v3320 = vsel %vm1286, %v3317, %v3319
      %v3321 = vrot.slane %v3215, 7
      %v3322 = vrot.slane %v3216, 7
      %v3323 = vsel %vm1286, %v3321, %v3322
      %v3324 = vrot.slane %v3217, 7
      %v3325 = vsel %vm1286, %v3322, %v3324
      %v3326 = vrot.slane %v3218, 7
      %v3327 = vrot.slane %v3219, 7
      %v3328 = vsel %vm1286, %v3326, %v3327
      %v3329 = vrot.slane %v3220, 7
      %v3330 = vsel %vm1286, %v3327, %v3329
      %v3331 = vrot.slane %v3221, 7
      %v3332 = vrot.slane %v3222, 7
      %v3333 = vsel %vm1286, %v3331, %v3332
      %v3334 = vrot.slane %v3223, 7
      %v3335 = vsel %vm1286, %v3332, %v3334
      %v3336 = vrot.slane %v3224, 7
      %v3337 = vrot.slane %v3225, 7
      %v3338 = vsel %vm1286, %v3336, %v3337
      %v3339 = vrot.slane %v3226, 7
      %v3340 = vsel %vm1286, %v3337, %v3339
      %v3341 = vrot.slane %v3227, 7
      %v3342 = vrot.slane %v3228, 7
      %v3343 = vsel %vm1286, %v3341, %v3342
      %v3344 = vrot.slane %v3229, 7
      %v3345 = vsel %vm1286, %v3342, %v3344
      %v3346 = vrot.slane %v3230, 7
      %v3347 = vrot.slane %v3231, 7
      %v3348 = vsel %vm1286, %v3346, %v3347
      %v3349 = vrot.slane %v3232, 7
      %v3350 = vsel %vm1286, %v3347, %v3349
      %v3351 = vrot.slane %v3233, 7
      %v3352 = vrot.slane %v3234, 7
      %v3353 = vsel %vm1286, %v3351, %v3352
      %v3354 = vrot.slane %v3235, 7
      %v3355 = vsel %vm1286, %v3352, %v3354
      %v3356 = vrot.slane %v3236, 7
      %v3357 = vrot.slane %v3237, 7
      %v3358 = vsel %vm1286, %v3356, %v3357
      %v3359 = vrot.slane %v3238, 7
      %v3360 = vsel %vm1286, %v3357, %v3359
      %v3361 = vrot.slane %v3239, 7
      %v3362 = vrot.slane %v3240, 7
      %v3363 = vsel %vm1286, %v3361, %v3362
      %v3364 = vrot.slane %v3241, 7
      %v3365 = vsel %vm1286, %v3362, %v3364
      %v3366 = vrot.slane %v3242, 7
      %v3367 = vrot.slane %v3243, 7
      %v3368 = vsel %vm1286, %v3366, %v3367
      %v3369 = vrot.slane %v3244, 7
      %v3370 = vsel %vm1286, %v3367, %v3369
      %v3371 = vrot.slane %v3245, 7
      %v3372 = vrot.slane %v3246, 7
      %v3373 = vsel %vm1286, %v3371, %v3372
      %v3374 = vrot.slane %v3247, 7
      %v3375 = vsel %vm1286, %v3372, %v3374
      %v3408 = vpack.c.bf16 %v3300, %v3298
      %v3409 = vpack.c.bf16 %v3305, %v3303
      %v3410 = vpack.c.bf16 %v3310, %v3308
      %v3411 = vpack.c.bf16 %v3315, %v3313
      %v3412 = vpack.c.bf16 %v3320, %v3318
      %v3413 = vpack.c.bf16 %v3325, %v3323
      %v3414 = vpack.c.bf16 %v3330, %v3328
      %v3415 = vpack.c.bf16 %v3335, %v3333
      %v3416 = vpack.c.bf16 %v3340, %v3338
      %v3417 = vpack.c.bf16 %v3345, %v3343
      %v3418 = vpack.c.bf16 %v3350, %v3348
      %v3419 = vpack.c.bf16 %v3355, %v3353
      %v3420 = vpack.c.bf16 %v3360, %v3358
      %v3421 = vpack.c.bf16 %v3365, %v3363
      %v3422 = vpack.c.bf16 %v3370, %v3368
      %v3423 = vpack.c.bf16 %v3375, %v3373
      %s3424 = scalar_lea.vmem %s4, 16
      %v3425 = vld [vmem:[%s3424] sm:$0xf]
      %v3426 = vld [vmem:[%s3424 + $0x4] sm:$0x3]
      %v3429 = vunpack.c.l.b16 %v3425
      %v3430 = vunpack.c.l.b16 %v3426
      %v3431 = vpack.c.b16 %v3430, %v3429
      %v3433 = vsel %vm2225, %v3408, 0
      %v3436 = vsel %vm2225, %v3409, 0
      %v3439 = vsel %vm2225, %v3410, 0
      %v3442 = vsel %vm2225, %v3411, 0
      %v3445 = vsel %vm2225, %v3412, 0
      %v3448 = vsel %vm2225, %v3413, 0
      %v3451 = vsel %vm2225, %v3414, 0
      %v3454 = vsel %vm2225, %v3415, 0
      %v3457 = vsel %vm2225, %v3416, 0
      %v3460 = vsel %vm2225, %v3417, 0
      %v3463 = vsel %vm2225, %v3418, 0
      %v3466 = vsel %vm2225, %v3419, 0
      %v3469 = vsel %vm2225, %v3420, 0
      %v3472 = vsel %vm2225, %v3421, 0
      %v3475 = vsel %vm2225, %v3422, 0
      %v3478 = vsel %vm2225, %v3423, 0
      %v3481 = vsel %vm916, %v3431, 0
      %3483 = vmatprep.subr.bf16.mxu0 0
      %3484 = vmatpush1.bf16.msra.mxu0 0
      %3485 = vmatprep.subr.bf16.mxu0 0
      %3486 = vmatpush1.bf16.msra.mxu0 0
      %3487 = vmatprep.subr.bf16.mxu0 0
      %3488 = vmatpush1.bf16.msra.mxu0 0
      %3489 = vmatprep.subr.bf16.mxu0 0
      %3490 = vmatpush1.bf16.msra.mxu0 0
      %3491 = vmatprep.subr.bf16.mxu0 0
      %3492 = vmatpush1.bf16.msra.mxu0 0
      %3493 = vmatprep.subr.bf16.mxu0 0
      %3494 = vmatpush1.bf16.msra.mxu0 0
      %3495 = vmatprep.subr.bf16.mxu0 0
      %3496 = vmatpush1.bf16.msra.mxu0 0
      %3497 = vmatprep.subr.bf16.mxu0 0
      %3498 = vmatpush1.bf16.msra.mxu0 %v3481
      %3499 = vmatprep.subr.bf16.mxu0 0
      %3500 = vmatpush2.bf16.msra.mxu0 0
      %3501 = vmatprep.subr.bf16.mxu0 0
      %3502 = vmatpush2.bf16.msra.mxu0 0
      %3503 = vmatprep.subr.bf16.mxu0 0
      %3504 = vmatpush2.bf16.msra.mxu0 0
      %3505 = vmatprep.subr.bf16.mxu0 0
      %3506 = vmatpush2.bf16.msra.mxu0 0
      %3507 = vmatprep.subr.bf16.mxu0 0
      %3508 = vmatpush2.bf16.msra.mxu0 0
      %3509 = vmatprep.subr.bf16.mxu0 0
      %3510 = vmatpush2.bf16.msra.mxu0 0
      %3511 = vmatprep.subr.bf16.mxu0 0
      %3512 = vmatpush2.bf16.msra.mxu0 0
      %3513 = vmatprep.subr.bf16.mxu0 0
      %3514 = vmatpush2.bf16.msra.mxu0 0
      %3515 = vmatprep.mubr.bf16.mxu0 0
      %3516 = vmatmul.mubr.bf16.gmra.mxu0 %v3433
      %v3517 = vpop.f32.mrf.mxu0
      %v3518 = vadd.f32 0.0, %v3517
      %v3519 = vpop.f32.mrf.mxu0
      %v3520 = vpop.f32.mrf.mxu0
      %v3521 = vadd.f32 0.0, %v3520
      %v3522 = vpop.f32.mrf.mxu0
      %3523 = vmatprep.mubr.bf16.mxu0 0
      %3524 = vmatmul.mubr.bf16.gmra.mxu0 %v3436
      %v3525 = vpop.f32.mrf.mxu0
      %v3526 = vpop.f32.mrf.mxu0
      %v3527 = vpop.f32.mrf.mxu0
      %v3528 = vpop.f32.mrf.mxu0
      %3529 = vmatprep.mubr.bf16.mxu0 0
      %3530 = vmatmul.mubr.bf16.gmra.mxu0 %v3439
      %v3531 = vpop.f32.mrf.mxu0
      %v3532 = vadd.f32 0.0, %v3531
      %v3533 = vpop.f32.mrf.mxu0
      %v3534 = vpop.f32.mrf.mxu0
      %v3535 = vadd.f32 0.0, %v3534
      %v3536 = vpop.f32.mrf.mxu0
      %3537 = vmatprep.mubr.bf16.mxu0 0
      %3538 = vmatmul.mubr.bf16.gmra.mxu0 %v3442
      %v3539 = vpop.f32.mrf.mxu0
      %v3540 = vpop.f32.mrf.mxu0
      %v3541 = vpop.f32.mrf.mxu0
      %v3542 = vpop.f32.mrf.mxu0
      %3543 = vmatprep.mubr.bf16.mxu0 0
      %3544 = vmatmul.mubr.bf16.gmra.mxu0 %v3445
      %v3545 = vpop.f32.mrf.mxu0
      %v3546 = vadd.f32 0.0, %v3545
      %v3547 = vpop.f32.mrf.mxu0
      %v3548 = vpop.f32.mrf.mxu0
      %v3549 = vadd.f32 0.0, %v3548
      %v3550 = vpop.f32.mrf.mxu0
      %3551 = vmatprep.mubr.bf16.mxu0 0
      %3552 = vmatmul.mubr.bf16.gmra.mxu0 %v3448
      %v3553 = vpop.f32.mrf.mxu0
      %v3554 = vpop.f32.mrf.mxu0
      %v3555 = vpop.f32.mrf.mxu0
      %v3556 = vpop.f32.mrf.mxu0
      %3557 = vmatprep.mubr.bf16.mxu0 0
      %3558 = vmatmul.mubr.bf16.gmra.mxu0 %v3451
      %v3559 = vpop.f32.mrf.mxu0
      %v3560 = vadd.f32 0.0, %v3559
      %v3561 = vpop.f32.mrf.mxu0
      %v3562 = vpop.f32.mrf.mxu0
      %v3563 = vadd.f32 0.0, %v3562
      %v3564 = vpop.f32.mrf.mxu0
      %3565 = vmatprep.mubr.bf16.mxu0 0
      %3566 = vmatmul.mubr.bf16.gmra.mxu0 %v3454
      %v3567 = vpop.f32.mrf.mxu0
      %v3568 = vpop.f32.mrf.mxu0
      %v3569 = vpop.f32.mrf.mxu0
      %v3570 = vpop.f32.mrf.mxu0
      %3571 = vmatprep.mubr.bf16.mxu0 0
      %3572 = vmatmul.mubr.bf16.gmra.mxu0 %v3457
      %v3573 = vpop.f32.mrf.mxu0
      %v3574 = vadd.f32 0.0, %v3573
      %v3575 = vpop.f32.mrf.mxu0
      %v3576 = vpop.f32.mrf.mxu0
      %v3577 = vadd.f32 0.0, %v3576
      %v3578 = vpop.f32.mrf.mxu0
      %3579 = vmatprep.mubr.bf16.mxu0 0
      %3580 = vmatmul.mubr.bf16.gmra.mxu0 %v3460
      %v3581 = vpop.f32.mrf.mxu0
      %v3582 = vpop.f32.mrf.mxu0
      %v3583 = vpop.f32.mrf.mxu0
      %v3584 = vpop.f32.mrf.mxu0
      %3585 = vmatprep.mubr.bf16.mxu0 0
      %3586 = vmatmul.mubr.bf16.gmra.mxu0 %v3463
      %v3587 = vpop.f32.mrf.mxu0
      %v3588 = vadd.f32 0.0, %v3587
      %v3589 = vpop.f32.mrf.mxu0
      %v3590 = vpop.f32.mrf.mxu0
      %v3591 = vadd.f32 0.0, %v3590
      %v3592 = vpop.f32.mrf.mxu0
      %3593 = vmatprep.mubr.bf16.mxu0 0
      %3594 = vmatmul.mubr.bf16.gmra.mxu0 %v3466
      %v3595 = vpop.f32.mrf.mxu0
      %v3596 = vpop.f32.mrf.mxu0
      %v3597 = vpop.f32.mrf.mxu0
      %v3598 = vpop.f32.mrf.mxu0
      %3599 = vmatprep.mubr.bf16.mxu0 0
      %3600 = vmatmul.mubr.bf16.gmra.mxu0 %v3469
      %v3601 = vpop.f32.mrf.mxu0
      %v3602 = vadd.f32 0.0, %v3601
      %v3603 = vpop.f32.mrf.mxu0
      %v3604 = vpop.f32.mrf.mxu0
      %v3605 = vadd.f32 0.0, %v3604
      %v3606 = vpop.f32.mrf.mxu0
      %3607 = vmatprep.mubr.bf16.mxu0 0
      %3608 = vmatmul.mubr.bf16.gmra.mxu0 %v3472
      %v3609 = vpop.f32.mrf.mxu0
      %v3610 = vpop.f32.mrf.mxu0
      %v3611 = vpop.f32.mrf.mxu0
      %v3612 = vpop.f32.mrf.mxu0
      %3613 = vmatprep.mubr.bf16.mxu0 0
      %3614 = vmatmul.mubr.bf16.gmra.mxu0 %v3475
      %v3615 = vpop.f32.mrf.mxu0
      %v3616 = vadd.f32 0.0, %v3615
      %v3617 = vpop.f32.mrf.mxu0
      %v3618 = vpop.f32.mrf.mxu0
      %v3619 = vadd.f32 0.0, %v3618
      %v3620 = vpop.f32.mrf.mxu0
      %3621 = vmatprep.mubr.bf16.mxu0 0
      %3622 = vmatmul.mubr.bf16.gmra.mxu0 %v3478
      %v3623 = vpop.f32.mrf.mxu0
      %v3624 = vpop.f32.mrf.mxu0
      %v3625 = vpop.f32.mrf.mxu0
      %v3626 = vpop.f32.mrf.mxu0
      %3627 = vdwg.mxu0
      %v3628 = vadd.f32 %v2513, %v3518
      %v3629 = vadd.f32 %v2516, %v3521
      %v3630 = vadd.f32 %v2527, %v3532
      %v3631 = vadd.f32 %v2530, %v3535
      %v3632 = vadd.f32 %v2541, %v3546
      %v3633 = vadd.f32 %v2544, %v3549
      %v3634 = vadd.f32 %v2555, %v3560
      %v3635 = vadd.f32 %v2558, %v3563
      %v3636 = vadd.f32 %v2569, %v3574
      %v3637 = vadd.f32 %v2572, %v3577
      %v3638 = vadd.f32 %v2583, %v3588
      %v3639 = vadd.f32 %v2586, %v3591
      %v3640 = vadd.f32 %v2597, %v3602
      %v3641 = vadd.f32 %v2600, %v3605
      %v3642 = vadd.f32 %v2611, %v3616
      %v3643 = vadd.f32 %v2614, %v3619
      %v3644 = vpack.c.bf16 %v3629, %v3628
      %v3645 = vpack.c.bf16 %v3631, %v3630
      %v3646 = vpack.c.bf16 %v3633, %v3632
      %v3647 = vpack.c.bf16 %v3635, %v3634
      %v3648 = vpack.c.bf16 %v3637, %v3636
      %v3649 = vpack.c.bf16 %v3639, %v3638
      %v3650 = vpack.c.bf16 %v3641, %v3640
      %v3651 = vpack.c.bf16 %v3643, %v3642
      %v3660 = vunpack.c.l.b16 %v3644
      %v3661 = vunpack.c.h.b16 %v3644
      %v3662 = vunpack.c.l.b16 %v3645
      %v3663 = vunpack.c.h.b16 %v3645
      %v3664 = vunpack.c.l.b16 %v3646
      %v3665 = vunpack.c.h.b16 %v3646
      %v3666 = vunpack.c.l.b16 %v3647
      %v3667 = vunpack.c.h.b16 %v3647
      %v3668 = vunpack.c.l.b16 %v3648
      %v3669 = vunpack.c.h.b16 %v3648
      %v3670 = vunpack.c.l.b16 %v3649
      %v3671 = vunpack.c.h.b16 %v3649
      %v3672 = vunpack.c.l.b16 %v3650
      %v3673 = vunpack.c.h.b16 %v3650
      %v3674 = vunpack.c.l.b16 %v3651
      %v3675 = vunpack.c.h.b16 %v3651
      %v3676 = vpack.c.b16 %v3660, %v3660
      %v3677 = vpack.c.b16 %v3661, %v3661
      %v3678 = vpack.c.b16 %v3662, %v3662
      %v3679 = vpack.c.b16 %v3663, %v3663
      %v3680 = vpack.c.b16 %v3664, %v3664
      %v3681 = vpack.c.b16 %v3665, %v3665
      %v3682 = vpack.c.b16 %v3666, %v3666
      %v3683 = vpack.c.b16 %v3667, %v3667
      %v3684 = vpack.c.b16 %v3668, %v3668
      %v3685 = vpack.c.b16 %v3669, %v3669
      %v3686 = vpack.c.b16 %v3670, %v3670
      %v3687 = vpack.c.b16 %v3671, %v3671
      %v3688 = vpack.c.b16 %v3672, %v3672
      %v3689 = vpack.c.b16 %v3673, %v3673
      %v3690 = vpack.c.b16 %v3674, %v3674
      %v3691 = vpack.c.b16 %v3675, %v3675
      %vm3708 = vcmask 27648
      %3709 = vst.msk [vmem:[%s259] sm:$0xf] %vm3708, %v3676
      %3710 = vst.msk [vmem:[%s259 + $0x4] sm:$0xf] %vm3708, %v3677
      %3711 = vst.msk [vmem:[%s259 + $0x8] sm:$0xf] %vm3708, %v3678
      %3712 = vst.msk [vmem:[%s259 + $0xc] sm:$0xf] %vm3708, %v3679
      %3713 = vst.msk [vmem:[%s259 + $0x10] sm:$0xf] %vm3708, %v3680
      %3714 = vst.msk [vmem:[%s259 + $0x14] sm:$0xf] %vm3708, %v3681
      %3715 = vst.msk [vmem:[%s259 + $0x18] sm:$0xf] %vm3708, %v3682
      %3716 = vst.msk [vmem:[%s259 + $0x1c] sm:$0xf] %vm3708, %v3683
      %3717 = vst.msk [vmem:[%s259 + $0x20] sm:$0xf] %vm3708, %v3684
      %3718 = vst.msk [vmem:[%s259 + $0x24] sm:$0xf] %vm3708, %v3685
      %3719 = vst.msk [vmem:[%s259 + $0x28] sm:$0xf] %vm3708, %v3686
      %3720 = vst.msk [vmem:[%s259 + $0x2c] sm:$0xf] %vm3708, %v3687
      %3721 = vst.msk [vmem:[%s259 + $0x30] sm:$0xf] %vm3708, %v3688
      %3722 = vst.msk [vmem:[%s259 + $0x34] sm:$0xf] %vm3708, %v3689
      %3723 = vst.msk [vmem:[%s259 + $0x38] sm:$0xf] %vm3708, %v3690
      %3724 = vst.msk [vmem:[%s259 + $0x3c] sm:$0xf] %vm3708, %v3691
      %v3725 = vlaneseq
      %v3726 = vshrl.u32 %v3725, 7
      %v3727 = vadd.s32 %v3726, 8
      %vm3728 = vcmp.lt.s32.totalorder %v3726, 0
      %v3729 = vsub.s32 0, %v3726
      %v3730 = vsel %vm3728, %v3729, %v3726
      %v3731 = vshrl.u32 %v3730, 1
      %v3732 = vand.u32 %v3730, 1
      %v3733 = vsub.s32 0, %v3732
      %v3734 = vsel %vm3728, %v3733, %v3732
      %vm3735 = vcmp.lt.s32.totalorder %v3727, 0
      %v3736 = vsub.s32 0, %v3727
      %v3737 = vsel %vm3735, %v3736, %v3727
      %v3738 = vshrl.u32 %v3737, 1
      %v3739 = vand.u32 %v3737, 1
      %v3740 = vsub.s32 0, %v3739
      %v3741 = vsel %vm3735, %v3740, %v3739
      %vm3742 = vcmp.ne.s32.totalorder %v3734, 0
      %vm3743 = vcmp.ne.s32.totalorder %v3741, 0
      %vm3744 = vcmp.lt.s32.totalorder %v3734, 0
      %vm3745 = vcmp.lt.s32.totalorder %v3741, 0
      %vm3746 = vmand %vm3744, %vm3742
      %vm3747 = vmand %vm3745, %vm3743
      %v3748 = vadd.s32 %v3734, 2
      %v3749 = vadd.s32 %v3741, 2
      %v3750 = vsel %vm3746, %v3748, %v3734
      %v3751 = vsel %vm3747, %v3749, %v3741
      %vm3752 = vcmp.eq.s32.totalorder %v3750, 0
      %vm3753 = vcmp.eq.s32.totalorder %v3751, 0
      %v3754 = vsel %vm3752, %v3628, 0.0
      %v3755 = vsel %vm3753, %v3629, 0.0
      %v3756 = vsel %vm3752, %v3630, 0.0
      %v3757 = vsel %vm3753, %v3631, 0.0
      %v3758 = vsel %vm3752, %v3632, 0.0
      %v3759 = vsel %vm3753, %v3633, 0.0
      %v3760 = vsel %vm3752, %v3634, 0.0
      %v3761 = vsel %vm3753, %v3635, 0.0
      %v3762 = vsel %vm3752, %v3636, 0.0
      %v3763 = vsel %vm3753, %v3637, 0.0
      %v3764 = vsel %vm3752, %v3638, 0.0
      %v3765 = vsel %vm3753, %v3639, 0.0
      %v3766 = vsel %vm3752, %v3640, 0.0
      %v3767 = vsel %vm3753, %v3641, 0.0
      %v3768 = vsel %vm3752, %v3642, 0.0
      %v3769 = vsel %vm3753, %v3643, 0.0
      %v3770 = vsel %vm505, %v3754, 0.0
      %v3771 = vsel %vm505, %v3756, 0.0
      %v3772 = vadd.f32 %v3770, %v3771
      %v3773 = vsel %vm505, %v3758, 0.0
      %v3774 = vadd.f32 %v3772, %v3773
      %v3775 = vsel %vm505, %v3760, 0.0
      %v3776 = vadd.f32 %v3774, %v3775
      %v3777 = vsel %vm505, %v3762, 0.0
      %v3778 = vadd.f32 %v3776, %v3777
      %v3779 = vsel %vm505, %v3764, 0.0
      %v3780 = vadd.f32 %v3778, %v3779
      %v3781 = vsel %vm505, %v3766, 0.0
      %v3782 = vadd.f32 %v3780, %v3781
      %v3783 = vsel %vm505, %v3768, 0.0
      %v3784 = vadd.f32 %v3782, %v3783
      %v3785 = vsel %vm505, %v3755, 0.0
      %v3786 = vsel %vm505, %v3757, 0.0
      %v3787 = vadd.f32 %v3785, %v3786
      %v3788 = vsel %vm505, %v3759, 0.0
      %v3789 = vadd.f32 %v3787, %v3788
      %v3790 = vsel %vm505, %v3761, 0.0
      %v3791 = vadd.f32 %v3789, %v3790
      %v3792 = vsel %vm505, %v3763, 0.0
      %v3793 = vadd.f32 %v3791, %v3792
      %v3794 = vsel %vm505, %v3765, 0.0
      %v3795 = vadd.f32 %v3793, %v3794
      %v3796 = vsel %vm505, %v3767, 0.0
      %v3797 = vadd.f32 %v3795, %v3796
      %v3798 = vsel %vm505, %v3769, 0.0
      %v3799 = vadd.f32 %v3797, %v3798
      %v3800 = vsel %vm505, %v3784, 0.0
      %v3801 = vsel %vm505, %v3799, 0.0
      %v3802 = vadd.f32 %v3800, %v3801
      %v3803 = vrot.slane %v3802, 4
      %v3804 = vadd.f32 %v3802, %v3803
      %v3805 = vrot.slane %v3804, 2
      %v3806 = vadd.f32 %v3804, %v3805
      %v3807 = vrot.slane %v3806, 1
      %v3808 = vadd.f32 %v3806, %v3807
      %v3809 = vmul.f32 %v3754, %v3754
      %v3810 = vmul.f32 %v3755, %v3755
      %v3811 = vmul.f32 %v3756, %v3756
      %v3812 = vmul.f32 %v3757, %v3757
      %v3813 = vmul.f32 %v3758, %v3758
      %v3814 = vmul.f32 %v3759, %v3759
      %v3815 = vmul.f32 %v3760, %v3760
      %v3816 = vmul.f32 %v3761, %v3761
      %v3817 = vmul.f32 %v3762, %v3762
      %v3818 = vmul.f32 %v3763, %v3763
      %v3819 = vmul.f32 %v3764, %v3764
      %v3820 = vmul.f32 %v3765, %v3765
      %v3821 = vmul.f32 %v3766, %v3766
      %v3822 = vmul.f32 %v3767, %v3767
      %v3823 = vmul.f32 %v3768, %v3768
      %v3824 = vmul.f32 %v3769, %v3769
      %v3825 = vsel %vm505, %v3809, 0.0
      %v3826 = vsel %vm505, %v3811, 0.0
      %v3827 = vadd.f32 %v3825, %v3826
      %v3828 = vsel %vm505, %v3813, 0.0
      %v3829 = vadd.f32 %v3827, %v3828
      %v3830 = vsel %vm505, %v3815, 0.0
      %v3831 = vadd.f32 %v3829, %v3830
      %v3832 = vsel %vm505, %v3817, 0.0
      %v3833 = vadd.f32 %v3831, %v3832
      %v3834 = vsel %vm505, %v3819, 0.0
      %v3835 = vadd.f32 %v3833, %v3834
      %v3836 = vsel %vm505, %v3821, 0.0
      %v3837 = vadd.f32 %v3835, %v3836
      %v3838 = vsel %vm505, %v3823, 0.0
      %v3839 = vadd.f32 %v3837, %v3838
      %v3840 = vsel %vm505, %v3810, 0.0
      %v3841 = vsel %vm505, %v3812, 0.0
      %v3842 = vadd.f32 %v3840, %v3841
      %v3843 = vsel %vm505, %v3814, 0.0
      %v3844 = vadd.f32 %v3842, %v3843
      %v3845 = vsel %vm505, %v3816, 0.0
      %v3846 = vadd.f32 %v3844, %v3845
      %v3847 = vsel %vm505, %v3818, 0.0
      %v3848 = vadd.f32 %v3846, %v3847
      %v3849 = vsel %vm505, %v3820, 0.0
      %v3850 = vadd.f32 %v3848, %v3849
      %v3851 = vsel %vm505, %v3822, 0.0
      %v3852 = vadd.f32 %v3850, %v3851
      %v3853 = vsel %vm505, %v3824, 0.0
      %v3854 = vadd.f32 %v3852, %v3853
      %v3855 = vsel %vm505, %v3839, 0.0
      %v3856 = vsel %vm505, %v3854, 0.0
      %v3857 = vadd.f32 %v3855, %v3856
      %v3858 = vrot.slane %v3857, 4
      %v3859 = vadd.f32 %v3857, %v3858
      %v3860 = vrot.slane %v3859, 2
      %v3861 = vadd.f32 %v3859, %v3860
      %v3862 = vrot.slane %v3861, 1
      %v3863 = vadd.f32 %v3861, %v3862
      %v3864 = vsel %vm1286, %v3808, %v3863
      %vm3865 = vcmask 25600
      %3866 = vst.msk [vmem:[%s263] sm:$0x3] %vm3865, %v3864
      %p3867 = scmp.lt.s32.totalorder %s19, 1
      %s3868 = scalar_select %p3867, %s19, 1
      %s3869 = smul.addr %s3868, 16
      %s3870 = smul.addr %s3869, 4
      %s3871 = scalar_lea.vmem %s5, %s3870
      %p3872 = scmp.lt.s32.totalorder %s19, 1
      %s3873 = scalar_select %p3872, %s19, 1
      %s3874 = smul.addr %s3873, 2
      %s3875 = scalar_lea.vmem %s6, %s3874
      // Predicated region
      $region41: #{preact_bottleneck.4} parent=39 // pred_check
        %p3876 = pneg %p147
      $region42: #{preact_bottleneck.4} parent=39 // pred_check_branch
        %3878 = sbr.rel (%p3876) target = $region44
      $region43: #{preact_bottleneck.4} parent=39 // pred_region
        _
      $region44: #{preact_bottleneck.4} parent=39 // pred_fallthru
        _
      // Predicated region
      $region45: #{preact_bottleneck.4} parent=39 // pred_check
        %p3879 = pneg %p173
      $region46: #{preact_bottleneck.4} parent=39 // pred_check_branch
        %3881 = sbr.rel (%p3879) target = $region48
      $region47: #{preact_bottleneck.4} parent=39 // pred_region
        _
      $region48: #{preact_bottleneck.4} parent=39 // pred_fallthru
        _
    $region40: #{preact_bottleneck.4} parent=5 // pred_fallthru
      _
    %p3882 = scmp.le.s32.totalorder 2, %s14
    // Predicated region
    $region49: #{preact_bottleneck.4} parent=5 // pred_check
      %p3883 = pneg %p3882
    $region50: #{preact_bottleneck.4} parent=5 // pred_check_branch
      %3885 = sbr.rel (%p3883) target = $region52
    $region51: #{preact_bottleneck.4} parent=5 // pred_region
      %s3886 = ssub.s32 %s14, 2
      // Predicated region
      $region53: #{preact_bottleneck.4} parent=51 // pred_check
        %p3887 = pneg %p153
      $region54: #{preact_bottleneck.4} parent=51 // pred_check_branch
        %3889 = sbr.rel (%p3887) target = $region56
      $region55: #{preact_bottleneck.4} parent=51 // pred_region
        %p3890 = scmp.lt.s32.totalorder %s20, 1
        %s3891 = scalar_select %p3890, %s20, 1
        %s3892 = smul.addr %s3891, 16
        %s3893 = smul.addr %s3892, 4
        %s3894 = scalar_lea.vmem %s5, %s3893
      $region56: #{preact_bottleneck.4} parent=51 // pred_fallthru
        _
      // Predicated region
      $region57: #{preact_bottleneck.4} parent=51 // pred_check
        %p3895 = pneg %p179
      $region58: #{preact_bottleneck.4} parent=51 // pred_check_branch
        %3897 = sbr.rel (%p3895) target = $region60
      $region59: #{preact_bottleneck.4} parent=51 // pred_region
        %p3898 = scmp.lt.s32.totalorder %s20, 1
        %s3899 = scalar_select %p3898, %s20, 1
        %s3900 = smul.addr %s3899, 2
        %s3901 = scalar_lea.vmem %s6, %s3900
      $region60: #{preact_bottleneck.4} parent=51 // pred_fallthru
        _
    $region52: #{preact_bottleneck.4} parent=5 // pred_fallthru
      _
  $region6: #{preact_bottleneck.4} parent=0 // loop_footer
    %s18 = sadd.s32 1, %s14
  $region7: #{preact_bottleneck.4} parent=0 // loop_footer_branch
    %13 = sbr.rel target = $region3
  $region8: #{preact_bottleneck.4} parent=0 // loop_exit
    _

</llo_original>
